<compile_context>
chip_gen: v5e
topology: v5e:2x2
jax: 0.10.0
libtpu: 0.0.40
codegen_flags: <defaults>
</compile_context>

<pallas_src>
import functools

import jax
import jax.numpy as jnp
from jax.experimental import pallas as pl
from jax.experimental.pallas import tpu as pltpu

HIDDEN_SIZE = 100            # logical H (PyTorch module)
HIDDEN_PAD = 128             # lane-aligned padded H used inside the kernel
INPUT_SIZE = 4 * 4 * 32      # 512
LAYER_SIZE = 2
NUM_CLASSES = 2
NUM_CLASSES_PAD = 128        # lane-aligned padded output width


def lstm_fc_kernel(x_ref, wih1_ref, whh1_ref, b1_ref, wih2_ref, whh2_ref,
                   b2_ref, wfc_ref, bfc_ref, out_ref, *, T, Bp, Hp):
    # x_ref:   (T*Bp, D)   bf16  time-major, batch padded to Bp
    # wih1:    (D, 4Hp)    bf16  layer-0 input weights (gate-col padded)
    # whh1:    (Hp, 4Hp)   bf16  layer-0 recurrent weights
    # b1/b2:   (1, 4Hp)    f32   b_ih + b_hh (gate-col padded)
    # wih2:    (Hp, 4Hp)   bf16  layer-1 input weights
    # whh2:    (Hp, 4Hp)   bf16  layer-1 recurrent weights
    # wfc:     (Hp, Cp)    f32   fc weights (row/col padded)
    # bfc:     (1, Cp)     f32
    # out:     (Bp, Cp)    f32
    G = 4 * Hp

    # --- hoisted, time-independent input projection (one big MXU call) ---
    xw = jnp.dot(x_ref[...], wih1_ref[...],
                 preferred_element_type=jnp.float32)          # (T*Bp, 4Hp) f32
    xw = xw + b1_ref[...]                                     # bias folded once

    whh1 = whh1_ref[...]
    wih2 = wih2_ref[...]
    whh2 = whh2_ref[...]
    b2b = jnp.broadcast_to(b2_ref[...], (Bp, G))              # hoisted broadcast

    h1_bf = jnp.zeros((Bp, Hp), jnp.bfloat16)
    h2_bf = jnp.zeros((Bp, Hp), jnp.bfloat16)
    c1 = jnp.zeros((Bp, Hp), jnp.float32)
    c2 = jnp.zeros((Bp, Hp), jnp.float32)
    h2 = jnp.zeros((Bp, Hp), jnp.float32)

    def gate_math(gates, c):
        # PyTorch gate order: input, forget, cell(g), output.
        # Slices are exact multiples of 128 -> lane-aligned, pure VPU/EUP.
        i = jax.nn.sigmoid(gates[:, 0 * Hp:1 * Hp])
        f = jax.nn.sigmoid(gates[:, 1 * Hp:2 * Hp])
        g = jnp.tanh(gates[:, 2 * Hp:3 * Hp])
        o = jax.nn.sigmoid(gates[:, 3 * Hp:4 * Hp])
        c_new = f * c + i * g
        h_new = o * jnp.tanh(c_new)
        return h_new, c_new

    # --- recurrence: static unroll over T (compile-time constant) ---
    for t in range(T):
        xw_t = xw[t * Bp:(t + 1) * Bp, :]                     # static, sublane-aligned

        # Off-critical-path: layer-1 recurrent term depends only on the
        # previous step's h2, so it overlaps with layer-0's matmul below.
        g2_rec = jnp.dot(h2_bf, whh2, preferred_element_type=jnp.float32)

        # Critical chain: layer-0 recurrent matmul (K=Hp) + gate math.
        g1 = xw_t + jnp.dot(h1_bf, whh1, preferred_element_type=jnp.float32)
        h1, c1 = gate_math(g1, c1)
        h1_bf = h1.astype(jnp.bfloat16)                       # reused next step too

        # Layer 1: only the K=Hp input matmul is serialized after gate_math1.
        g2 = b2b + g2_rec + jnp.dot(h1_bf, wih2,
                                    preferred_element_type=jnp.float32)
        h2, c2 = gate_math(g2, c2)
        h2_bf = h2.astype(jnp.bfloat16)

    # fc on the last time step's top-layer hidden state (lane-dense store)
    out_ref[...] = (jnp.dot(h2, wfc_ref[...],
                            preferred_element_type=jnp.float32)
                    + bfc_ref[...])


def init_params(key, input_size=INPUT_SIZE, hidden=HIDDEN_SIZE,
                num_classes=NUM_CLASSES):
    """Deterministic init mimicking PyTorch's U(-1/sqrt(H), 1/sqrt(H))."""
    ks = jax.random.split(key, 12)
    bound = 1.0 / jnp.sqrt(hidden)

    def u(k, shape):
        return jax.random.uniform(k, shape, jnp.float32, -bound, bound)

    p = {}
    # layer 0
    p["w_ih0"] = u(ks[0], (4 * hidden, input_size))
    p["w_hh0"] = u(ks[1], (4 * hidden, hidden))
    p["b_ih0"] = u(ks[2], (4 * hidden,))
    p["b_hh0"] = u(ks[3], (4 * hidden,))
    # layer 1 (input is previous layer's hidden)
    p["w_ih1"] = u(ks[4], (4 * hidden, hidden))
    p["w_hh1"] = u(ks[5], (4 * hidden, hidden))
    p["b_ih1"] = u(ks[6], (4 * hidden,))
    p["b_hh1"] = u(ks[7], (4 * hidden,))
    # fc
    p["w_fc"] = jax.random.uniform(ks[8], (num_classes, hidden), jnp.float32,
                                   -bound, bound)
    p["b_fc"] = jax.random.uniform(ks[9], (num_classes,), jnp.float32,
                                   -bound, bound)
    return p


def _pad_gate_cols(w_t, H, Hp):
    """w_t: (rows, 4H) with gate blocks [i|f|g|o] -> (rows, 4Hp), zero-padded."""
    rows = w_t.shape[0]
    w4 = w_t.reshape(rows, 4, H)
    w4 = jnp.pad(w4, ((0, 0), (0, 0), (0, Hp - H)))
    return w4.reshape(rows, 4 * Hp)


def _pad_rows(w, rows_p):
    return jnp.pad(w, ((0, rows_p - w.shape[0]), (0, 0)))


def lstm_forward(x, params):
    """x: (B, T, INPUT_SIZE) float32 -> (B, NUM_CLASSES) float32."""
    B, T, D = x.shape
    H, Hp = HIDDEN_SIZE, HIDDEN_PAD
    C, Cp = NUM_CLASSES, NUM_CLASSES_PAD
    Bp = ((B + 7) // 8) * 8                     # pad batch to a sublane tile

    # ----- input: pad batch, go time-major, flatten (T, Bp, D) -> (T*Bp, D) -----
    x_p = jnp.pad(x, ((0, Bp - B), (0, 0), (0, 0)))
    x_tm = jnp.transpose(x_p, (1, 0, 2)).reshape(T * Bp, D).astype(jnp.bfloat16)

    # ----- weights: transpose, zero-pad H->Hp (rows + gate columns), bf16 -----
    wih1 = _pad_gate_cols(params["w_ih0"].T, H, Hp).astype(jnp.bfloat16)      # (D, 4Hp)
    whh1 = _pad_rows(_pad_gate_cols(params["w_hh0"].T, H, Hp), Hp)
    whh1 = whh1.astype(jnp.bfloat16)                                          # (Hp, 4Hp)
    b1 = _pad_gate_cols((params["b_ih0"] + params["b_hh0"]).reshape(1, 4 * H),
                        H, Hp)                                                # (1, 4Hp)

    wih2 = _pad_rows(_pad_gate_cols(params["w_ih1"].T, H, Hp), Hp)
    wih2 = wih2.astype(jnp.bfloat16)                                          # (Hp, 4Hp)
    whh2 = _pad_rows(_pad_gate_cols(params["w_hh1"].T, H, Hp), Hp)
    whh2 = whh2.astype(jnp.bfloat16)                                          # (Hp, 4Hp)
    b2 = _pad_gate_cols((params["b_ih1"] + params["b_hh1"]).reshape(1, 4 * H),
                        H, Hp)                                                # (1, 4Hp)

    wfc = jnp.pad(params["w_fc"].T, ((0, Hp - H), (0, Cp - C)))               # (Hp, Cp)
    bfc = jnp.pad(params["b_fc"].reshape(1, C), ((0, 0), (0, Cp - C)))        # (1, Cp)

    vmem_spec = pl.BlockSpec(memory_space=pltpu.MemorySpace.VMEM)

    # Single program: everything fits comfortably in VMEM at these sizes.
    # TODO(synk): for large T/B, stream x in time chunks (pl.ANY +
    # make_async_copy) and shard batch tiles across v7x's two TensorCores.
    out_full = pl.pallas_call(
        functools.partial(lstm_fc_kernel, T=T, Bp=Bp, Hp=Hp),
        out_shape=jax.ShapeDtypeStruct((Bp, Cp), jnp.float32),
        in_specs=[vmem_spec] * 9,
        out_specs=vmem_spec,
    )(x_tm, wih1, whh1, b1, wih2, whh2, b2, wfc, bfc)

    return out_full[:B, :C]


def lstm_forward_ref(x, params):
    """Pure-JAX float32 reference (same math, lax.scan)."""
    H = HIDDEN_SIZE
    B = x.shape[0]

    def cell(x_t, h, c, w_ih, w_hh, b_ih, b_hh):
        gates = x_t @ w_ih.T + b_ih + h @ w_hh.T + b_hh
        i = jax.nn.sigmoid(gates[:, 0 * H:1 * H])
        f = jax.nn.sigmoid(gates[:, 1 * H:2 * H])
        g = jnp.tanh(gates[:, 2 * H:3 * H])
        o = jax.nn.sigmoid(gates[:, 3 * H:4 * H])
        c = f * c + i * g
        h = o * jnp.tanh(c)
        return h, c

    def step(carry, x_t):
        h1, c1, h2, c2 = carry
        h1, c1 = cell(x_t, h1, c1, params["w_ih0"], params["w_hh0"],
                      params["b_ih0"], params["b_hh0"])
        h2, c2 = cell(h1, h2, c2, params["w_ih1"], params["w_hh1"],
                      params["b_ih1"], params["b_hh1"])
        return (h1, c1, h2, c2), None

    z = jnp.zeros((B, H), jnp.float32)
    (h1, c1, h2, c2), _ = jax.lax.scan(step, (z, z, z, z),
                                       jnp.transpose(x, (1, 0, 2)))
    return h2 @ params["w_fc"].T + params["b_fc"]


if __name__ == "__main__":
    key = jax.random.PRNGKey(0)
    k_x, k_p = jax.random.split(key)

    B, T = 2, 8
    x = jax.random.normal(k_x, (B, T, INPUT_SIZE), jnp.float32)
    params = init_params(k_p)

    out = jax.block_until_ready(lstm_forward(x, params))
    ref = jax.block_until_ready(lstm_forward_ref(x, params))

    assert out.shape == (B, NUM_CLASSES)
    # bf16 matmul inputs with f32 accumulation; padded lanes are exactly zero.
    assert jnp.allclose(out, ref, rtol=2e-2, atol=2e-2), (out, ref)

    print("KERNEL_OK")
</pallas_src>

<mosaic_0001>
module attributes {stable_mosaic.version = 11 : i64} {
  func.func @lstm_fc_kernel(%arg0: memref<64x512xbf16, #tpu.memory_space<vmem>>, %arg1: memref<512x512xbf16, #tpu.memory_space<vmem>>, %arg2: memref<128x512xbf16, #tpu.memory_space<vmem>>, %arg3: memref<1x512xf32, #tpu.memory_space<vmem>>, %arg4: memref<128x512xbf16, #tpu.memory_space<vmem>>, %arg5: memref<128x512xbf16, #tpu.memory_space<vmem>>, %arg6: memref<1x512xf32, #tpu.memory_space<vmem>>, %arg7: memref<128x128xf32, #tpu.memory_space<vmem>>, %arg8: memref<1x128xf32, #tpu.memory_space<vmem>>, %arg9: memref<8x128xf32, #tpu.memory_space<vmem>>) attributes {dimension_semantics = [], scalar_prefetch = 0 : i64, scratch_operands = 0 : i64, tpu.core_type = #tpu.core_type<tc>} {
    %c0 = arith.constant 0 : index
    %c0_0 = arith.constant 0 : index
    %0 = vector.load %arg0[%c0, %c0_0] : memref<64x512xbf16, #tpu.memory_space<vmem>>, vector<64x512xbf16>
    %c0_1 = arith.constant 0 : index
    %c0_2 = arith.constant 0 : index
    %1 = vector.load %arg1[%c0_1, %c0_2] : memref<512x512xbf16, #tpu.memory_space<vmem>>, vector<512x512xbf16>
    %cst = arith.constant dense<0.000000e+00> : vector<64x512xf32>
    %2 = tpu.matmul %0, %1, %cst {dimension_numbers = #tpu.dot_dimension_numbers<[1], [0], [0], [1], [0, 0, 1, 1], [], []>} : vector<64x512xbf16>, vector<512x512xbf16>, vector<64x512xf32> -> vector<64x512xf32>
    %c0_3 = arith.constant 0 : index
    %c0_4 = arith.constant 0 : index
    %3 = vector.load %arg3[%c0_3, %c0_4] : memref<1x512xf32, #tpu.memory_space<vmem>>, vector<1x512xf32>
    %4 = vector.broadcast %3 : vector<1x512xf32> to vector<64x512xf32>
    %5 = arith.addf %2, %4 : vector<64x512xf32>
    %c0_5 = arith.constant 0 : index
    %c0_6 = arith.constant 0 : index
    %6 = vector.load %arg2[%c0_5, %c0_6] : memref<128x512xbf16, #tpu.memory_space<vmem>>, vector<128x512xbf16>
    %c0_7 = arith.constant 0 : index
    %c0_8 = arith.constant 0 : index
    %7 = vector.load %arg4[%c0_7, %c0_8] : memref<128x512xbf16, #tpu.memory_space<vmem>>, vector<128x512xbf16>
    %c0_9 = arith.constant 0 : index
    %c0_10 = arith.constant 0 : index
    %8 = vector.load %arg5[%c0_9, %c0_10] : memref<128x512xbf16, #tpu.memory_space<vmem>>, vector<128x512xbf16>
    %c0_11 = arith.constant 0 : index
    %c0_12 = arith.constant 0 : index
    %9 = vector.load %arg6[%c0_11, %c0_12] : memref<1x512xf32, #tpu.memory_space<vmem>>, vector<1x512xf32>
    %10 = vector.shape_cast %9 : vector<1x512xf32> to vector<1x512xf32>
    %11 = vector.broadcast %10 : vector<1x512xf32> to vector<8x512xf32>
    %cst_13 = arith.constant 0.000000e+00 : bf16
    %12 = vector.broadcast %cst_13 : bf16 to vector<8x128xbf16>
    %cst_14 = arith.constant 0.000000e+00 : bf16
    %13 = vector.broadcast %cst_14 : bf16 to vector<8x128xbf16>
    %cst_15 = arith.constant 0.000000e+00 : f32
    %14 = vector.broadcast %cst_15 : f32 to vector<8x128xf32>
    %cst_16 = arith.constant 0.000000e+00 : f32
    %15 = vector.broadcast %cst_16 : f32 to vector<8x128xf32>
    %16 = vector.extract_strided_slice %5 {offsets = [0, 0], sizes = [8, 512], strides = [1, 1]} : vector<64x512xf32> to vector<8x512xf32>
    %cst_17 = arith.constant dense<0.000000e+00> : vector<8x512xf32>
    %17 = tpu.matmul %13, %8, %cst_17 {dimension_numbers = #tpu.dot_dimension_numbers<[1], [0], [0], [1], [0, 0, 1, 1], [], []>} : vector<8x128xbf16>, vector<128x512xbf16>, vector<8x512xf32> -> vector<8x512xf32>
    %cst_18 = arith.constant dense<0.000000e+00> : vector<8x512xf32>
    %18 = tpu.matmul %12, %6, %cst_18 {dimension_numbers = #tpu.dot_dimension_numbers<[1], [0], [0], [1], [0, 0, 1, 1], [], []>} : vector<8x128xbf16>, vector<128x512xbf16>, vector<8x512xf32> -> vector<8x512xf32>
    %19 = arith.addf %16, %18 : vector<8x512xf32>
    %20 = vector.extract_strided_slice %19 {offsets = [0, 0], sizes = [8, 128], strides = [1, 1]} : vector<8x512xf32> to vector<8x128xf32>
    %21 = arith.negf %20 : vector<8x128xf32>
    %22 = math.exp %21 : vector<8x128xf32>
    %cst_19 = arith.constant 1.000000e+00 : f32
    %23 = vector.broadcast %cst_19 : f32 to vector<8x128xf32>
    %24 = arith.addf %23, %22 : vector<8x128xf32>
    %25 = arith.divf %23, %24 : vector<8x128xf32>
    %26 = vector.extract_strided_slice %19 {offsets = [0, 128], sizes = [8, 128], strides = [1, 1]} : vector<8x512xf32> to vector<8x128xf32>
    %27 = arith.negf %26 : vector<8x128xf32>
    %28 = math.exp %27 : vector<8x128xf32>
    %cst_20 = arith.constant 1.000000e+00 : f32
    %29 = vector.broadcast %cst_20 : f32 to vector<8x128xf32>
    %30 = arith.addf %29, %28 : vector<8x128xf32>
    %31 = arith.divf %29, %30 : vector<8x128xf32>
    %32 = vector.extract_strided_slice %19 {offsets = [0, 256], sizes = [8, 128], strides = [1, 1]} : vector<8x512xf32> to vector<8x128xf32>
    %33 = math.tanh %32 : vector<8x128xf32>
    %34 = vector.extract_strided_slice %19 {offsets = [0, 384], sizes = [8, 128], strides = [1, 1]} : vector<8x512xf32> to vector<8x128xf32>
    %35 = arith.negf %34 : vector<8x128xf32>
    %36 = math.exp %35 : vector<8x128xf32>
    %cst_21 = arith.constant 1.000000e+00 : f32
    %37 = vector.broadcast %cst_21 : f32 to vector<8x128xf32>
    %38 = arith.addf %37, %36 : vector<8x128xf32>
    %39 = arith.divf %37, %38 : vector<8x128xf32>
    %40 = arith.mulf %31, %14 : vector<8x128xf32>
    %41 = arith.mulf %25, %33 : vector<8x128xf32>
    %42 = arith.addf %40, %41 : vector<8x128xf32>
    %43 = math.tanh %42 : vector<8x128xf32>
    %44 = arith.mulf %39, %43 : vector<8x128xf32>
    %45 = arith.truncf %44 : vector<8x128xf32> to vector<8x128xbf16>
    %46 = arith.addf %11, %17 : vector<8x512xf32>
    %cst_22 = arith.constant dense<0.000000e+00> : vector<8x512xf32>
    %47 = tpu.matmul %45, %7, %cst_22 {dimension_numbers = #tpu.dot_dimension_numbers<[1], [0], [0], [1], [0, 0, 1, 1], [], []>} : vector<8x128xbf16>, vector<128x512xbf16>, vector<8x512xf32> -> vector<8x512xf32>
    %48 = arith.addf %46, %47 : vector<8x512xf32>
    %49 = vector.extract_strided_slice %48 {offsets = [0, 0], sizes = [8, 128], strides = [1, 1]} : vector<8x512xf32> to vector<8x128xf32>
    %50 = arith.negf %49 : vector<8x128xf32>
    %51 = math.exp %50 : vector<8x128xf32>
    %cst_23 = arith.constant 1.000000e+00 : f32
    %52 = vector.broadcast %cst_23 : f32 to vector<8x128xf32>
    %53 = arith.addf %52, %51 : vector<8x128xf32>
    %54 = arith.divf %52, %53 : vector<8x128xf32>
    %55 = vector.extract_strided_slice %48 {offsets = [0, 128], sizes = [8, 128], strides = [1, 1]} : vector<8x512xf32> to vector<8x128xf32>
    %56 = arith.negf %55 : vector<8x128xf32>
    %57 = math.exp %56 : vector<8x128xf32>
    %cst_24 = arith.constant 1.000000e+00 : f32
    %58 = vector.broadcast %cst_24 : f32 to vector<8x128xf32>
    %59 = arith.addf %58, %57 : vector<8x128xf32>
    %60 = arith.divf %58, %59 : vector<8x128xf32>
    %61 = vector.extract_strided_slice %48 {offsets = [0, 256], sizes = [8, 128], strides = [1, 1]} : vector<8x512xf32> to vector<8x128xf32>
    %62 = math.tanh %61 : vector<8x128xf32>
    %63 = vector.extract_strided_slice %48 {offsets = [0, 384], sizes = [8, 128], strides = [1, 1]} : vector<8x512xf32> to vector<8x128xf32>
    %64 = arith.negf %63 : vector<8x128xf32>
    %65 = math.exp %64 : vector<8x128xf32>
    %cst_25 = arith.constant 1.000000e+00 : f32
    %66 = vector.broadcast %cst_25 : f32 to vector<8x128xf32>
    %67 = arith.addf %66, %65 : vector<8x128xf32>
    %68 = arith.divf %66, %67 : vector<8x128xf32>
    %69 = arith.mulf %60, %15 : vector<8x128xf32>
    %70 = arith.mulf %54, %62 : vector<8x128xf32>
    %71 = arith.addf %69, %70 : vector<8x128xf32>
    %72 = math.tanh %71 : vector<8x128xf32>
    %73 = arith.mulf %68, %72 : vector<8x128xf32>
    %74 = arith.truncf %73 : vector<8x128xf32> to vector<8x128xbf16>
    %75 = vector.extract_strided_slice %5 {offsets = [8, 0], sizes = [8, 512], strides = [1, 1]} : vector<64x512xf32> to vector<8x512xf32>
    %cst_26 = arith.constant dense<0.000000e+00> : vector<8x512xf32>
    %76 = tpu.matmul %74, %8, %cst_26 {dimension_numbers = #tpu.dot_dimension_numbers<[1], [0], [0], [1], [0, 0, 1, 1], [], []>} : vector<8x128xbf16>, vector<128x512xbf16>, vector<8x512xf32> -> vector<8x512xf32>
    %cst_27 = arith.constant dense<0.000000e+00> : vector<8x512xf32>
    %77 = tpu.matmul %45, %6, %cst_27 {dimension_numbers = #tpu.dot_dimension_numbers<[1], [0], [0], [1], [0, 0, 1, 1], [], []>} : vector<8x128xbf16>, vector<128x512xbf16>, vector<8x512xf32> -> vector<8x512xf32>
    %78 = arith.addf %75, %77 : vector<8x512xf32>
    %79 = vector.extract_strided_slice %78 {offsets = [0, 0], sizes = [8, 128], strides = [1, 1]} : vector<8x512xf32> to vector<8x128xf32>
    %80 = arith.negf %79 : vector<8x128xf32>
    %81 = math.exp %80 : vector<8x128xf32>
    %cst_28 = arith.constant 1.000000e+00 : f32
    %82 = vector.broadcast %cst_28 : f32 to vector<8x128xf32>
    %83 = arith.addf %82, %81 : vector<8x128xf32>
    %84 = arith.divf %82, %83 : vector<8x128xf32>
    %85 = vector.extract_strided_slice %78 {offsets = [0, 128], sizes = [8, 128], strides = [1, 1]} : vector<8x512xf32> to vector<8x128xf32>
    %86 = arith.negf %85 : vector<8x128xf32>
    %87 = math.exp %86 : vector<8x128xf32>
    %cst_29 = arith.constant 1.000000e+00 : f32
    %88 = vector.broadcast %cst_29 : f32 to vector<8x128xf32>
    %89 = arith.addf %88, %87 : vector<8x128xf32>
    %90 = arith.divf %88, %89 : vector<8x128xf32>
    %91 = vector.extract_strided_slice %78 {offsets = [0, 256], sizes = [8, 128], strides = [1, 1]} : vector<8x512xf32> to vector<8x128xf32>
    %92 = math.tanh %91 : vector<8x128xf32>
    %93 = vector.extract_strided_slice %78 {offsets = [0, 384], sizes = [8, 128], strides = [1, 1]} : vector<8x512xf32> to vector<8x128xf32>
    %94 = arith.negf %93 : vector<8x128xf32>
    %95 = math.exp %94 : vector<8x128xf32>
    %cst_30 = arith.constant 1.000000e+00 : f32
    %96 = vector.broadcast %cst_30 : f32 to vector<8x128xf32>
    %97 = arith.addf %96, %95 : vector<8x128xf32>
    %98 = arith.divf %96, %97 : vector<8x128xf32>
    %99 = arith.mulf %90, %42 : vector<8x128xf32>
    %100 = arith.mulf %84, %92 : vector<8x128xf32>
    %101 = arith.addf %99, %100 : vector<8x128xf32>
    %102 = math.tanh %101 : vector<8x128xf32>
    %103 = arith.mulf %98, %102 : vector<8x128xf32>
    %104 = arith.truncf %103 : vector<8x128xf32> to vector<8x128xbf16>
    %105 = arith.addf %11, %76 : vector<8x512xf32>
    %cst_31 = arith.constant dense<0.000000e+00> : vector<8x512xf32>
    %106 = tpu.matmul %104, %7, %cst_31 {dimension_numbers = #tpu.dot_dimension_numbers<[1], [0], [0], [1], [0, 0, 1, 1], [], []>} : vector<8x128xbf16>, vector<128x512xbf16>, vector<8x512xf32> -> vector<8x512xf32>
    %107 = arith.addf %105, %106 : vector<8x512xf32>
    %108 = vector.extract_strided_slice %107 {offsets = [0, 0], sizes = [8, 128], strides = [1, 1]} : vector<8x512xf32> to vector<8x128xf32>
    %109 = arith.negf %108 : vector<8x128xf32>
    %110 = math.exp %109 : vector<8x128xf32>
    %cst_32 = arith.constant 1.000000e+00 : f32
    %111 = vector.broadcast %cst_32 : f32 to vector<8x128xf32>
    %112 = arith.addf %111, %110 : vector<8x128xf32>
    %113 = arith.divf %111, %112 : vector<8x128xf32>
    %114 = vector.extract_strided_slice %107 {offsets = [0, 128], sizes = [8, 128], strides = [1, 1]} : vector<8x512xf32> to vector<8x128xf32>
    %115 = arith.negf %114 : vector<8x128xf32>
    %116 = math.exp %115 : vector<8x128xf32>
    %cst_33 = arith.constant 1.000000e+00 : f32
    %117 = vector.broadcast %cst_33 : f32 to vector<8x128xf32>
    %118 = arith.addf %117, %116 : vector<8x128xf32>
    %119 = arith.divf %117, %118 : vector<8x128xf32>
    %120 = vector.extract_strided_slice %107 {offsets = [0, 256], sizes = [8, 128], strides = [1, 1]} : vector<8x512xf32> to vector<8x128xf32>
    %121 = math.tanh %120 : vector<8x128xf32>
    %122 = vector.extract_strided_slice %107 {offsets = [0, 384], sizes = [8, 128], strides = [1, 1]} : vector<8x512xf32> to vector<8x128xf32>
    %123 = arith.negf %122 : vector<8x128xf32>
    %124 = math.exp %123 : vector<8x128xf32>
    %cst_34 = arith.constant 1.000000e+00 : f32
    %125 = vector.broadcast %cst_34 : f32 to vector<8x128xf32>
    %126 = arith.addf %125, %124 : vector<8x128xf32>
    %127 = arith.divf %125, %126 : vector<8x128xf32>
    %128 = arith.mulf %119, %71 : vector<8x128xf32>
    %129 = arith.mulf %113, %121 : vector<8x128xf32>
    %130 = arith.addf %128, %129 : vector<8x128xf32>
    %131 = math.tanh %130 : vector<8x128xf32>
    %132 = arith.mulf %127, %131 : vector<8x128xf32>
    %133 = arith.truncf %132 : vector<8x128xf32> to vector<8x128xbf16>
    %134 = vector.extract_strided_slice %5 {offsets = [16, 0], sizes = [8, 512], strides = [1, 1]} : vector<64x512xf32> to vector<8x512xf32>
    %cst_35 = arith.constant dense<0.000000e+00> : vector<8x512xf32>
    %135 = tpu.matmul %133, %8, %cst_35 {dimension_numbers = #tpu.dot_dimension_numbers<[1], [0], [0], [1], [0, 0, 1, 1], [], []>} : vector<8x128xbf16>, vector<128x512xbf16>, vector<8x512xf32> -> vector<8x512xf32>
    %cst_36 = arith.constant dense<0.000000e+00> : vector<8x512xf32>
    %136 = tpu.matmul %104, %6, %cst_36 {dimension_numbers = #tpu.dot_dimension_numbers<[1], [0], [0], [1], [0, 0, 1, 1], [], []>} : vector<8x128xbf16>, vector<128x512xbf16>, vector<8x512xf32> -> vector<8x512xf32>
    %137 = arith.addf %134, %136 : vector<8x512xf32>
    %138 = vector.extract_strided_slice %137 {offsets = [0, 0], sizes = [8, 128], strides = [1, 1]} : vector<8x512xf32> to vector<8x128xf32>
    %139 = arith.negf %138 : vector<8x128xf32>
    %140 = math.exp %139 : vector<8x128xf32>
    %cst_37 = arith.constant 1.000000e+00 : f32
    %141 = vector.broadcast %cst_37 : f32 to vector<8x128xf32>
    %142 = arith.addf %141, %140 : vector<8x128xf32>
    %143 = arith.divf %141, %142 : vector<8x128xf32>
    %144 = vector.extract_strided_slice %137 {offsets = [0, 128], sizes = [8, 128], strides = [1, 1]} : vector<8x512xf32> to vector<8x128xf32>
    %145 = arith.negf %144 : vector<8x128xf32>
    %146 = math.exp %145 : vector<8x128xf32>
    %cst_38 = arith.constant 1.000000e+00 : f32
    %147 = vector.broadcast %cst_38 : f32 to vector<8x128xf32>
    %148 = arith.addf %147, %146 : vector<8x128xf32>
    %149 = arith.divf %147, %148 : vector<8x128xf32>
    %150 = vector.extract_strided_slice %137 {offsets = [0, 256], sizes = [8, 128], strides = [1, 1]} : vector<8x512xf32> to vector<8x128xf32>
    %151 = math.tanh %150 : vector<8x128xf32>
    %152 = vector.extract_strided_slice %137 {offsets = [0, 384], sizes = [8, 128], strides = [1, 1]} : vector<8x512xf32> to vector<8x128xf32>
    %153 = arith.negf %152 : vector<8x128xf32>
    %154 = math.exp %153 : vector<8x128xf32>
    %cst_39 = arith.constant 1.000000e+00 : f32
    %155 = vector.broadcast %cst_39 : f32 to vector<8x128xf32>
    %156 = arith.addf %155, %154 : vector<8x128xf32>
    %157 = arith.divf %155, %156 : vector<8x128xf32>
    %158 = arith.mulf %149, %101 : vector<8x128xf32>
    %159 = arith.mulf %143, %151 : vector<8x128xf32>
    %160 = arith.addf %158, %159 : vector<8x128xf32>
    %161 = math.tanh %160 : vector<8x128xf32>
    %162 = arith.mulf %157, %161 : vector<8x128xf32>
    %163 = arith.truncf %162 : vector<8x128xf32> to vector<8x128xbf16>
    %164 = arith.addf %11, %135 : vector<8x512xf32>
    %cst_40 = arith.constant dense<0.000000e+00> : vector<8x512xf32>
    %165 = tpu.matmul %163, %7, %cst_40 {dimension_numbers = #tpu.dot_dimension_numbers<[1], [0], [0], [1], [0, 0, 1, 1], [], []>} : vector<8x128xbf16>, vector<128x512xbf16>, vector<8x512xf32> -> vector<8x512xf32>
    %166 = arith.addf %164, %165 : vector<8x512xf32>
    %167 = vector.extract_strided_slice %166 {offsets = [0, 0], sizes = [8, 128], strides = [1, 1]} : vector<8x512xf32> to vector<8x128xf32>
    %168 = arith.negf %167 : vector<8x128xf32>
    %169 = math.exp %168 : vector<8x128xf32>
    %cst_41 = arith.constant 1.000000e+00 : f32
    %170 = vector.broadcast %cst_41 : f32 to vector<8x128xf32>
    %171 = arith.addf %170, %169 : vector<8x128xf32>
    %172 = arith.divf %170, %171 : vector<8x128xf32>
    %173 = vector.extract_strided_slice %166 {offsets = [0, 128], sizes = [8, 128], strides = [1, 1]} : vector<8x512xf32> to vector<8x128xf32>
    %174 = arith.negf %173 : vector<8x128xf32>
    %175 = math.exp %174 : vector<8x128xf32>
    %cst_42 = arith.constant 1.000000e+00 : f32
    %176 = vector.broadcast %cst_42 : f32 to vector<8x128xf32>
    %177 = arith.addf %176, %175 : vector<8x128xf32>
    %178 = arith.divf %176, %177 : vector<8x128xf32>
    %179 = vector.extract_strided_slice %166 {offsets = [0, 256], sizes = [8, 128], strides = [1, 1]} : vector<8x512xf32> to vector<8x128xf32>
    %180 = math.tanh %179 : vector<8x128xf32>
    %181 = vector.extract_strided_slice %166 {offsets = [0, 384], sizes = [8, 128], strides = [1, 1]} : vector<8x512xf32> to vector<8x128xf32>
    %182 = arith.negf %181 : vector<8x128xf32>
    %183 = math.exp %182 : vector<8x128xf32>
    %cst_43 = arith.constant 1.000000e+00 : f32
    %184 = vector.broadcast %cst_43 : f32 to vector<8x128xf32>
    %185 = arith.addf %184, %183 : vector<8x128xf32>
    %186 = arith.divf %184, %185 : vector<8x128xf32>
    %187 = arith.mulf %178, %130 : vector<8x128xf32>
    %188 = arith.mulf %172, %180 : vector<8x128xf32>
    %189 = arith.addf %187, %188 : vector<8x128xf32>
    %190 = math.tanh %189 : vector<8x128xf32>
    %191 = arith.mulf %186, %190 : vector<8x128xf32>
    %192 = arith.truncf %191 : vector<8x128xf32> to vector<8x128xbf16>
    %193 = vector.extract_strided_slice %5 {offsets = [24, 0], sizes = [8, 512], strides = [1, 1]} : vector<64x512xf32> to vector<8x512xf32>
    %cst_44 = arith.constant dense<0.000000e+00> : vector<8x512xf32>
    %194 = tpu.matmul %192, %8, %cst_44 {dimension_numbers = #tpu.dot_dimension_numbers<[1], [0], [0], [1], [0, 0, 1, 1], [], []>} : vector<8x128xbf16>, vector<128x512xbf16>, vector<8x512xf32> -> vector<8x512xf32>
    %cst_45 = arith.constant dense<0.000000e+00> : vector<8x512xf32>
    %195 = tpu.matmul %163, %6, %cst_45 {dimension_numbers = #tpu.dot_dimension_numbers<[1], [0], [0], [1], [0, 0, 1, 1], [], []>} : vector<8x128xbf16>, vector<128x512xbf16>, vector<8x512xf32> -> vector<8x512xf32>
    %196 = arith.addf %193, %195 : vector<8x512xf32>
    %197 = vector.extract_strided_slice %196 {offsets = [0, 0], sizes = [8, 128], strides = [1, 1]} : vector<8x512xf32> to vector<8x128xf32>
    %198 = arith.negf %197 : vector<8x128xf32>
    %199 = math.exp %198 : vector<8x128xf32>
    %cst_46 = arith.constant 1.000000e+00 : f32
    %200 = vector.broadcast %cst_46 : f32 to vector<8x128xf32>
    %201 = arith.addf %200, %199 : vector<8x128xf32>
    %202 = arith.divf %200, %201 : vector<8x128xf32>
    %203 = vector.extract_strided_slice %196 {offsets = [0, 128], sizes = [8, 128], strides = [1, 1]} : vector<8x512xf32> to vector<8x128xf32>
    %204 = arith.negf %203 : vector<8x128xf32>
    %205 = math.exp %204 : vector<8x128xf32>
    %cst_47 = arith.constant 1.000000e+00 : f32
    %206 = vector.broadcast %cst_47 : f32 to vector<8x128xf32>
    %207 = arith.addf %206, %205 : vector<8x128xf32>
    %208 = arith.divf %206, %207 : vector<8x128xf32>
    %209 = vector.extract_strided_slice %196 {offsets = [0, 256], sizes = [8, 128], strides = [1, 1]} : vector<8x512xf32> to vector<8x128xf32>
    %210 = math.tanh %209 : vector<8x128xf32>
    %211 = vector.extract_strided_slice %196 {offsets = [0, 384], sizes = [8, 128], strides = [1, 1]} : vector<8x512xf32> to vector<8x128xf32>
    %212 = arith.negf %211 : vector<8x128xf32>
    %213 = math.exp %212 : vector<8x128xf32>
    %cst_48 = arith.constant 1.000000e+00 : f32
    %214 = vector.broadcast %cst_48 : f32 to vector<8x128xf32>
    %215 = arith.addf %214, %213 : vector<8x128xf32>
    %216 = arith.divf %214, %215 : vector<8x128xf32>
    %217 = arith.mulf %208, %160 : vector<8x128xf32>
    %218 = arith.mulf %202, %210 : vector<8x128xf32>
    %219 = arith.addf %217, %218 : vector<8x128xf32>
    %220 = math.tanh %219 : vector<8x128xf32>
    %221 = arith.mulf %216, %220 : vector<8x128xf32>
    %222 = arith.truncf %221 : vector<8x128xf32> to vector<8x128xbf16>
    %223 = arith.addf %11, %194 : vector<8x512xf32>
    %cst_49 = arith.constant dense<0.000000e+00> : vector<8x512xf32>
    %224 = tpu.matmul %222, %7, %cst_49 {dimension_numbers = #tpu.dot_dimension_numbers<[1], [0], [0], [1], [0, 0, 1, 1], [], []>} : vector<8x128xbf16>, vector<128x512xbf16>, vector<8x512xf32> -> vector<8x512xf32>
    %225 = arith.addf %223, %224 : vector<8x512xf32>
    %226 = vector.extract_strided_slice %225 {offsets = [0, 0], sizes = [8, 128], strides = [1, 1]} : vector<8x512xf32> to vector<8x128xf32>
    %227 = arith.negf %226 : vector<8x128xf32>
    %228 = math.exp %227 : vector<8x128xf32>
    %cst_50 = arith.constant 1.000000e+00 : f32
    %229 = vector.broadcast %cst_50 : f32 to vector<8x128xf32>
    %230 = arith.addf %229, %228 : vector<8x128xf32>
    %231 = arith.divf %229, %230 : vector<8x128xf32>
    %232 = vector.extract_strided_slice %225 {offsets = [0, 128], sizes = [8, 128], strides = [1, 1]} : vector<8x512xf32> to vector<8x128xf32>
    %233 = arith.negf %232 : vector<8x128xf32>
    %234 = math.exp %233 : vector<8x128xf32>
    %cst_51 = arith.constant 1.000000e+00 : f32
    %235 = vector.broadcast %cst_51 : f32 to vector<8x128xf32>
    %236 = arith.addf %235, %234 : vector<8x128xf32>
    %237 = arith.divf %235, %236 : vector<8x128xf32>
    %238 = vector.extract_strided_slice %225 {offsets = [0, 256], sizes = [8, 128], strides = [1, 1]} : vector<8x512xf32> to vector<8x128xf32>
    %239 = math.tanh %238 : vector<8x128xf32>
    %240 = vector.extract_strided_slice %225 {offsets = [0, 384], sizes = [8, 128], strides = [1, 1]} : vector<8x512xf32> to vector<8x128xf32>
    %241 = arith.negf %240 : vector<8x128xf32>
    %242 = math.exp %241 : vector<8x128xf32>
    %cst_52 = arith.constant 1.000000e+00 : f32
    %243 = vector.broadcast %cst_52 : f32 to vector<8x128xf32>
    %244 = arith.addf %243, %242 : vector<8x128xf32>
    %245 = arith.divf %243, %244 : vector<8x128xf32>
    %246 = arith.mulf %237, %189 : vector<8x128xf32>
    %247 = arith.mulf %231, %239 : vector<8x128xf32>
    %248 = arith.addf %246, %247 : vector<8x128xf32>
    %249 = math.tanh %248 : vector<8x128xf32>
    %250 = arith.mulf %245, %249 : vector<8x128xf32>
    %251 = arith.truncf %250 : vector<8x128xf32> to vector<8x128xbf16>
    %252 = vector.extract_strided_slice %5 {offsets = [32, 0], sizes = [8, 512], strides = [1, 1]} : vector<64x512xf32> to vector<8x512xf32>
    %cst_53 = arith.constant dense<0.000000e+00> : vector<8x512xf32>
    %253 = tpu.matmul %251, %8, %cst_53 {dimension_numbers = #tpu.dot_dimension_numbers<[1], [0], [0], [1], [0, 0, 1, 1], [], []>} : vector<8x128xbf16>, vector<128x512xbf16>, vector<8x512xf32> -> vector<8x512xf32>
    %cst_54 = arith.constant dense<0.000000e+00> : vector<8x512xf32>
    %254 = tpu.matmul %222, %6, %cst_54 {dimension_numbers = #tpu.dot_dimension_numbers<[1], [0], [0], [1], [0, 0, 1, 1], [], []>} : vector<8x128xbf16>, vector<128x512xbf16>, vector<8x512xf32> -> vector<8x512xf32>
    %255 = arith.addf %252, %254 : vector<8x512xf32>
    %256 = vector.extract_strided_slice %255 {offsets = [0, 0], sizes = [8, 128], strides = [1, 1]} : vector<8x512xf32> to vector<8x128xf32>
    %257 = arith.negf %256 : vector<8x128xf32>
    %258 = math.exp %257 : vector<8x128xf32>
    %cst_55 = arith.constant 1.000000e+00 : f32
    %259 = vector.broadcast %cst_55 : f32 to vector<8x128xf32>
    %260 = arith.addf %259, %258 : vector<8x128xf32>
    %261 = arith.divf %259, %260 : vector<8x128xf32>
    %262 = vector.extract_strided_slice %255 {offsets = [0, 128], sizes = [8, 128], strides = [1, 1]} : vector<8x512xf32> to vector<8x128xf32>
    %263 = arith.negf %262 : vector<8x128xf32>
    %264 = math.exp %263 : vector<8x128xf32>
    %cst_56 = arith.constant 1.000000e+00 : f32
    %265 = vector.broadcast %cst_56 : f32 to vector<8x128xf32>
    %266 = arith.addf %265, %264 : vector<8x128xf32>
    %267 = arith.divf %265, %266 : vector<8x128xf32>
    %268 = vector.extract_strided_slice %255 {offsets = [0, 256], sizes = [8, 128], strides = [1, 1]} : vector<8x512xf32> to vector<8x128xf32>
    %269 = math.tanh %268 : vector<8x128xf32>
    %270 = vector.extract_strided_slice %255 {offsets = [0, 384], sizes = [8, 128], strides = [1, 1]} : vector<8x512xf32> to vector<8x128xf32>
    %271 = arith.negf %270 : vector<8x128xf32>
    %272 = math.exp %271 : vector<8x128xf32>
    %cst_57 = arith.constant 1.000000e+00 : f32
    %273 = vector.broadcast %cst_57 : f32 to vector<8x128xf32>
    %274 = arith.addf %273, %272 : vector<8x128xf32>
    %275 = arith.divf %273, %274 : vector<8x128xf32>
    %276 = arith.mulf %267, %219 : vector<8x128xf32>
    %277 = arith.mulf %261, %269 : vector<8x128xf32>
    %278 = arith.addf %276, %277 : vector<8x128xf32>
    %279 = math.tanh %278 : vector<8x128xf32>
    %280 = arith.mulf %275, %279 : vector<8x128xf32>
    %281 = arith.truncf %280 : vector<8x128xf32> to vector<8x128xbf16>
    %282 = arith.addf %11, %253 : vector<8x512xf32>
    %cst_58 = arith.constant dense<0.000000e+00> : vector<8x512xf32>
    %283 = tpu.matmul %281, %7, %cst_58 {dimension_numbers = #tpu.dot_dimension_numbers<[1], [0], [0], [1], [0, 0, 1, 1], [], []>} : vector<8x128xbf16>, vector<128x512xbf16>, vector<8x512xf32> -> vector<8x512xf32>
    %284 = arith.addf %282, %283 : vector<8x512xf32>
    %285 = vector.extract_strided_slice %284 {offsets = [0, 0], sizes = [8, 128], strides = [1, 1]} : vector<8x512xf32> to vector<8x128xf32>
    %286 = arith.negf %285 : vector<8x128xf32>
    %287 = math.exp %286 : vector<8x128xf32>
    %cst_59 = arith.constant 1.000000e+00 : f32
    %288 = vector.broadcast %cst_59 : f32 to vector<8x128xf32>
    %289 = arith.addf %288, %287 : vector<8x128xf32>
    %290 = arith.divf %288, %289 : vector<8x128xf32>
    %291 = vector.extract_strided_slice %284 {offsets = [0, 128], sizes = [8, 128], strides = [1, 1]} : vector<8x512xf32> to vector<8x128xf32>
    %292 = arith.negf %291 : vector<8x128xf32>
    %293 = math.exp %292 : vector<8x128xf32>
    %cst_60 = arith.constant 1.000000e+00 : f32
    %294 = vector.broadcast %cst_60 : f32 to vector<8x128xf32>
    %295 = arith.addf %294, %293 : vector<8x128xf32>
    %296 = arith.divf %294, %295 : vector<8x128xf32>
    %297 = vector.extract_strided_slice %284 {offsets = [0, 256], sizes = [8, 128], strides = [1, 1]} : vector<8x512xf32> to vector<8x128xf32>
    %298 = math.tanh %297 : vector<8x128xf32>
    %299 = vector.extract_strided_slice %284 {offsets = [0, 384], sizes = [8, 128], strides = [1, 1]} : vector<8x512xf32> to vector<8x128xf32>
    %300 = arith.negf %299 : vector<8x128xf32>
    %301 = math.exp %300 : vector<8x128xf32>
    %cst_61 = arith.constant 1.000000e+00 : f32
    %302 = vector.broadcast %cst_61 : f32 to vector<8x128xf32>
    %303 = arith.addf %302, %301 : vector<8x128xf32>
    %304 = arith.divf %302, %303 : vector<8x128xf32>
    %305 = arith.mulf %296, %248 : vector<8x128xf32>
    %306 = arith.mulf %290, %298 : vector<8x128xf32>
    %307 = arith.addf %305, %306 : vector<8x128xf32>
    %308 = math.tanh %307 : vector<8x128xf32>
    %309 = arith.mulf %304, %308 : vector<8x128xf32>
    %310 = arith.truncf %309 : vector<8x128xf32> to vector<8x128xbf16>
    %311 = vector.extract_strided_slice %5 {offsets = [40, 0], sizes = [8, 512], strides = [1, 1]} : vector<64x512xf32> to vector<8x512xf32>
    %cst_62 = arith.constant dense<0.000000e+00> : vector<8x512xf32>
    %312 = tpu.matmul %310, %8, %cst_62 {dimension_numbers = #tpu.dot_dimension_numbers<[1], [0], [0], [1], [0, 0, 1, 1], [], []>} : vector<8x128xbf16>, vector<128x512xbf16>, vector<8x512xf32> -> vector<8x512xf32>
    %cst_63 = arith.constant dense<0.000000e+00> : vector<8x512xf32>
    %313 = tpu.matmul %281, %6, %cst_63 {dimension_numbers = #tpu.dot_dimension_numbers<[1], [0], [0], [1], [0, 0, 1, 1], [], []>} : vector<8x128xbf16>, vector<128x512xbf16>, vector<8x512xf32> -> vector<8x512xf32>
    %314 = arith.addf %311, %313 : vector<8x512xf32>
    %315 = vector.extract_strided_slice %314 {offsets = [0, 0], sizes = [8, 128], strides = [1, 1]} : vector<8x512xf32> to vector<8x128xf32>
    %316 = arith.negf %315 : vector<8x128xf32>
    %317 = math.exp %316 : vector<8x128xf32>
    %cst_64 = arith.constant 1.000000e+00 : f32
    %318 = vector.broadcast %cst_64 : f32 to vector<8x128xf32>
    %319 = arith.addf %318, %317 : vector<8x128xf32>
    %320 = arith.divf %318, %319 : vector<8x128xf32>
    %321 = vector.extract_strided_slice %314 {offsets = [0, 128], sizes = [8, 128], strides = [1, 1]} : vector<8x512xf32> to vector<8x128xf32>
    %322 = arith.negf %321 : vector<8x128xf32>
    %323 = math.exp %322 : vector<8x128xf32>
    %cst_65 = arith.constant 1.000000e+00 : f32
    %324 = vector.broadcast %cst_65 : f32 to vector<8x128xf32>
    %325 = arith.addf %324, %323 : vector<8x128xf32>
    %326 = arith.divf %324, %325 : vector<8x128xf32>
    %327 = vector.extract_strided_slice %314 {offsets = [0, 256], sizes = [8, 128], strides = [1, 1]} : vector<8x512xf32> to vector<8x128xf32>
    %328 = math.tanh %327 : vector<8x128xf32>
    %329 = vector.extract_strided_slice %314 {offsets = [0, 384], sizes = [8, 128], strides = [1, 1]} : vector<8x512xf32> to vector<8x128xf32>
    %330 = arith.negf %329 : vector<8x128xf32>
    %331 = math.exp %330 : vector<8x128xf32>
    %cst_66 = arith.constant 1.000000e+00 : f32
    %332 = vector.broadcast %cst_66 : f32 to vector<8x128xf32>
    %333 = arith.addf %332, %331 : vector<8x128xf32>
    %334 = arith.divf %332, %333 : vector<8x128xf32>
    %335 = arith.mulf %326, %278 : vector<8x128xf32>
    %336 = arith.mulf %320, %328 : vector<8x128xf32>
    %337 = arith.addf %335, %336 : vector<8x128xf32>
    %338 = math.tanh %337 : vector<8x128xf32>
    %339 = arith.mulf %334, %338 : vector<8x128xf32>
    %340 = arith.truncf %339 : vector<8x128xf32> to vector<8x128xbf16>
    %341 = arith.addf %11, %312 : vector<8x512xf32>
    %cst_67 = arith.constant dense<0.000000e+00> : vector<8x512xf32>
    %342 = tpu.matmul %340, %7, %cst_67 {dimension_numbers = #tpu.dot_dimension_numbers<[1], [0], [0], [1], [0, 0, 1, 1], [], []>} : vector<8x128xbf16>, vector<128x512xbf16>, vector<8x512xf32> -> vector<8x512xf32>
    %343 = arith.addf %341, %342 : vector<8x512xf32>
    %344 = vector.extract_strided_slice %343 {offsets = [0, 0], sizes = [8, 128], strides = [1, 1]} : vector<8x512xf32> to vector<8x128xf32>
    %345 = arith.negf %344 : vector<8x128xf32>
    %346 = math.exp %345 : vector<8x128xf32>
    %cst_68 = arith.constant 1.000000e+00 : f32
    %347 = vector.broadcast %cst_68 : f32 to vector<8x128xf32>
    %348 = arith.addf %347, %346 : vector<8x128xf32>
    %349 = arith.divf %347, %348 : vector<8x128xf32>
    %350 = vector.extract_strided_slice %343 {offsets = [0, 128], sizes = [8, 128], strides = [1, 1]} : vector<8x512xf32> to vector<8x128xf32>
    %351 = arith.negf %350 : vector<8x128xf32>
    %352 = math.exp %351 : vector<8x128xf32>
    %cst_69 = arith.constant 1.000000e+00 : f32
    %353 = vector.broadcast %cst_69 : f32 to vector<8x128xf32>
    %354 = arith.addf %353, %352 : vector<8x128xf32>
    %355 = arith.divf %353, %354 : vector<8x128xf32>
    %356 = vector.extract_strided_slice %343 {offsets = [0, 256], sizes = [8, 128], strides = [1, 1]} : vector<8x512xf32> to vector<8x128xf32>
    %357 = math.tanh %356 : vector<8x128xf32>
    %358 = vector.extract_strided_slice %343 {offsets = [0, 384], sizes = [8, 128], strides = [1, 1]} : vector<8x512xf32> to vector<8x128xf32>
    %359 = arith.negf %358 : vector<8x128xf32>
    %360 = math.exp %359 : vector<8x128xf32>
    %cst_70 = arith.constant 1.000000e+00 : f32
    %361 = vector.broadcast %cst_70 : f32 to vector<8x128xf32>
    %362 = arith.addf %361, %360 : vector<8x128xf32>
    %363 = arith.divf %361, %362 : vector<8x128xf32>
    %364 = arith.mulf %355, %307 : vector<8x128xf32>
    %365 = arith.mulf %349, %357 : vector<8x128xf32>
    %366 = arith.addf %364, %365 : vector<8x128xf32>
    %367 = math.tanh %366 : vector<8x128xf32>
    %368 = arith.mulf %363, %367 : vector<8x128xf32>
    %369 = arith.truncf %368 : vector<8x128xf32> to vector<8x128xbf16>
    %370 = vector.extract_strided_slice %5 {offsets = [48, 0], sizes = [8, 512], strides = [1, 1]} : vector<64x512xf32> to vector<8x512xf32>
    %cst_71 = arith.constant dense<0.000000e+00> : vector<8x512xf32>
    %371 = tpu.matmul %369, %8, %cst_71 {dimension_numbers = #tpu.dot_dimension_numbers<[1], [0], [0], [1], [0, 0, 1, 1], [], []>} : vector<8x128xbf16>, vector<128x512xbf16>, vector<8x512xf32> -> vector<8x512xf32>
    %cst_72 = arith.constant dense<0.000000e+00> : vector<8x512xf32>
    %372 = tpu.matmul %340, %6, %cst_72 {dimension_numbers = #tpu.dot_dimension_numbers<[1], [0], [0], [1], [0, 0, 1, 1], [], []>} : vector<8x128xbf16>, vector<128x512xbf16>, vector<8x512xf32> -> vector<8x512xf32>
    %373 = arith.addf %370, %372 : vector<8x512xf32>
    %374 = vector.extract_strided_slice %373 {offsets = [0, 0], sizes = [8, 128], strides = [1, 1]} : vector<8x512xf32> to vector<8x128xf32>
    %375 = arith.negf %374 : vector<8x128xf32>
    %376 = math.exp %375 : vector<8x128xf32>
    %cst_73 = arith.constant 1.000000e+00 : f32
    %377 = vector.broadcast %cst_73 : f32 to vector<8x128xf32>
    %378 = arith.addf %377, %376 : vector<8x128xf32>
    %379 = arith.divf %377, %378 : vector<8x128xf32>
    %380 = vector.extract_strided_slice %373 {offsets = [0, 128], sizes = [8, 128], strides = [1, 1]} : vector<8x512xf32> to vector<8x128xf32>
    %381 = arith.negf %380 : vector<8x128xf32>
    %382 = math.exp %381 : vector<8x128xf32>
    %cst_74 = arith.constant 1.000000e+00 : f32
    %383 = vector.broadcast %cst_74 : f32 to vector<8x128xf32>
    %384 = arith.addf %383, %382 : vector<8x128xf32>
    %385 = arith.divf %383, %384 : vector<8x128xf32>
    %386 = vector.extract_strided_slice %373 {offsets = [0, 256], sizes = [8, 128], strides = [1, 1]} : vector<8x512xf32> to vector<8x128xf32>
    %387 = math.tanh %386 : vector<8x128xf32>
    %388 = vector.extract_strided_slice %373 {offsets = [0, 384], sizes = [8, 128], strides = [1, 1]} : vector<8x512xf32> to vector<8x128xf32>
    %389 = arith.negf %388 : vector<8x128xf32>
    %390 = math.exp %389 : vector<8x128xf32>
    %cst_75 = arith.constant 1.000000e+00 : f32
    %391 = vector.broadcast %cst_75 : f32 to vector<8x128xf32>
    %392 = arith.addf %391, %390 : vector<8x128xf32>
    %393 = arith.divf %391, %392 : vector<8x128xf32>
    %394 = arith.mulf %385, %337 : vector<8x128xf32>
    %395 = arith.mulf %379, %387 : vector<8x128xf32>
    %396 = arith.addf %394, %395 : vector<8x128xf32>
    %397 = math.tanh %396 : vector<8x128xf32>
    %398 = arith.mulf %393, %397 : vector<8x128xf32>
    %399 = arith.truncf %398 : vector<8x128xf32> to vector<8x128xbf16>
    %400 = arith.addf %11, %371 : vector<8x512xf32>
    %cst_76 = arith.constant dense<0.000000e+00> : vector<8x512xf32>
    %401 = tpu.matmul %399, %7, %cst_76 {dimension_numbers = #tpu.dot_dimension_numbers<[1], [0], [0], [1], [0, 0, 1, 1], [], []>} : vector<8x128xbf16>, vector<128x512xbf16>, vector<8x512xf32> -> vector<8x512xf32>
    %402 = arith.addf %400, %401 : vector<8x512xf32>
    %403 = vector.extract_strided_slice %402 {offsets = [0, 0], sizes = [8, 128], strides = [1, 1]} : vector<8x512xf32> to vector<8x128xf32>
    %404 = arith.negf %403 : vector<8x128xf32>
    %405 = math.exp %404 : vector<8x128xf32>
    %cst_77 = arith.constant 1.000000e+00 : f32
    %406 = vector.broadcast %cst_77 : f32 to vector<8x128xf32>
    %407 = arith.addf %406, %405 : vector<8x128xf32>
    %408 = arith.divf %406, %407 : vector<8x128xf32>
    %409 = vector.extract_strided_slice %402 {offsets = [0, 128], sizes = [8, 128], strides = [1, 1]} : vector<8x512xf32> to vector<8x128xf32>
    %410 = arith.negf %409 : vector<8x128xf32>
    %411 = math.exp %410 : vector<8x128xf32>
    %cst_78 = arith.constant 1.000000e+00 : f32
    %412 = vector.broadcast %cst_78 : f32 to vector<8x128xf32>
    %413 = arith.addf %412, %411 : vector<8x128xf32>
    %414 = arith.divf %412, %413 : vector<8x128xf32>
    %415 = vector.extract_strided_slice %402 {offsets = [0, 256], sizes = [8, 128], strides = [1, 1]} : vector<8x512xf32> to vector<8x128xf32>
    %416 = math.tanh %415 : vector<8x128xf32>
    %417 = vector.extract_strided_slice %402 {offsets = [0, 384], sizes = [8, 128], strides = [1, 1]} : vector<8x512xf32> to vector<8x128xf32>
    %418 = arith.negf %417 : vector<8x128xf32>
    %419 = math.exp %418 : vector<8x128xf32>
    %cst_79 = arith.constant 1.000000e+00 : f32
    %420 = vector.broadcast %cst_79 : f32 to vector<8x128xf32>
    %421 = arith.addf %420, %419 : vector<8x128xf32>
    %422 = arith.divf %420, %421 : vector<8x128xf32>
    %423 = arith.mulf %414, %366 : vector<8x128xf32>
    %424 = arith.mulf %408, %416 : vector<8x128xf32>
    %425 = arith.addf %423, %424 : vector<8x128xf32>
    %426 = math.tanh %425 : vector<8x128xf32>
    %427 = arith.mulf %422, %426 : vector<8x128xf32>
    %428 = arith.truncf %427 : vector<8x128xf32> to vector<8x128xbf16>
    %429 = vector.extract_strided_slice %5 {offsets = [56, 0], sizes = [8, 512], strides = [1, 1]} : vector<64x512xf32> to vector<8x512xf32>
    %cst_80 = arith.constant dense<0.000000e+00> : vector<8x512xf32>
    %430 = tpu.matmul %428, %8, %cst_80 {dimension_numbers = #tpu.dot_dimension_numbers<[1], [0], [0], [1], [0, 0, 1, 1], [], []>} : vector<8x128xbf16>, vector<128x512xbf16>, vector<8x512xf32> -> vector<8x512xf32>
    %cst_81 = arith.constant dense<0.000000e+00> : vector<8x512xf32>
    %431 = tpu.matmul %399, %6, %cst_81 {dimension_numbers = #tpu.dot_dimension_numbers<[1], [0], [0], [1], [0, 0, 1, 1], [], []>} : vector<8x128xbf16>, vector<128x512xbf16>, vector<8x512xf32> -> vector<8x512xf32>
    %432 = arith.addf %429, %431 : vector<8x512xf32>
    %433 = vector.extract_strided_slice %432 {offsets = [0, 0], sizes = [8, 128], strides = [1, 1]} : vector<8x512xf32> to vector<8x128xf32>
    %434 = arith.negf %433 : vector<8x128xf32>
    %435 = math.exp %434 : vector<8x128xf32>
    %cst_82 = arith.constant 1.000000e+00 : f32
    %436 = vector.broadcast %cst_82 : f32 to vector<8x128xf32>
    %437 = arith.addf %436, %435 : vector<8x128xf32>
    %438 = arith.divf %436, %437 : vector<8x128xf32>
    %439 = vector.extract_strided_slice %432 {offsets = [0, 128], sizes = [8, 128], strides = [1, 1]} : vector<8x512xf32> to vector<8x128xf32>
    %440 = arith.negf %439 : vector<8x128xf32>
    %441 = math.exp %440 : vector<8x128xf32>
    %cst_83 = arith.constant 1.000000e+00 : f32
    %442 = vector.broadcast %cst_83 : f32 to vector<8x128xf32>
    %443 = arith.addf %442, %441 : vector<8x128xf32>
    %444 = arith.divf %442, %443 : vector<8x128xf32>
    %445 = vector.extract_strided_slice %432 {offsets = [0, 256], sizes = [8, 128], strides = [1, 1]} : vector<8x512xf32> to vector<8x128xf32>
    %446 = math.tanh %445 : vector<8x128xf32>
    %447 = vector.extract_strided_slice %432 {offsets = [0, 384], sizes = [8, 128], strides = [1, 1]} : vector<8x512xf32> to vector<8x128xf32>
    %448 = arith.negf %447 : vector<8x128xf32>
    %449 = math.exp %448 : vector<8x128xf32>
    %cst_84 = arith.constant 1.000000e+00 : f32
    %450 = vector.broadcast %cst_84 : f32 to vector<8x128xf32>
    %451 = arith.addf %450, %449 : vector<8x128xf32>
    %452 = arith.divf %450, %451 : vector<8x128xf32>
    %453 = arith.mulf %444, %396 : vector<8x128xf32>
    %454 = arith.mulf %438, %446 : vector<8x128xf32>
    %455 = arith.addf %453, %454 : vector<8x128xf32>
    %456 = math.tanh %455 : vector<8x128xf32>
    %457 = arith.mulf %452, %456 : vector<8x128xf32>
    %458 = arith.truncf %457 : vector<8x128xf32> to vector<8x128xbf16>
    %459 = arith.addf %11, %430 : vector<8x512xf32>
    %cst_85 = arith.constant dense<0.000000e+00> : vector<8x512xf32>
    %460 = tpu.matmul %458, %7, %cst_85 {dimension_numbers = #tpu.dot_dimension_numbers<[1], [0], [0], [1], [0, 0, 1, 1], [], []>} : vector<8x128xbf16>, vector<128x512xbf16>, vector<8x512xf32> -> vector<8x512xf32>
    %461 = arith.addf %459, %460 : vector<8x512xf32>
    %462 = vector.extract_strided_slice %461 {offsets = [0, 0], sizes = [8, 128], strides = [1, 1]} : vector<8x512xf32> to vector<8x128xf32>
    %463 = arith.negf %462 : vector<8x128xf32>
    %464 = math.exp %463 : vector<8x128xf32>
    %cst_86 = arith.constant 1.000000e+00 : f32
    %465 = vector.broadcast %cst_86 : f32 to vector<8x128xf32>
    %466 = arith.addf %465, %464 : vector<8x128xf32>
    %467 = arith.divf %465, %466 : vector<8x128xf32>
    %468 = vector.extract_strided_slice %461 {offsets = [0, 128], sizes = [8, 128], strides = [1, 1]} : vector<8x512xf32> to vector<8x128xf32>
    %469 = arith.negf %468 : vector<8x128xf32>
    %470 = math.exp %469 : vector<8x128xf32>
    %cst_87 = arith.constant 1.000000e+00 : f32
    %471 = vector.broadcast %cst_87 : f32 to vector<8x128xf32>
    %472 = arith.addf %471, %470 : vector<8x128xf32>
    %473 = arith.divf %471, %472 : vector<8x128xf32>
    %474 = vector.extract_strided_slice %461 {offsets = [0, 256], sizes = [8, 128], strides = [1, 1]} : vector<8x512xf32> to vector<8x128xf32>
    %475 = math.tanh %474 : vector<8x128xf32>
    %476 = vector.extract_strided_slice %461 {offsets = [0, 384], sizes = [8, 128], strides = [1, 1]} : vector<8x512xf32> to vector<8x128xf32>
    %477 = arith.negf %476 : vector<8x128xf32>
    %478 = math.exp %477 : vector<8x128xf32>
    %cst_88 = arith.constant 1.000000e+00 : f32
    %479 = vector.broadcast %cst_88 : f32 to vector<8x128xf32>
    %480 = arith.addf %479, %478 : vector<8x128xf32>
    %481 = arith.divf %479, %480 : vector<8x128xf32>
    %482 = arith.mulf %473, %425 : vector<8x128xf32>
    %483 = arith.mulf %467, %475 : vector<8x128xf32>
    %484 = arith.addf %482, %483 : vector<8x128xf32>
    %485 = math.tanh %484 : vector<8x128xf32>
    %486 = arith.mulf %481, %485 : vector<8x128xf32>
    %c0_89 = arith.constant 0 : index
    %c0_90 = arith.constant 0 : index
    %487 = vector.load %arg7[%c0_89, %c0_90] : memref<128x128xf32, #tpu.memory_space<vmem>>, vector<128x128xf32>
    %cst_91 = arith.constant dense<0.000000e+00> : vector<8x128xf32>
    %488 = tpu.matmul %486, %487, %cst_91 {dimension_numbers = #tpu.dot_dimension_numbers<[1], [0], [0], [1], [0, 0, 1, 1], [], []>} : vector<8x128xf32>, vector<128x128xf32>, vector<8x128xf32> -> vector<8x128xf32>
    %c0_92 = arith.constant 0 : index
    %c0_93 = arith.constant 0 : index
    %489 = vector.load %arg8[%c0_92, %c0_93] : memref<1x128xf32, #tpu.memory_space<vmem>>, vector<1x128xf32>
    %490 = vector.broadcast %489 : vector<1x128xf32> to vector<8x128xf32>
    %491 = arith.addf %488, %490 : vector<8x128xf32>
    %c0_94 = arith.constant 0 : index
    %c0_95 = arith.constant 0 : index
    %492 = vector.load %arg9[%c0_94, %c0_95] : memref<8x128xf32, #tpu.memory_space<vmem>>, vector<8x128xf32>
    tpu.vector_store %arg9[%c0_94, %c0_95], %491 {strides = array<i32>} : memref<8x128xf32, #tpu.memory_space<vmem>>, vector<8x128xf32>,
    return
  }
}

</mosaic_0001>

<llo_original>
// kernel: tpu_custom_call.1
$region0: #{tpu_custom_call.1}
  #allocation0 [shape = 'u32[]', space=smem, size = 0x4, offset = 0x4, fixed_abs, tag = 'smem constant byte address 0x4 - core index']
  #allocation1 [shape = 'u32[72,128]{1,0:T(1,128)}', space=vmem, size = 0x9000, scoped, tag = 'internal scratch']
  %s0 = inlined_call_operand.hbm [shape: bf16[64,512], index: 0, kind: input, shape index: {}]
  %s1 = inlined_call_operand.hbm [shape: bf16[512,512], index: 1, kind: input, shape index: {}]
  %s2 = inlined_call_operand.hbm [shape: bf16[128,512], index: 2, kind: input, shape index: {}]
  %s3 = inlined_call_operand.hbm [shape: f32[1,512], index: 3, kind: input, shape index: {}]
  %s4 = inlined_call_operand.hbm [shape: bf16[128,512], index: 4, kind: input, shape index: {}]
  %s5 = inlined_call_operand.hbm [shape: bf16[128,512], index: 5, kind: input, shape index: {}]
  %s6 = inlined_call_operand.vmem [shape: f32[1,512], index: 6, kind: input, shape index: {}]
  %s7 = inlined_call_operand.hbm [shape: f32[128,128], index: 7, kind: input, shape index: {}]
  %s8 = inlined_call_operand.vmem [shape: f32[1,128], index: 8, kind: input, shape index: {}]
  %s9 = inlined_call_operand.hbm [shape: f32[8,128], index: 9, kind: output, shape index: {}]
  %s10 = sld [smem:[#allocation0]]
  $region74: #{tpu_custom_call.1} parent=0
    _
  %s12 = ssub.s32 1, %s10
  %s13 = scalar_select 0, %s12, %s10
  $region1: #{tpu_custom_call.1} parent=0
    #allocation2 [shape = 'u8[65536]{0}', space=vmem, size = 0x10000, scoped, tag = 'input window, operand 0, single buffered']
    #allocation3 [shape = 's32[1]{0}', space=sflag, size = 0x4, scoped, tag = 'scoped memory for tpu_custom_call.1']
    #allocation4 [shape = 's32[1]{0}', space=sflag, size = 0x4, scoped, tag = 'scoped memory for tpu_custom_call.1']
    #allocation5 [shape = 'u8[524288]{0}', space=vmem, size = 0x80000, scoped, tag = 'input window, operand 1, single buffered']
    #allocation6 [shape = 's32[1]{0}', space=sflag, size = 0x4, scoped, tag = 'scoped memory for tpu_custom_call.1']
    #allocation7 [shape = 'u8[131072]{0}', space=vmem, size = 0x20000, scoped, tag = 'input window, operand 2, single buffered']
    #allocation8 [shape = 'u8[2048]{0}', space=vmem, size = 0x800, scoped, tag = 'input window, operand 3, single buffered']
    #allocation9 [shape = 's32[1]{0}', space=sflag, size = 0x4, scoped, tag = 'scoped memory for tpu_custom_call.1']
    #allocation10 [shape = 'u8[131072]{0}', space=vmem, size = 0x20000, scoped, tag = 'input window, operand 4, single buffered']
    #allocation11 [shape = 'u8[131072]{0}', space=vmem, size = 0x20000, scoped, tag = 'input window, operand 5, single buffered']
    #allocation12 [shape = 's32[1]{0}', space=sflag, size = 0x4, scoped, tag = 'scoped memory for tpu_custom_call.1']
    #allocation13 [shape = 'u8[65536]{0}', space=vmem, size = 0x10000, scoped, tag = 'input window, operand 7, single buffered']
    #allocation14 [shape = 'u8[4096]{0}', space=vmem, size = 0x1000, scoped, tag = 'output window, operand 0, single buffered']
    %14 = vsyncpa [#allocation3], 0
    %15 = vsyncpa [#allocation6], 0
    %16 = vsyncpa [#allocation9], 0
    %17 = vsyncpa [#allocation12], 0
    %18 = vsyncpa [#allocation4], 0
    // Predicated region
    $region2: #{tpu_custom_call.1} parent=1 // pred_check
      _
    $region3: #{tpu_custom_call.1} parent=1 // pred_check_branch
      %20 = sbr.rel (0) target = $region5
    $region4: #{tpu_custom_call.1} parent=1 // pred_region
      %22 = vsyncadd [#allocation3], 0
      %s23 = sshll.u32 %s0, 4
      %s24 = int_to_ptr.hbm [resolvable:$true] %s23
      %s25 = sshll.u32 [#allocation2], 4
      %s26 = int_to_ptr.vmem [resolvable:$true] %s25
      %31 = dma.hbm_to_vmem [thread:$0]  %s24, 2048, %s26, [#allocation3], 256, 256, 16
    $region5: #{tpu_custom_call.1} parent=1 // pred_fallthru
      _
    // Predicated region
    $region6: #{tpu_custom_call.1} parent=1 // pred_check
      _
    $region7: #{tpu_custom_call.1} parent=1 // pred_check_branch
      %33 = sbr.rel (0) target = $region9
    $region8: #{tpu_custom_call.1} parent=1 // pred_region
      %35 = vsyncadd [#allocation6], 0
      %s36 = sshll.u32 %s1, 4
      %s37 = int_to_ptr.hbm [resolvable:$true] %s36
      %s38 = sshll.u32 [#allocation5], 4
      %s39 = int_to_ptr.vmem [resolvable:$true] %s38
      %44 = dma.hbm_to_vmem [thread:$0]  %s37, 16384, %s39, [#allocation6], 256, 256, 16
    $region9: #{tpu_custom_call.1} parent=1 // pred_fallthru
      _
    // Predicated region
    $region10: #{tpu_custom_call.1} parent=1 // pred_check
      _
    $region11: #{tpu_custom_call.1} parent=1 // pred_check_branch
      %46 = sbr.rel (0) target = $region13
    $region12: #{tpu_custom_call.1} parent=1 // pred_region
      %48 = vsyncadd [#allocation6], 0
      %s49 = sshll.u32 %s2, 4
      %s50 = int_to_ptr.hbm [resolvable:$true] %s49
      %s51 = sshll.u32 [#allocation7], 4
      %s52 = int_to_ptr.vmem [resolvable:$true] %s51
      %57 = dma.hbm_to_vmem [thread:$0]  %s50, 4096, %s52, [#allocation6], 256, 256, 16
    $region13: #{tpu_custom_call.1} parent=1 // pred_fallthru
      _
    // Predicated region
    $region14: #{tpu_custom_call.1} parent=1 // pred_check
      _
    $region15: #{tpu_custom_call.1} parent=1 // pred_check_branch
      %59 = sbr.rel (0) target = $region17
    $region16: #{tpu_custom_call.1} parent=1 // pred_region
      %61 = vsyncadd [#allocation9], 0
      %s63 = sshll.u32 %s3, 4
      %s64 = int_to_ptr.hbm [resolvable:$true] %s63
      %s65 = sshll.u32 [#allocation8], 4
      %s66 = int_to_ptr.vmem [resolvable:$true] %s65
      %68 = dma.hbm_to_vmem [thread:$0]  %s64, 64, %s66, [#allocation9]
    $region17: #{tpu_custom_call.1} parent=1 // pred_fallthru
      _
    // Predicated region
    $region18: #{tpu_custom_call.1} parent=1 // pred_check
      _
    $region19: #{tpu_custom_call.1} parent=1 // pred_check_branch
      %70 = sbr.rel (0) target = $region21
    $region20: #{tpu_custom_call.1} parent=1 // pred_region
      %72 = vsyncadd [#allocation9], 0
      %s73 = sshll.u32 %s4, 4
      %s74 = int_to_ptr.hbm [resolvable:$true] %s73
      %s75 = sshll.u32 [#allocation10], 4
      %s76 = int_to_ptr.vmem [resolvable:$true] %s75
      %81 = dma.hbm_to_vmem [thread:$0]  %s74, 4096, %s76, [#allocation9], 256, 256, 16
    $region21: #{tpu_custom_call.1} parent=1 // pred_fallthru
      _
    // Predicated region
    $region22: #{tpu_custom_call.1} parent=1 // pred_check
      _
    $region23: #{tpu_custom_call.1} parent=1 // pred_check_branch
      %83 = sbr.rel (0) target = $region25
    $region24: #{tpu_custom_call.1} parent=1 // pred_region
      %85 = vsyncadd [#allocation12], 0
      %s86 = sshll.u32 %s5, 4
      %s87 = int_to_ptr.hbm [resolvable:$true] %s86
      %s88 = sshll.u32 [#allocation11], 4
      %s89 = int_to_ptr.vmem [resolvable:$true] %s88
      %94 = dma.hbm_to_vmem [thread:$0]  %s87, 4096, %s89, [#allocation12], 256, 256, 16
    $region25: #{tpu_custom_call.1} parent=1 // pred_fallthru
      _
    // Predicated region
    $region26: #{tpu_custom_call.1} parent=1 // pred_check
      _
    $region27: #{tpu_custom_call.1} parent=1 // pred_check_branch
      %96 = sbr.rel (0) target = $region29
    $region28: #{tpu_custom_call.1} parent=1 // pred_region
      _
    $region29: #{tpu_custom_call.1} parent=1 // pred_fallthru
      _
    // Predicated region
    $region30: #{tpu_custom_call.1} parent=1 // pred_check
      _
    $region31: #{tpu_custom_call.1} parent=1 // pred_check_branch
      %98 = sbr.rel (0) target = $region33
    $region32: #{tpu_custom_call.1} parent=1 // pred_region
      %100 = vsyncadd [#allocation12], 0
      %s101 = sshll.u32 %s7, 4
      %s102 = int_to_ptr.hbm [resolvable:$true] %s101
      %s103 = sshll.u32 [#allocation13], 4
      %s104 = int_to_ptr.vmem [resolvable:$true] %s103
      %109 = dma.hbm_to_vmem [thread:$0]  %s102, 2048, %s104, [#allocation12], 128, 128, 8
    $region33: #{tpu_custom_call.1} parent=1 // pred_fallthru
      _
    // Predicated region
    $region34: #{tpu_custom_call.1} parent=1 // pred_check
      _
    $region35: #{tpu_custom_call.1} parent=1 // pred_check_branch
      %111 = sbr.rel (0) target = $region37
    $region36: #{tpu_custom_call.1} parent=1 // pred_region
      _
    $region37: #{tpu_custom_call.1} parent=1 // pred_fallthru
      _
    // Predicated region
    $region38: #{tpu_custom_call.1} parent=1 // pred_check
      _
    $region39: #{tpu_custom_call.1} parent=1 // pred_check_branch
      %113 = sbr.rel (0) target = $region41
    $region40: #{tpu_custom_call.1} parent=1 // pred_region
      %115 = dma.done [#allocation3], 2048
    $region41: #{tpu_custom_call.1} parent=1 // pred_fallthru
      _
    // Predicated region
    $region42: #{tpu_custom_call.1} parent=1 // pred_check
      _
    $region43: #{tpu_custom_call.1} parent=1 // pred_check_branch
      %117 = sbr.rel (0) target = $region45
    $region44: #{tpu_custom_call.1} parent=1 // pred_region
      %119 = dma.done [#allocation6], 16384
    $region45: #{tpu_custom_call.1} parent=1 // pred_fallthru
      _
    // Predicated region
    $region46: #{tpu_custom_call.1} parent=1 // pred_check
      _
    $region47: #{tpu_custom_call.1} parent=1 // pred_check_branch
      %121 = sbr.rel (0) target = $region49
    $region48: #{tpu_custom_call.1} parent=1 // pred_region
      %123 = dma.done [#allocation6], 4096
    $region49: #{tpu_custom_call.1} parent=1 // pred_fallthru
      _
    // Predicated region
    $region50: #{tpu_custom_call.1} parent=1 // pred_check
      _
    $region51: #{tpu_custom_call.1} parent=1 // pred_check_branch
      %125 = sbr.rel (0) target = $region53
    $region52: #{tpu_custom_call.1} parent=1 // pred_region
      %127 = dma.done [#allocation9], 64
    $region53: #{tpu_custom_call.1} parent=1 // pred_fallthru
      _
    // Predicated region
    $region54: #{tpu_custom_call.1} parent=1 // pred_check
      _
    $region55: #{tpu_custom_call.1} parent=1 // pred_check_branch
      %129 = sbr.rel (0) target = $region57
    $region56: #{tpu_custom_call.1} parent=1 // pred_region
      %131 = dma.done [#allocation9], 4096
    $region57: #{tpu_custom_call.1} parent=1 // pred_fallthru
      _
    // Predicated region
    $region58: #{tpu_custom_call.1} parent=1 // pred_check
      _
    $region59: #{tpu_custom_call.1} parent=1 // pred_check_branch
      %133 = sbr.rel (0) target = $region61
    $region60: #{tpu_custom_call.1} parent=1 // pred_region
      %135 = dma.done [#allocation12], 4096
    $region61: #{tpu_custom_call.1} parent=1 // pred_fallthru
      _
    // Predicated region
    $region62: #{tpu_custom_call.1} parent=1 // pred_check
      _
    $region63: #{tpu_custom_call.1} parent=1 // pred_check_branch
      %137 = sbr.rel (0) target = $region65
    $region64: #{tpu_custom_call.1} parent=1 // pred_region
      %139 = dma.done [#allocation12], 2048
    $region65: #{tpu_custom_call.1} parent=1 // pred_fallthru
      _
    %v141 = vld [vmem:[#allocation2] sm:$0xff]
    %v142 = vld [vmem:[#allocation2 + $0x8] sm:$0xff]
    %v143 = vld [vmem:[#allocation2 + $0x10] sm:$0xff]
    %v144 = vld [vmem:[#allocation2 + $0x18] sm:$0xff]
    %v145 = vld [vmem:[#allocation2 + $0x20] sm:$0xff]
    %v146 = vld [vmem:[#allocation2 + $0x28] sm:$0xff]
    %v147 = vld [vmem:[#allocation2 + $0x30] sm:$0xff]
    %v148 = vld [vmem:[#allocation2 + $0x38] sm:$0xff]
    %v149 = vld [vmem:[#allocation2 + $0x40] sm:$0xff]
    %v150 = vld [vmem:[#allocation2 + $0x48] sm:$0xff]
    %v151 = vld [vmem:[#allocation2 + $0x50] sm:$0xff]
    %v152 = vld [vmem:[#allocation2 + $0x58] sm:$0xff]
    %v153 = vld [vmem:[#allocation2 + $0x60] sm:$0xff]
    %v154 = vld [vmem:[#allocation2 + $0x68] sm:$0xff]
    %v155 = vld [vmem:[#allocation2 + $0x70] sm:$0xff]
    %v156 = vld [vmem:[#allocation2 + $0x78] sm:$0xff]
    %v157 = vld [vmem:[#allocation5] sm:$0xff]
    %v158 = vld [vmem:[#allocation5 + $0x8] sm:$0xff]
    %v159 = vld [vmem:[#allocation5 + $0x10] sm:$0xff]
    %v160 = vld [vmem:[#allocation5 + $0x18] sm:$0xff]
    %v161 = vld [vmem:[#allocation5 + $0x20] sm:$0xff]
    %v162 = vld [vmem:[#allocation5 + $0x28] sm:$0xff]
    %v163 = vld [vmem:[#allocation5 + $0x30] sm:$0xff]
    %v164 = vld [vmem:[#allocation5 + $0x38] sm:$0xff]
    %v165 = vld [vmem:[#allocation5 + $0x40] sm:$0xff]
    %v166 = vld [vmem:[#allocation5 + $0x48] sm:$0xff]
    %v167 = vld [vmem:[#allocation5 + $0x50] sm:$0xff]
    %v168 = vld [vmem:[#allocation5 + $0x58] sm:$0xff]
    %v169 = vld [vmem:[#allocation5 + $0x60] sm:$0xff]
    %v170 = vld [vmem:[#allocation5 + $0x68] sm:$0xff]
    %v171 = vld [vmem:[#allocation5 + $0x70] sm:$0xff]
    %v172 = vld [vmem:[#allocation5 + $0x78] sm:$0xff]
    %v173 = vld [vmem:[#allocation5 + $0x80] sm:$0xff]
    %v174 = vld [vmem:[#allocation5 + $0x88] sm:$0xff]
    %v175 = vld [vmem:[#allocation5 + $0x90] sm:$0xff]
    %v176 = vld [vmem:[#allocation5 + $0x98] sm:$0xff]
    %v177 = vld [vmem:[#allocation5 + $0xa0] sm:$0xff]
    %v178 = vld [vmem:[#allocation5 + $0xa8] sm:$0xff]
    %v179 = vld [vmem:[#allocation5 + $0xb0] sm:$0xff]
    %v180 = vld [vmem:[#allocation5 + $0xb8] sm:$0xff]
    %v181 = vld [vmem:[#allocation5 + $0xc0] sm:$0xff]
    %v182 = vld [vmem:[#allocation5 + $0xc8] sm:$0xff]
    %v183 = vld [vmem:[#allocation5 + $0xd0] sm:$0xff]
    %v184 = vld [vmem:[#allocation5 + $0xd8] sm:$0xff]
    %v185 = vld [vmem:[#allocation5 + $0xe0] sm:$0xff]
    %v186 = vld [vmem:[#allocation5 + $0xe8] sm:$0xff]
    %v187 = vld [vmem:[#allocation5 + $0xf0] sm:$0xff]
    %v188 = vld [vmem:[#allocation5 + $0xf8] sm:$0xff]
    %v189 = vld [vmem:[#allocation5 + $0x100] sm:$0xff]
    %v190 = vld [vmem:[#allocation5 + $0x108] sm:$0xff]
    %v191 = vld [vmem:[#allocation5 + $0x110] sm:$0xff]
    %v192 = vld [vmem:[#allocation5 + $0x118] sm:$0xff]
    %v193 = vld [vmem:[#allocation5 + $0x120] sm:$0xff]
    %v194 = vld [vmem:[#allocation5 + $0x128] sm:$0xff]
    %v195 = vld [vmem:[#allocation5 + $0x130] sm:$0xff]
    %v196 = vld [vmem:[#allocation5 + $0x138] sm:$0xff]
    %v197 = vld [vmem:[#allocation5 + $0x140] sm:$0xff]
    %v198 = vld [vmem:[#allocation5 + $0x148] sm:$0xff]
    %v199 = vld [vmem:[#allocation5 + $0x150] sm:$0xff]
    %v200 = vld [vmem:[#allocation5 + $0x158] sm:$0xff]
    %v201 = vld [vmem:[#allocation5 + $0x160] sm:$0xff]
    %v202 = vld [vmem:[#allocation5 + $0x168] sm:$0xff]
    %v203 = vld [vmem:[#allocation5 + $0x170] sm:$0xff]
    %v204 = vld [vmem:[#allocation5 + $0x178] sm:$0xff]
    %v205 = vld [vmem:[#allocation5 + $0x180] sm:$0xff]
    %v206 = vld [vmem:[#allocation5 + $0x188] sm:$0xff]
    %v207 = vld [vmem:[#allocation5 + $0x190] sm:$0xff]
    %v208 = vld [vmem:[#allocation5 + $0x198] sm:$0xff]
    %v209 = vld [vmem:[#allocation5 + $0x1a0] sm:$0xff]
    %v210 = vld [vmem:[#allocation5 + $0x1a8] sm:$0xff]
    %v211 = vld [vmem:[#allocation5 + $0x1b0] sm:$0xff]
    %v212 = vld [vmem:[#allocation5 + $0x1b8] sm:$0xff]
    %v213 = vld [vmem:[#allocation5 + $0x1c0] sm:$0xff]
    %v214 = vld [vmem:[#allocation5 + $0x1c8] sm:$0xff]
    %v215 = vld [vmem:[#allocation5 + $0x1d0] sm:$0xff]
    %v216 = vld [vmem:[#allocation5 + $0x1d8] sm:$0xff]
    %v217 = vld [vmem:[#allocation5 + $0x1e0] sm:$0xff]
    %v218 = vld [vmem:[#allocation5 + $0x1e8] sm:$0xff]
    %v219 = vld [vmem:[#allocation5 + $0x1f0] sm:$0xff]
    %v220 = vld [vmem:[#allocation5 + $0x1f8] sm:$0xff]
    %v221 = vld [vmem:[#allocation5 + $0x200] sm:$0xff]
    %v222 = vld [vmem:[#allocation5 + $0x208] sm:$0xff]
    %v223 = vld [vmem:[#allocation5 + $0x210] sm:$0xff]
    %v224 = vld [vmem:[#allocation5 + $0x218] sm:$0xff]
    %v225 = vld [vmem:[#allocation5 + $0x220] sm:$0xff]
    %v226 = vld [vmem:[#allocation5 + $0x228] sm:$0xff]
    %v227 = vld [vmem:[#allocation5 + $0x230] sm:$0xff]
    %v228 = vld [vmem:[#allocation5 + $0x238] sm:$0xff]
    %v229 = vld [vmem:[#allocation5 + $0x240] sm:$0xff]
    %v230 = vld [vmem:[#allocation5 + $0x248] sm:$0xff]
    %v231 = vld [vmem:[#allocation5 + $0x250] sm:$0xff]
    %v232 = vld [vmem:[#allocation5 + $0x258] sm:$0xff]
    %v233 = vld [vmem:[#allocation5 + $0x260] sm:$0xff]
    %v234 = vld [vmem:[#allocation5 + $0x268] sm:$0xff]
    %v235 = vld [vmem:[#allocation5 + $0x270] sm:$0xff]
    %v236 = vld [vmem:[#allocation5 + $0x278] sm:$0xff]
    %v237 = vld [vmem:[#allocation5 + $0x280] sm:$0xff]
    %v238 = vld [vmem:[#allocation5 + $0x288] sm:$0xff]
    %v239 = vld [vmem:[#allocation5 + $0x290] sm:$0xff]
    %v240 = vld [vmem:[#allocation5 + $0x298] sm:$0xff]
    %v241 = vld [vmem:[#allocation5 + $0x2a0] sm:$0xff]
    %v242 = vld [vmem:[#allocation5 + $0x2a8] sm:$0xff]
    %v243 = vld [vmem:[#allocation5 + $0x2b0] sm:$0xff]
    %v244 = vld [vmem:[#allocation5 + $0x2b8] sm:$0xff]
    %v245 = vld [vmem:[#allocation5 + $0x2c0] sm:$0xff]
    %v246 = vld [vmem:[#allocation5 + $0x2c8] sm:$0xff]
    %v247 = vld [vmem:[#allocation5 + $0x2d0] sm:$0xff]
    %v248 = vld [vmem:[#allocation5 + $0x2d8] sm:$0xff]
    %v249 = vld [vmem:[#allocation5 + $0x2e0] sm:$0xff]
    %v250 = vld [vmem:[#allocation5 + $0x2e8] sm:$0xff]
    %v251 = vld [vmem:[#allocation5 + $0x2f0] sm:$0xff]
    %v252 = vld [vmem:[#allocation5 + $0x2f8] sm:$0xff]
    %v253 = vld [vmem:[#allocation5 + $0x300] sm:$0xff]
    %v254 = vld [vmem:[#allocation5 + $0x308] sm:$0xff]
    %v255 = vld [vmem:[#allocation5 + $0x310] sm:$0xff]
    %v256 = vld [vmem:[#allocation5 + $0x318] sm:$0xff]
    %v257 = vld [vmem:[#allocation5 + $0x320] sm:$0xff]
    %v258 = vld [vmem:[#allocation5 + $0x328] sm:$0xff]
    %v259 = vld [vmem:[#allocation5 + $0x330] sm:$0xff]
    %v260 = vld [vmem:[#allocation5 + $0x338] sm:$0xff]
    %v261 = vld [vmem:[#allocation5 + $0x340] sm:$0xff]
    %v262 = vld [vmem:[#allocation5 + $0x348] sm:$0xff]
    %v263 = vld [vmem:[#allocation5 + $0x350] sm:$0xff]
    %v264 = vld [vmem:[#allocation5 + $0x358] sm:$0xff]
    %v265 = vld [vmem:[#allocation5 + $0x360] sm:$0xff]
    %v266 = vld [vmem:[#allocation5 + $0x368] sm:$0xff]
    %v267 = vld [vmem:[#allocation5 + $0x370] sm:$0xff]
    %v268 = vld [vmem:[#allocation5 + $0x378] sm:$0xff]
    %v269 = vld [vmem:[#allocation5 + $0x380] sm:$0xff]
    %v270 = vld [vmem:[#allocation5 + $0x388] sm:$0xff]
    %v271 = vld [vmem:[#allocation5 + $0x390] sm:$0xff]
    %v272 = vld [vmem:[#allocation5 + $0x398] sm:$0xff]
    %v273 = vld [vmem:[#allocation5 + $0x3a0] sm:$0xff]
    %v274 = vld [vmem:[#allocation5 + $0x3a8] sm:$0xff]
    %v275 = vld [vmem:[#allocation5 + $0x3b0] sm:$0xff]
    %v276 = vld [vmem:[#allocation5 + $0x3b8] sm:$0xff]
    %v277 = vld [vmem:[#allocation5 + $0x3c0] sm:$0xff]
    %v278 = vld [vmem:[#allocation5 + $0x3c8] sm:$0xff]
    %v279 = vld [vmem:[#allocation5 + $0x3d0] sm:$0xff]
    %v280 = vld [vmem:[#allocation5 + $0x3d8] sm:$0xff]
    %v281 = vld [vmem:[#allocation5 + $0x3e0] sm:$0xff]
    %v282 = vld [vmem:[#allocation5 + $0x3e8] sm:$0xff]
    %v283 = vld [vmem:[#allocation5 + $0x3f0] sm:$0xff]
    %v284 = vld [vmem:[#allocation5 + $0x3f8] sm:$0xff]
    %v285 = vld [vmem:[#allocation8] sm:$0xf]
    %v287 = vperm.slane %v285, 0
    %v288 = vperm.slane %v285, 1
    %v289 = vperm.slane %v285, 2
    %v290 = vperm.slane %v285, 3
    %v311 = vunpack.c.l.b16 %v141
    %v312 = vunpack.c.h.b16 %v141
    %v313 = vunpack.c.l.b16 %v142
    %v314 = vunpack.c.h.b16 %v142
    %v315 = vunpack.c.l.b16 %v143
    %v316 = vunpack.c.h.b16 %v143
    %v317 = vunpack.c.l.b16 %v144
    %v318 = vunpack.c.h.b16 %v144
    %v319 = vunpack.c.l.b16 %v145
    %v320 = vunpack.c.h.b16 %v145
    %v321 = vunpack.c.l.b16 %v146
    %v322 = vunpack.c.h.b16 %v146
    %v323 = vunpack.c.l.b16 %v147
    %v324 = vunpack.c.h.b16 %v147
    %v325 = vunpack.c.l.b16 %v148
    %v326 = vunpack.c.h.b16 %v148
    %v327 = vunpack.c.l.b16 %v149
    %v328 = vunpack.c.h.b16 %v149
    %v329 = vunpack.c.l.b16 %v150
    %v330 = vunpack.c.h.b16 %v150
    %v331 = vunpack.c.l.b16 %v151
    %v332 = vunpack.c.h.b16 %v151
    %v333 = vunpack.c.l.b16 %v152
    %v334 = vunpack.c.h.b16 %v152
    %v335 = vunpack.c.l.b16 %v153
    %v336 = vunpack.c.h.b16 %v153
    %v337 = vunpack.c.l.b16 %v154
    %v338 = vunpack.c.h.b16 %v154
    %v339 = vunpack.c.l.b16 %v155
    %v340 = vunpack.c.h.b16 %v155
    %v341 = vunpack.c.l.b16 %v156
    %v342 = vunpack.c.h.b16 %v156
    %v343 = vpack.c.b16 %v315, %v311
    %v344 = vpack.c.b16 %v316, %v312
    %v345 = vpack.c.b16 %v317, %v313
    %v346 = vpack.c.b16 %v318, %v314
    %v347 = vpack.c.b16 %v323, %v319
    %v348 = vpack.c.b16 %v324, %v320
    %v349 = vpack.c.b16 %v325, %v321
    %v350 = vpack.c.b16 %v326, %v322
    %v351 = vpack.c.b16 %v331, %v327
    %v352 = vpack.c.b16 %v332, %v328
    %v353 = vpack.c.b16 %v333, %v329
    %v354 = vpack.c.b16 %v334, %v330
    %v355 = vpack.c.b16 %v339, %v335
    %v356 = vpack.c.b16 %v340, %v336
    %v357 = vpack.c.b16 %v341, %v337
    %v358 = vpack.c.b16 %v342, %v338
    %v503 = vunpack.c.l.b16 %v157
    %v504 = vunpack.c.h.b16 %v157
    %v505 = vunpack.c.l.b16 %v158
    %v506 = vunpack.c.h.b16 %v158
    %v507 = vunpack.c.l.b16 %v159
    %v508 = vunpack.c.h.b16 %v159
    %v509 = vunpack.c.l.b16 %v160
    %v510 = vunpack.c.h.b16 %v160
    %v511 = vunpack.c.l.b16 %v161
    %v512 = vunpack.c.h.b16 %v161
    %v513 = vunpack.c.l.b16 %v162
    %v514 = vunpack.c.h.b16 %v162
    %v515 = vunpack.c.l.b16 %v163
    %v516 = vunpack.c.h.b16 %v163
    %v517 = vunpack.c.l.b16 %v164
    %v518 = vunpack.c.h.b16 %v164
    %v519 = vunpack.c.l.b16 %v165
    %v520 = vunpack.c.h.b16 %v165
    %v521 = vunpack.c.l.b16 %v166
    %v522 = vunpack.c.h.b16 %v166
    %v523 = vunpack.c.l.b16 %v167
    %v524 = vunpack.c.h.b16 %v167
    %v525 = vunpack.c.l.b16 %v168
    %v526 = vunpack.c.h.b16 %v168
    %v527 = vunpack.c.l.b16 %v169
    %v528 = vunpack.c.h.b16 %v169
    %v529 = vunpack.c.l.b16 %v170
    %v530 = vunpack.c.h.b16 %v170
    %v531 = vunpack.c.l.b16 %v171
    %v532 = vunpack.c.h.b16 %v171
    %v533 = vunpack.c.l.b16 %v172
    %v534 = vunpack.c.h.b16 %v172
    %v535 = vunpack.c.l.b16 %v173
    %v536 = vunpack.c.h.b16 %v173
    %v537 = vunpack.c.l.b16 %v174
    %v538 = vunpack.c.h.b16 %v174
    %v539 = vunpack.c.l.b16 %v175
    %v540 = vunpack.c.h.b16 %v175
    %v541 = vunpack.c.l.b16 %v176
    %v542 = vunpack.c.h.b16 %v176
    %v543 = vunpack.c.l.b16 %v177
    %v544 = vunpack.c.h.b16 %v177
    %v545 = vunpack.c.l.b16 %v178
    %v546 = vunpack.c.h.b16 %v178
    %v547 = vunpack.c.l.b16 %v179
    %v548 = vunpack.c.h.b16 %v179
    %v549 = vunpack.c.l.b16 %v180
    %v550 = vunpack.c.h.b16 %v180
    %v551 = vunpack.c.l.b16 %v181
    %v552 = vunpack.c.h.b16 %v181
    %v553 = vunpack.c.l.b16 %v182
    %v554 = vunpack.c.h.b16 %v182
    %v555 = vunpack.c.l.b16 %v183
    %v556 = vunpack.c.h.b16 %v183
    %v557 = vunpack.c.l.b16 %v184
    %v558 = vunpack.c.h.b16 %v184
    %v559 = vunpack.c.l.b16 %v185
    %v560 = vunpack.c.h.b16 %v185
    %v561 = vunpack.c.l.b16 %v186
    %v562 = vunpack.c.h.b16 %v186
    %v563 = vunpack.c.l.b16 %v187
    %v564 = vunpack.c.h.b16 %v187
    %v565 = vunpack.c.l.b16 %v188
    %v566 = vunpack.c.h.b16 %v188
    %v567 = vunpack.c.l.b16 %v189
    %v568 = vunpack.c.h.b16 %v189
    %v569 = vunpack.c.l.b16 %v190
    %v570 = vunpack.c.h.b16 %v190
    %v571 = vunpack.c.l.b16 %v191
    %v572 = vunpack.c.h.b16 %v191
    %v573 = vunpack.c.l.b16 %v192
    %v574 = vunpack.c.h.b16 %v192
    %v575 = vunpack.c.l.b16 %v193
    %v576 = vunpack.c.h.b16 %v193
    %v577 = vunpack.c.l.b16 %v194
    %v578 = vunpack.c.h.b16 %v194
    %v579 = vunpack.c.l.b16 %v195
    %v580 = vunpack.c.h.b16 %v195
    %v581 = vunpack.c.l.b16 %v196
    %v582 = vunpack.c.h.b16 %v196
    %v583 = vunpack.c.l.b16 %v197
    %v584 = vunpack.c.h.b16 %v197
    %v585 = vunpack.c.l.b16 %v198
    %v586 = vunpack.c.h.b16 %v198
    %v587 = vunpack.c.l.b16 %v199
    %v588 = vunpack.c.h.b16 %v199
    %v589 = vunpack.c.l.b16 %v200
    %v590 = vunpack.c.h.b16 %v200
    %v591 = vunpack.c.l.b16 %v201
    %v592 = vunpack.c.h.b16 %v201
    %v593 = vunpack.c.l.b16 %v202
    %v594 = vunpack.c.h.b16 %v202
    %v595 = vunpack.c.l.b16 %v203
    %v596 = vunpack.c.h.b16 %v203
    %v597 = vunpack.c.l.b16 %v204
    %v598 = vunpack.c.h.b16 %v204
    %v599 = vunpack.c.l.b16 %v205
    %v600 = vunpack.c.h.b16 %v205
    %v601 = vunpack.c.l.b16 %v206
    %v602 = vunpack.c.h.b16 %v206
    %v603 = vunpack.c.l.b16 %v207
    %v604 = vunpack.c.h.b16 %v207
    %v605 = vunpack.c.l.b16 %v208
    %v606 = vunpack.c.h.b16 %v208
    %v607 = vunpack.c.l.b16 %v209
    %v608 = vunpack.c.h.b16 %v209
    %v609 = vunpack.c.l.b16 %v210
    %v610 = vunpack.c.h.b16 %v210
    %v611 = vunpack.c.l.b16 %v211
    %v612 = vunpack.c.h.b16 %v211
    %v613 = vunpack.c.l.b16 %v212
    %v614 = vunpack.c.h.b16 %v212
    %v615 = vunpack.c.l.b16 %v213
    %v616 = vunpack.c.h.b16 %v213
    %v617 = vunpack.c.l.b16 %v214
    %v618 = vunpack.c.h.b16 %v214
    %v619 = vunpack.c.l.b16 %v215
    %v620 = vunpack.c.h.b16 %v215
    %v621 = vunpack.c.l.b16 %v216
    %v622 = vunpack.c.h.b16 %v216
    %v623 = vunpack.c.l.b16 %v217
    %v624 = vunpack.c.h.b16 %v217
    %v625 = vunpack.c.l.b16 %v218
    %v626 = vunpack.c.h.b16 %v218
    %v627 = vunpack.c.l.b16 %v219
    %v628 = vunpack.c.h.b16 %v219
    %v629 = vunpack.c.l.b16 %v220
    %v630 = vunpack.c.h.b16 %v220
    %v631 = vunpack.c.l.b16 %v221
    %v632 = vunpack.c.h.b16 %v221
    %v633 = vunpack.c.l.b16 %v222
    %v634 = vunpack.c.h.b16 %v222
    %v635 = vunpack.c.l.b16 %v223
    %v636 = vunpack.c.h.b16 %v223
    %v637 = vunpack.c.l.b16 %v224
    %v638 = vunpack.c.h.b16 %v224
    %v639 = vunpack.c.l.b16 %v225
    %v640 = vunpack.c.h.b16 %v225
    %v641 = vunpack.c.l.b16 %v226
    %v642 = vunpack.c.h.b16 %v226
    %v643 = vunpack.c.l.b16 %v227
    %v644 = vunpack.c.h.b16 %v227
    %v645 = vunpack.c.l.b16 %v228
    %v646 = vunpack.c.h.b16 %v228
    %v647 = vunpack.c.l.b16 %v229
    %v648 = vunpack.c.h.b16 %v229
    %v649 = vunpack.c.l.b16 %v230
    %v650 = vunpack.c.h.b16 %v230
    %v651 = vunpack.c.l.b16 %v231
    %v652 = vunpack.c.h.b16 %v231
    %v653 = vunpack.c.l.b16 %v232
    %v654 = vunpack.c.h.b16 %v232
    %v655 = vunpack.c.l.b16 %v233
    %v656 = vunpack.c.h.b16 %v233
    %v657 = vunpack.c.l.b16 %v234
    %v658 = vunpack.c.h.b16 %v234
    %v659 = vunpack.c.l.b16 %v235
    %v660 = vunpack.c.h.b16 %v235
    %v661 = vunpack.c.l.b16 %v236
    %v662 = vunpack.c.h.b16 %v236
    %v663 = vunpack.c.l.b16 %v237
    %v664 = vunpack.c.h.b16 %v237
    %v665 = vunpack.c.l.b16 %v238
    %v666 = vunpack.c.h.b16 %v238
    %v667 = vunpack.c.l.b16 %v239
    %v668 = vunpack.c.h.b16 %v239
    %v669 = vunpack.c.l.b16 %v240
    %v670 = vunpack.c.h.b16 %v240
    %v671 = vunpack.c.l.b16 %v241
    %v672 = vunpack.c.h.b16 %v241
    %v673 = vunpack.c.l.b16 %v242
    %v674 = vunpack.c.h.b16 %v242
    %v675 = vunpack.c.l.b16 %v243
    %v676 = vunpack.c.h.b16 %v243
    %v677 = vunpack.c.l.b16 %v244
    %v678 = vunpack.c.h.b16 %v244
    %v679 = vunpack.c.l.b16 %v245
    %v680 = vunpack.c.h.b16 %v245
    %v681 = vunpack.c.l.b16 %v246
    %v682 = vunpack.c.h.b16 %v246
    %v683 = vunpack.c.l.b16 %v247
    %v684 = vunpack.c.h.b16 %v247
    %v685 = vunpack.c.l.b16 %v248
    %v686 = vunpack.c.h.b16 %v248
    %v687 = vunpack.c.l.b16 %v249
    %v688 = vunpack.c.h.b16 %v249
    %v689 = vunpack.c.l.b16 %v250
    %v690 = vunpack.c.h.b16 %v250
    %v691 = vunpack.c.l.b16 %v251
    %v692 = vunpack.c.h.b16 %v251
    %v693 = vunpack.c.l.b16 %v252
    %v694 = vunpack.c.h.b16 %v252
    %v695 = vunpack.c.l.b16 %v253
    %v696 = vunpack.c.h.b16 %v253
    %v697 = vunpack.c.l.b16 %v254
    %v698 = vunpack.c.h.b16 %v254
    %v699 = vunpack.c.l.b16 %v255
    %v700 = vunpack.c.h.b16 %v255
    %v701 = vunpack.c.l.b16 %v256
    %v702 = vunpack.c.h.b16 %v256
    %v703 = vunpack.c.l.b16 %v257
    %v704 = vunpack.c.h.b16 %v257
    %v705 = vunpack.c.l.b16 %v258
    %v706 = vunpack.c.h.b16 %v258
    %v707 = vunpack.c.l.b16 %v259
    %v708 = vunpack.c.h.b16 %v259
    %v709 = vunpack.c.l.b16 %v260
    %v710 = vunpack.c.h.b16 %v260
    %v711 = vunpack.c.l.b16 %v261
    %v712 = vunpack.c.h.b16 %v261
    %v713 = vunpack.c.l.b16 %v262
    %v714 = vunpack.c.h.b16 %v262
    %v715 = vunpack.c.l.b16 %v263
    %v716 = vunpack.c.h.b16 %v263
    %v717 = vunpack.c.l.b16 %v264
    %v718 = vunpack.c.h.b16 %v264
    %v719 = vunpack.c.l.b16 %v265
    %v720 = vunpack.c.h.b16 %v265
    %v721 = vunpack.c.l.b16 %v266
    %v722 = vunpack.c.h.b16 %v266
    %v723 = vunpack.c.l.b16 %v267
    %v724 = vunpack.c.h.b16 %v267
    %v725 = vunpack.c.l.b16 %v268
    %v726 = vunpack.c.h.b16 %v268
    %v727 = vunpack.c.l.b16 %v269
    %v728 = vunpack.c.h.b16 %v269
    %v729 = vunpack.c.l.b16 %v270
    %v730 = vunpack.c.h.b16 %v270
    %v731 = vunpack.c.l.b16 %v271
    %v732 = vunpack.c.h.b16 %v271
    %v733 = vunpack.c.l.b16 %v272
    %v734 = vunpack.c.h.b16 %v272
    %v735 = vunpack.c.l.b16 %v273
    %v736 = vunpack.c.h.b16 %v273
    %v737 = vunpack.c.l.b16 %v274
    %v738 = vunpack.c.h.b16 %v274
    %v739 = vunpack.c.l.b16 %v275
    %v740 = vunpack.c.h.b16 %v275
    %v741 = vunpack.c.l.b16 %v276
    %v742 = vunpack.c.h.b16 %v276
    %v743 = vunpack.c.l.b16 %v277
    %v744 = vunpack.c.h.b16 %v277
    %v745 = vunpack.c.l.b16 %v278
    %v746 = vunpack.c.h.b16 %v278
    %v747 = vunpack.c.l.b16 %v279
    %v748 = vunpack.c.h.b16 %v279
    %v749 = vunpack.c.l.b16 %v280
    %v750 = vunpack.c.h.b16 %v280
    %v751 = vunpack.c.l.b16 %v281
    %v752 = vunpack.c.h.b16 %v281
    %v753 = vunpack.c.l.b16 %v282
    %v754 = vunpack.c.h.b16 %v282
    %v755 = vunpack.c.l.b16 %v283
    %v756 = vunpack.c.h.b16 %v283
    %v757 = vunpack.c.l.b16 %v284
    %v758 = vunpack.c.h.b16 %v284
    %v759 = vpack.c.b16 %v507, %v503
    %v760 = vpack.c.b16 %v508, %v504
    %v761 = vpack.c.b16 %v509, %v505
    %v762 = vpack.c.b16 %v510, %v506
    %v763 = vpack.c.b16 %v515, %v511
    %v764 = vpack.c.b16 %v516, %v512
    %v765 = vpack.c.b16 %v517, %v513
    %v766 = vpack.c.b16 %v518, %v514
    %v767 = vpack.c.b16 %v523, %v519
    %v768 = vpack.c.b16 %v524, %v520
    %v769 = vpack.c.b16 %v525, %v521
    %v770 = vpack.c.b16 %v526, %v522
    %v771 = vpack.c.b16 %v531, %v527
    %v772 = vpack.c.b16 %v532, %v528
    %v773 = vpack.c.b16 %v533, %v529
    %v774 = vpack.c.b16 %v534, %v530
    %v775 = vpack.c.b16 %v539, %v535
    %v776 = vpack.c.b16 %v540, %v536
    %v777 = vpack.c.b16 %v541, %v537
    %v778 = vpack.c.b16 %v542, %v538
    %v779 = vpack.c.b16 %v547, %v543
    %v780 = vpack.c.b16 %v548, %v544
    %v781 = vpack.c.b16 %v549, %v545
    %v782 = vpack.c.b16 %v550, %v546
    %v783 = vpack.c.b16 %v555, %v551
    %v784 = vpack.c.b16 %v556, %v552
    %v785 = vpack.c.b16 %v557, %v553
    %v786 = vpack.c.b16 %v558, %v554
    %v787 = vpack.c.b16 %v563, %v559
    %v788 = vpack.c.b16 %v564, %v560
    %v789 = vpack.c.b16 %v565, %v561
    %v790 = vpack.c.b16 %v566, %v562
    %v791 = vpack.c.b16 %v571, %v567
    %v792 = vpack.c.b16 %v572, %v568
    %v793 = vpack.c.b16 %v573, %v569
    %v794 = vpack.c.b16 %v574, %v570
    %v795 = vpack.c.b16 %v579, %v575
    %v796 = vpack.c.b16 %v580, %v576
    %v797 = vpack.c.b16 %v581, %v577
    %v798 = vpack.c.b16 %v582, %v578
    %v799 = vpack.c.b16 %v587, %v583
    %v800 = vpack.c.b16 %v588, %v584
    %v801 = vpack.c.b16 %v589, %v585
    %v802 = vpack.c.b16 %v590, %v586
    %v803 = vpack.c.b16 %v595, %v591
    %v804 = vpack.c.b16 %v596, %v592
    %v805 = vpack.c.b16 %v597, %v593
    %v806 = vpack.c.b16 %v598, %v594
    %v807 = vpack.c.b16 %v603, %v599
    %v808 = vpack.c.b16 %v604, %v600
    %v809 = vpack.c.b16 %v605, %v601
    %v810 = vpack.c.b16 %v606, %v602
    %v811 = vpack.c.b16 %v611, %v607
    %v812 = vpack.c.b16 %v612, %v608
    %v813 = vpack.c.b16 %v613, %v609
    %v814 = vpack.c.b16 %v614, %v610
    %v815 = vpack.c.b16 %v619, %v615
    %v816 = vpack.c.b16 %v620, %v616
    %v817 = vpack.c.b16 %v621, %v617
    %v818 = vpack.c.b16 %v622, %v618
    %v819 = vpack.c.b16 %v627, %v623
    %v820 = vpack.c.b16 %v628, %v624
    %v821 = vpack.c.b16 %v629, %v625
    %v822 = vpack.c.b16 %v630, %v626
    %v823 = vpack.c.b16 %v635, %v631
    %v824 = vpack.c.b16 %v636, %v632
    %v825 = vpack.c.b16 %v637, %v633
    %v826 = vpack.c.b16 %v638, %v634
    %v827 = vpack.c.b16 %v643, %v639
    %v828 = vpack.c.b16 %v644, %v640
    %v829 = vpack.c.b16 %v645, %v641
    %v830 = vpack.c.b16 %v646, %v642
    %v831 = vpack.c.b16 %v651, %v647
    %v832 = vpack.c.b16 %v652, %v648
    %v833 = vpack.c.b16 %v653, %v649
    %v834 = vpack.c.b16 %v654, %v650
    %v835 = vpack.c.b16 %v659, %v655
    %v836 = vpack.c.b16 %v660, %v656
    %v837 = vpack.c.b16 %v661, %v657
    %v838 = vpack.c.b16 %v662, %v658
    %v839 = vpack.c.b16 %v667, %v663
    %v840 = vpack.c.b16 %v668, %v664
    %v841 = vpack.c.b16 %v669, %v665
    %v842 = vpack.c.b16 %v670, %v666
    %v843 = vpack.c.b16 %v675, %v671
    %v844 = vpack.c.b16 %v676, %v672
    %v845 = vpack.c.b16 %v677, %v673
    %v846 = vpack.c.b16 %v678, %v674
    %v847 = vpack.c.b16 %v683, %v679
    %v848 = vpack.c.b16 %v684, %v680
    %v849 = vpack.c.b16 %v685, %v681
    %v850 = vpack.c.b16 %v686, %v682
    %v851 = vpack.c.b16 %v691, %v687
    %v852 = vpack.c.b16 %v692, %v688
    %v853 = vpack.c.b16 %v693, %v689
    %v854 = vpack.c.b16 %v694, %v690
    %v855 = vpack.c.b16 %v699, %v695
    %v856 = vpack.c.b16 %v700, %v696
    %v857 = vpack.c.b16 %v701, %v697
    %v858 = vpack.c.b16 %v702, %v698
    %v859 = vpack.c.b16 %v707, %v703
    %v860 = vpack.c.b16 %v708, %v704
    %v861 = vpack.c.b16 %v709, %v705
    %v862 = vpack.c.b16 %v710, %v706
    %v863 = vpack.c.b16 %v715, %v711
    %v864 = vpack.c.b16 %v716, %v712
    %v865 = vpack.c.b16 %v717, %v713
    %v866 = vpack.c.b16 %v718, %v714
    %v867 = vpack.c.b16 %v723, %v719
    %v868 = vpack.c.b16 %v724, %v720
    %v869 = vpack.c.b16 %v725, %v721
    %v870 = vpack.c.b16 %v726, %v722
    %v871 = vpack.c.b16 %v731, %v727
    %v872 = vpack.c.b16 %v732, %v728
    %v873 = vpack.c.b16 %v733, %v729
    %v874 = vpack.c.b16 %v734, %v730
    %v875 = vpack.c.b16 %v739, %v735
    %v876 = vpack.c.b16 %v740, %v736
    %v877 = vpack.c.b16 %v741, %v737
    %v878 = vpack.c.b16 %v742, %v738
    %v879 = vpack.c.b16 %v747, %v743
    %v880 = vpack.c.b16 %v748, %v744
    %v881 = vpack.c.b16 %v749, %v745
    %v882 = vpack.c.b16 %v750, %v746
    %v883 = vpack.c.b16 %v755, %v751
    %v884 = vpack.c.b16 %v756, %v752
    %v885 = vpack.c.b16 %v757, %v753
    %v886 = vpack.c.b16 %v758, %v754
    %1015 = vmatpush.bf16.msra.mxu0 %v787
    %1016 = vmatpush.bf16.msra.mxu0 %v783
    %1017 = vmatpush.bf16.msra.mxu0 %v779
    %1018 = vmatpush.bf16.msra.mxu0 %v775
    %1019 = vmatpush.bf16.msra.mxu0 %v771
    %1020 = vmatpush.bf16.msra.mxu0 %v767
    %1021 = vmatpush.bf16.msra.mxu0 %v763
    %1022 = vmatpush.bf16.msra.mxu0 %v759
    %1023 = vmatmul.bf16.gmra.mxu0 %v343
    %v1024 = vpop.f32.mrf.mxu0
    %v1025 = vadd.f32 %v287, %v1024
    %v1026 = vpop.f32.mrf.mxu0
    %v1027 = vadd.f32 %v287, %v1026
    %1028 = vmatmul.bf16.gmra.mxu0 %v347
    %v1029 = vpop.f32.mrf.mxu0
    %v1030 = vadd.f32 %v287, %v1029
    %v1031 = vpop.f32.mrf.mxu0
    %v1032 = vadd.f32 %v287, %v1031
    %1033 = vmatmul.bf16.gmra.mxu0 %v351
    %v1034 = vpop.f32.mrf.mxu0
    %v1035 = vadd.f32 %v287, %v1034
    %v1036 = vpop.f32.mrf.mxu0
    %v1037 = vadd.f32 %v287, %v1036
    %1038 = vmatmul.bf16.gmra.mxu0 %v355
    %v1039 = vpop.f32.mrf.mxu0
    %v1040 = vadd.f32 %v287, %v1039
    %v1041 = vpop.f32.mrf.mxu0
    %v1042 = vadd.f32 %v287, %v1041
    %1043 = vdwg.mxu0
    %1044 = vmatpush.bf16.msra.mxu0 %v819
    %1045 = vmatpush.bf16.msra.mxu0 %v815
    %1046 = vmatpush.bf16.msra.mxu0 %v811
    %1047 = vmatpush.bf16.msra.mxu0 %v807
    %1048 = vmatpush.bf16.msra.mxu0 %v803
    %1049 = vmatpush.bf16.msra.mxu0 %v799
    %1050 = vmatpush.bf16.msra.mxu0 %v795
    %1051 = vmatpush.bf16.msra.mxu0 %v791
    %1052 = vmatmul.bf16.gmra.mxu0 %v344
    %v1053 = vpop.f32.mrf.mxu0
    %v1054 = vadd.f32 %v1025, %v1053
    %v1055 = vpop.f32.mrf.mxu0
    %v1056 = vadd.f32 %v1027, %v1055
    %1057 = vmatmul.bf16.gmra.mxu0 %v348
    %v1058 = vpop.f32.mrf.mxu0
    %v1059 = vadd.f32 %v1030, %v1058
    %v1060 = vpop.f32.mrf.mxu0
    %v1061 = vadd.f32 %v1032, %v1060
    %1062 = vmatmul.bf16.gmra.mxu0 %v352
    %v1063 = vpop.f32.mrf.mxu0
    %v1064 = vadd.f32 %v1035, %v1063
    %v1065 = vpop.f32.mrf.mxu0
    %v1066 = vadd.f32 %v1037, %v1065
    %1067 = vmatmul.bf16.gmra.mxu0 %v356
    %v1068 = vpop.f32.mrf.mxu0
    %v1069 = vadd.f32 %v1040, %v1068
    %v1070 = vpop.f32.mrf.mxu0
    %v1071 = vadd.f32 %v1042, %v1070
    %1072 = vdwg.mxu0
    %1073 = vmatpush.bf16.msra.mxu0 %v851
    %1074 = vmatpush.bf16.msra.mxu0 %v847
    %1075 = vmatpush.bf16.msra.mxu0 %v843
    %1076 = vmatpush.bf16.msra.mxu0 %v839
    %1077 = vmatpush.bf16.msra.mxu0 %v835
    %1078 = vmatpush.bf16.msra.mxu0 %v831
    %1079 = vmatpush.bf16.msra.mxu0 %v827
    %1080 = vmatpush.bf16.msra.mxu0 %v823
    %1081 = vmatmul.bf16.gmra.mxu0 %v345
    %v1082 = vpop.f32.mrf.mxu0
    %v1083 = vadd.f32 %v1054, %v1082
    %v1084 = vpop.f32.mrf.mxu0
    %v1085 = vadd.f32 %v1056, %v1084
    %1086 = vmatmul.bf16.gmra.mxu0 %v349
    %v1087 = vpop.f32.mrf.mxu0
    %v1088 = vadd.f32 %v1059, %v1087
    %v1089 = vpop.f32.mrf.mxu0
    %v1090 = vadd.f32 %v1061, %v1089
    %1091 = vmatmul.bf16.gmra.mxu0 %v353
    %v1092 = vpop.f32.mrf.mxu0
    %v1093 = vadd.f32 %v1064, %v1092
    %v1094 = vpop.f32.mrf.mxu0
    %v1095 = vadd.f32 %v1066, %v1094
    %1096 = vmatmul.bf16.gmra.mxu0 %v357
    %v1097 = vpop.f32.mrf.mxu0
    %v1098 = vadd.f32 %v1069, %v1097
    %v1099 = vpop.f32.mrf.mxu0
    %v1100 = vadd.f32 %v1071, %v1099
    %1101 = vdwg.mxu0
    %1102 = vmatpush.bf16.msra.mxu0 %v883
    %1103 = vmatpush.bf16.msra.mxu0 %v879
    %1104 = vmatpush.bf16.msra.mxu0 %v875
    %1105 = vmatpush.bf16.msra.mxu0 %v871
    %1106 = vmatpush.bf16.msra.mxu0 %v867
    %1107 = vmatpush.bf16.msra.mxu0 %v863
    %1108 = vmatpush.bf16.msra.mxu0 %v859
    %1109 = vmatpush.bf16.msra.mxu0 %v855
    %1110 = vmatmul.bf16.gmra.mxu0 %v346
    %v1111 = vpop.f32.mrf.mxu0
    %v1112 = vadd.f32 %v1083, %v1111
    %v1113 = vpop.f32.mrf.mxu0
    %v1114 = vadd.f32 %v1085, %v1113
    %1115 = vmatmul.bf16.gmra.mxu0 %v350
    %v1116 = vpop.f32.mrf.mxu0
    %v1117 = vadd.f32 %v1088, %v1116
    %v1118 = vpop.f32.mrf.mxu0
    %v1119 = vadd.f32 %v1090, %v1118
    %1120 = vmatmul.bf16.gmra.mxu0 %v354
    %v1121 = vpop.f32.mrf.mxu0
    %v1122 = vadd.f32 %v1093, %v1121
    %v1123 = vpop.f32.mrf.mxu0
    %v1124 = vadd.f32 %v1095, %v1123
    %1125 = vmatmul.bf16.gmra.mxu0 %v358
    %v1126 = vpop.f32.mrf.mxu0
    %v1127 = vadd.f32 %v1098, %v1126
    %v1128 = vpop.f32.mrf.mxu0
    %v1129 = vadd.f32 %v1100, %v1128
    %1130 = vdwg.mxu0
    %1131 = vmatpush.bf16.msra.mxu0 %v788
    %1132 = vmatpush.bf16.msra.mxu0 %v784
    %1133 = vmatpush.bf16.msra.mxu0 %v780
    %1134 = vmatpush.bf16.msra.mxu0 %v776
    %1135 = vmatpush.bf16.msra.mxu0 %v772
    %1136 = vmatpush.bf16.msra.mxu0 %v768
    %1137 = vmatpush.bf16.msra.mxu0 %v764
    %1138 = vmatpush.bf16.msra.mxu0 %v760
    %1139 = vmatmul.bf16.gmra.mxu0 %v343
    %v1140 = vpop.f32.mrf.mxu0
    %v1141 = vadd.f32 %v288, %v1140
    %v1142 = vpop.f32.mrf.mxu0
    %v1143 = vadd.f32 %v288, %v1142
    %1144 = vmatmul.bf16.gmra.mxu0 %v347
    %v1145 = vpop.f32.mrf.mxu0
    %v1146 = vadd.f32 %v288, %v1145
    %v1147 = vpop.f32.mrf.mxu0
    %v1148 = vadd.f32 %v288, %v1147
    %1149 = vmatmul.bf16.gmra.mxu0 %v351
    %v1150 = vpop.f32.mrf.mxu0
    %v1151 = vadd.f32 %v288, %v1150
    %v1152 = vpop.f32.mrf.mxu0
    %v1153 = vadd.f32 %v288, %v1152
    %1154 = vmatmul.bf16.gmra.mxu0 %v355
    %v1155 = vpop.f32.mrf.mxu0
    %v1156 = vadd.f32 %v288, %v1155
    %v1157 = vpop.f32.mrf.mxu0
    %v1158 = vadd.f32 %v288, %v1157
    %1159 = vdwg.mxu0
    %1160 = vmatpush.bf16.msra.mxu0 %v820
    %1161 = vmatpush.bf16.msra.mxu0 %v816
    %1162 = vmatpush.bf16.msra.mxu0 %v812
    %1163 = vmatpush.bf16.msra.mxu0 %v808
    %1164 = vmatpush.bf16.msra.mxu0 %v804
    %1165 = vmatpush.bf16.msra.mxu0 %v800
    %1166 = vmatpush.bf16.msra.mxu0 %v796
    %1167 = vmatpush.bf16.msra.mxu0 %v792
    %1168 = vmatmul.bf16.gmra.mxu0 %v344
    %v1169 = vpop.f32.mrf.mxu0
    %v1170 = vadd.f32 %v1141, %v1169
    %v1171 = vpop.f32.mrf.mxu0
    %v1172 = vadd.f32 %v1143, %v1171
    %1173 = vmatmul.bf16.gmra.mxu0 %v348
    %v1174 = vpop.f32.mrf.mxu0
    %v1175 = vadd.f32 %v1146, %v1174
    %v1176 = vpop.f32.mrf.mxu0
    %v1177 = vadd.f32 %v1148, %v1176
    %1178 = vmatmul.bf16.gmra.mxu0 %v352
    %v1179 = vpop.f32.mrf.mxu0
    %v1180 = vadd.f32 %v1151, %v1179
    %v1181 = vpop.f32.mrf.mxu0
    %v1182 = vadd.f32 %v1153, %v1181
    %1183 = vmatmul.bf16.gmra.mxu0 %v356
    %v1184 = vpop.f32.mrf.mxu0
    %v1185 = vadd.f32 %v1156, %v1184
    %v1186 = vpop.f32.mrf.mxu0
    %v1187 = vadd.f32 %v1158, %v1186
    %1188 = vdwg.mxu0
    %1189 = vmatpush.bf16.msra.mxu0 %v852
    %1190 = vmatpush.bf16.msra.mxu0 %v848
    %1191 = vmatpush.bf16.msra.mxu0 %v844
    %1192 = vmatpush.bf16.msra.mxu0 %v840
    %1193 = vmatpush.bf16.msra.mxu0 %v836
    %1194 = vmatpush.bf16.msra.mxu0 %v832
    %1195 = vmatpush.bf16.msra.mxu0 %v828
    %1196 = vmatpush.bf16.msra.mxu0 %v824
    %1197 = vmatmul.bf16.gmra.mxu0 %v345
    %v1198 = vpop.f32.mrf.mxu0
    %v1199 = vadd.f32 %v1170, %v1198
    %v1200 = vpop.f32.mrf.mxu0
    %v1201 = vadd.f32 %v1172, %v1200
    %1202 = vmatmul.bf16.gmra.mxu0 %v349
    %v1203 = vpop.f32.mrf.mxu0
    %v1204 = vadd.f32 %v1175, %v1203
    %v1205 = vpop.f32.mrf.mxu0
    %v1206 = vadd.f32 %v1177, %v1205
    %1207 = vmatmul.bf16.gmra.mxu0 %v353
    %v1208 = vpop.f32.mrf.mxu0
    %v1209 = vadd.f32 %v1180, %v1208
    %v1210 = vpop.f32.mrf.mxu0
    %v1211 = vadd.f32 %v1182, %v1210
    %1212 = vmatmul.bf16.gmra.mxu0 %v357
    %v1213 = vpop.f32.mrf.mxu0
    %v1214 = vadd.f32 %v1185, %v1213
    %v1215 = vpop.f32.mrf.mxu0
    %v1216 = vadd.f32 %v1187, %v1215
    %1217 = vdwg.mxu0
    %1218 = vmatpush.bf16.msra.mxu0 %v884
    %1219 = vmatpush.bf16.msra.mxu0 %v880
    %1220 = vmatpush.bf16.msra.mxu0 %v876
    %1221 = vmatpush.bf16.msra.mxu0 %v872
    %1222 = vmatpush.bf16.msra.mxu0 %v868
    %1223 = vmatpush.bf16.msra.mxu0 %v864
    %1224 = vmatpush.bf16.msra.mxu0 %v860
    %1225 = vmatpush.bf16.msra.mxu0 %v856
    %1226 = vmatmul.bf16.gmra.mxu0 %v346
    %v1227 = vpop.f32.mrf.mxu0
    %v1228 = vadd.f32 %v1199, %v1227
    %v1229 = vpop.f32.mrf.mxu0
    %v1230 = vadd.f32 %v1201, %v1229
    %1231 = vmatmul.bf16.gmra.mxu0 %v350
    %v1232 = vpop.f32.mrf.mxu0
    %v1233 = vadd.f32 %v1204, %v1232
    %v1234 = vpop.f32.mrf.mxu0
    %v1235 = vadd.f32 %v1206, %v1234
    %1236 = vmatmul.bf16.gmra.mxu0 %v354
    %v1237 = vpop.f32.mrf.mxu0
    %v1238 = vadd.f32 %v1209, %v1237
    %v1239 = vpop.f32.mrf.mxu0
    %v1240 = vadd.f32 %v1211, %v1239
    %1241 = vmatmul.bf16.gmra.mxu0 %v358
    %v1242 = vpop.f32.mrf.mxu0
    %v1243 = vadd.f32 %v1214, %v1242
    %v1244 = vpop.f32.mrf.mxu0
    %v1245 = vadd.f32 %v1216, %v1244
    %1246 = vdwg.mxu0
    %1247 = vmatpush.bf16.msra.mxu0 %v789
    %1248 = vmatpush.bf16.msra.mxu0 %v785
    %1249 = vmatpush.bf16.msra.mxu0 %v781
    %1250 = vmatpush.bf16.msra.mxu0 %v777
    %1251 = vmatpush.bf16.msra.mxu0 %v773
    %1252 = vmatpush.bf16.msra.mxu0 %v769
    %1253 = vmatpush.bf16.msra.mxu0 %v765
    %1254 = vmatpush.bf16.msra.mxu0 %v761
    %1255 = vmatmul.bf16.gmra.mxu0 %v343
    %v1256 = vpop.f32.mrf.mxu0
    %v1257 = vadd.f32 %v289, %v1256
    %v1258 = vpop.f32.mrf.mxu0
    %v1259 = vadd.f32 %v289, %v1258
    %1260 = vmatmul.bf16.gmra.mxu0 %v347
    %v1261 = vpop.f32.mrf.mxu0
    %v1262 = vadd.f32 %v289, %v1261
    %v1263 = vpop.f32.mrf.mxu0
    %v1264 = vadd.f32 %v289, %v1263
    %1265 = vmatmul.bf16.gmra.mxu0 %v351
    %v1266 = vpop.f32.mrf.mxu0
    %v1267 = vadd.f32 %v289, %v1266
    %v1268 = vpop.f32.mrf.mxu0
    %v1269 = vadd.f32 %v289, %v1268
    %1270 = vmatmul.bf16.gmra.mxu0 %v355
    %v1271 = vpop.f32.mrf.mxu0
    %v1272 = vadd.f32 %v289, %v1271
    %v1273 = vpop.f32.mrf.mxu0
    %v1274 = vadd.f32 %v289, %v1273
    %1275 = vdwg.mxu0
    %1276 = vmatpush.bf16.msra.mxu0 %v821
    %1277 = vmatpush.bf16.msra.mxu0 %v817
    %1278 = vmatpush.bf16.msra.mxu0 %v813
    %1279 = vmatpush.bf16.msra.mxu0 %v809
    %1280 = vmatpush.bf16.msra.mxu0 %v805
    %1281 = vmatpush.bf16.msra.mxu0 %v801
    %1282 = vmatpush.bf16.msra.mxu0 %v797
    %1283 = vmatpush.bf16.msra.mxu0 %v793
    %1284 = vmatmul.bf16.gmra.mxu0 %v344
    %v1285 = vpop.f32.mrf.mxu0
    %v1286 = vadd.f32 %v1257, %v1285
    %v1287 = vpop.f32.mrf.mxu0
    %v1288 = vadd.f32 %v1259, %v1287
    %1289 = vmatmul.bf16.gmra.mxu0 %v348
    %v1290 = vpop.f32.mrf.mxu0
    %v1291 = vadd.f32 %v1262, %v1290
    %v1292 = vpop.f32.mrf.mxu0
    %v1293 = vadd.f32 %v1264, %v1292
    %1294 = vmatmul.bf16.gmra.mxu0 %v352
    %v1295 = vpop.f32.mrf.mxu0
    %v1296 = vadd.f32 %v1267, %v1295
    %v1297 = vpop.f32.mrf.mxu0
    %v1298 = vadd.f32 %v1269, %v1297
    %1299 = vmatmul.bf16.gmra.mxu0 %v356
    %v1300 = vpop.f32.mrf.mxu0
    %v1301 = vadd.f32 %v1272, %v1300
    %v1302 = vpop.f32.mrf.mxu0
    %v1303 = vadd.f32 %v1274, %v1302
    %1304 = vdwg.mxu0
    %1305 = vmatpush.bf16.msra.mxu0 %v853
    %1306 = vmatpush.bf16.msra.mxu0 %v849
    %1307 = vmatpush.bf16.msra.mxu0 %v845
    %1308 = vmatpush.bf16.msra.mxu0 %v841
    %1309 = vmatpush.bf16.msra.mxu0 %v837
    %1310 = vmatpush.bf16.msra.mxu0 %v833
    %1311 = vmatpush.bf16.msra.mxu0 %v829
    %1312 = vmatpush.bf16.msra.mxu0 %v825
    %1313 = vmatmul.bf16.gmra.mxu0 %v345
    %v1314 = vpop.f32.mrf.mxu0
    %v1315 = vadd.f32 %v1286, %v1314
    %v1316 = vpop.f32.mrf.mxu0
    %v1317 = vadd.f32 %v1288, %v1316
    %1318 = vmatmul.bf16.gmra.mxu0 %v349
    %v1319 = vpop.f32.mrf.mxu0
    %v1320 = vadd.f32 %v1291, %v1319
    %v1321 = vpop.f32.mrf.mxu0
    %v1322 = vadd.f32 %v1293, %v1321
    %1323 = vmatmul.bf16.gmra.mxu0 %v353
    %v1324 = vpop.f32.mrf.mxu0
    %v1325 = vadd.f32 %v1296, %v1324
    %v1326 = vpop.f32.mrf.mxu0
    %v1327 = vadd.f32 %v1298, %v1326
    %1328 = vmatmul.bf16.gmra.mxu0 %v357
    %v1329 = vpop.f32.mrf.mxu0
    %v1330 = vadd.f32 %v1301, %v1329
    %v1331 = vpop.f32.mrf.mxu0
    %v1332 = vadd.f32 %v1303, %v1331
    %1333 = vdwg.mxu0
    %1334 = vmatpush.bf16.msra.mxu0 %v885
    %1335 = vmatpush.bf16.msra.mxu0 %v881
    %1336 = vmatpush.bf16.msra.mxu0 %v877
    %1337 = vmatpush.bf16.msra.mxu0 %v873
    %1338 = vmatpush.bf16.msra.mxu0 %v869
    %1339 = vmatpush.bf16.msra.mxu0 %v865
    %1340 = vmatpush.bf16.msra.mxu0 %v861
    %1341 = vmatpush.bf16.msra.mxu0 %v857
    %1342 = vmatmul.bf16.gmra.mxu0 %v346
    %v1343 = vpop.f32.mrf.mxu0
    %v1344 = vadd.f32 %v1315, %v1343
    %v1345 = vpop.f32.mrf.mxu0
    %v1346 = vadd.f32 %v1317, %v1345
    %1347 = vmatmul.bf16.gmra.mxu0 %v350
    %v1348 = vpop.f32.mrf.mxu0
    %v1349 = vadd.f32 %v1320, %v1348
    %v1350 = vpop.f32.mrf.mxu0
    %v1351 = vadd.f32 %v1322, %v1350
    %1352 = vmatmul.bf16.gmra.mxu0 %v354
    %v1353 = vpop.f32.mrf.mxu0
    %v1354 = vadd.f32 %v1325, %v1353
    %v1355 = vpop.f32.mrf.mxu0
    %v1356 = vadd.f32 %v1327, %v1355
    %1357 = vmatmul.bf16.gmra.mxu0 %v358
    %v1358 = vpop.f32.mrf.mxu0
    %v1359 = vadd.f32 %v1330, %v1358
    %v1360 = vpop.f32.mrf.mxu0
    %v1361 = vadd.f32 %v1332, %v1360
    %1362 = vdwg.mxu0
    %1363 = vmatpush.bf16.msra.mxu0 %v790
    %1364 = vmatpush.bf16.msra.mxu0 %v786
    %1365 = vmatpush.bf16.msra.mxu0 %v782
    %1366 = vmatpush.bf16.msra.mxu0 %v778
    %1367 = vmatpush.bf16.msra.mxu0 %v774
    %1368 = vmatpush.bf16.msra.mxu0 %v770
    %1369 = vmatpush.bf16.msra.mxu0 %v766
    %1370 = vmatpush.bf16.msra.mxu0 %v762
    %1371 = vmatmul.bf16.gmra.mxu0 %v343
    %v1372 = vpop.f32.mrf.mxu0
    %v1373 = vadd.f32 %v290, %v1372
    %v1374 = vpop.f32.mrf.mxu0
    %v1375 = vadd.f32 %v290, %v1374
    %1376 = vmatmul.bf16.gmra.mxu0 %v347
    %v1377 = vpop.f32.mrf.mxu0
    %v1378 = vadd.f32 %v290, %v1377
    %v1379 = vpop.f32.mrf.mxu0
    %v1380 = vadd.f32 %v290, %v1379
    %1381 = vmatmul.bf16.gmra.mxu0 %v351
    %v1382 = vpop.f32.mrf.mxu0
    %v1383 = vadd.f32 %v290, %v1382
    %v1384 = vpop.f32.mrf.mxu0
    %v1385 = vadd.f32 %v290, %v1384
    %1386 = vmatmul.bf16.gmra.mxu0 %v355
    %v1387 = vpop.f32.mrf.mxu0
    %v1388 = vadd.f32 %v290, %v1387
    %v1389 = vpop.f32.mrf.mxu0
    %v1390 = vadd.f32 %v290, %v1389
    %1391 = vdwg.mxu0
    %1392 = vmatpush.bf16.msra.mxu0 %v822
    %1393 = vmatpush.bf16.msra.mxu0 %v818
    %1394 = vmatpush.bf16.msra.mxu0 %v814
    %1395 = vmatpush.bf16.msra.mxu0 %v810
    %1396 = vmatpush.bf16.msra.mxu0 %v806
    %1397 = vmatpush.bf16.msra.mxu0 %v802
    %1398 = vmatpush.bf16.msra.mxu0 %v798
    %1399 = vmatpush.bf16.msra.mxu0 %v794
    %1400 = vmatmul.bf16.gmra.mxu0 %v344
    %v1401 = vpop.f32.mrf.mxu0
    %v1402 = vadd.f32 %v1373, %v1401
    %v1403 = vpop.f32.mrf.mxu0
    %v1404 = vadd.f32 %v1375, %v1403
    %1405 = vmatmul.bf16.gmra.mxu0 %v348
    %v1406 = vpop.f32.mrf.mxu0
    %v1407 = vadd.f32 %v1378, %v1406
    %v1408 = vpop.f32.mrf.mxu0
    %v1409 = vadd.f32 %v1380, %v1408
    %1410 = vmatmul.bf16.gmra.mxu0 %v352
    %v1411 = vpop.f32.mrf.mxu0
    %v1412 = vadd.f32 %v1383, %v1411
    %v1413 = vpop.f32.mrf.mxu0
    %v1414 = vadd.f32 %v1385, %v1413
    %1415 = vmatmul.bf16.gmra.mxu0 %v356
    %v1416 = vpop.f32.mrf.mxu0
    %v1417 = vadd.f32 %v1388, %v1416
    %v1418 = vpop.f32.mrf.mxu0
    %v1419 = vadd.f32 %v1390, %v1418
    %1420 = vdwg.mxu0
    %1421 = vmatpush.bf16.msra.mxu0 %v854
    %1422 = vmatpush.bf16.msra.mxu0 %v850
    %1423 = vmatpush.bf16.msra.mxu0 %v846
    %1424 = vmatpush.bf16.msra.mxu0 %v842
    %1425 = vmatpush.bf16.msra.mxu0 %v838
    %1426 = vmatpush.bf16.msra.mxu0 %v834
    %1427 = vmatpush.bf16.msra.mxu0 %v830
    %1428 = vmatpush.bf16.msra.mxu0 %v826
    %1429 = vmatmul.bf16.gmra.mxu0 %v345
    %v1430 = vpop.f32.mrf.mxu0
    %v1431 = vadd.f32 %v1402, %v1430
    %v1432 = vpop.f32.mrf.mxu0
    %v1433 = vadd.f32 %v1404, %v1432
    %1434 = vmatmul.bf16.gmra.mxu0 %v349
    %v1435 = vpop.f32.mrf.mxu0
    %v1436 = vadd.f32 %v1407, %v1435
    %v1437 = vpop.f32.mrf.mxu0
    %v1438 = vadd.f32 %v1409, %v1437
    %1439 = vmatmul.bf16.gmra.mxu0 %v353
    %v1440 = vpop.f32.mrf.mxu0
    %v1441 = vadd.f32 %v1412, %v1440
    %v1442 = vpop.f32.mrf.mxu0
    %v1443 = vadd.f32 %v1414, %v1442
    %1444 = vmatmul.bf16.gmra.mxu0 %v357
    %v1445 = vpop.f32.mrf.mxu0
    %v1446 = vadd.f32 %v1417, %v1445
    %v1447 = vpop.f32.mrf.mxu0
    %v1448 = vadd.f32 %v1419, %v1447
    %1449 = vdwg.mxu0
    %1450 = vmatpush.bf16.msra.mxu0 %v886
    %1451 = vmatpush.bf16.msra.mxu0 %v882
    %1452 = vmatpush.bf16.msra.mxu0 %v878
    %1453 = vmatpush.bf16.msra.mxu0 %v874
    %1454 = vmatpush.bf16.msra.mxu0 %v870
    %1455 = vmatpush.bf16.msra.mxu0 %v866
    %1456 = vmatpush.bf16.msra.mxu0 %v862
    %1457 = vmatpush.bf16.msra.mxu0 %v858
    %1458 = vmatmul.bf16.gmra.mxu0 %v346
    %v1459 = vpop.f32.mrf.mxu0
    %v1460 = vadd.f32 %v1431, %v1459
    %v1461 = vpop.f32.mrf.mxu0
    %v1462 = vadd.f32 %v1433, %v1461
    %1463 = vmatmul.bf16.gmra.mxu0 %v350
    %v1464 = vpop.f32.mrf.mxu0
    %v1465 = vadd.f32 %v1436, %v1464
    %v1466 = vpop.f32.mrf.mxu0
    %v1467 = vadd.f32 %v1438, %v1466
    %1468 = vmatmul.bf16.gmra.mxu0 %v354
    %v1469 = vpop.f32.mrf.mxu0
    %v1470 = vadd.f32 %v1441, %v1469
    %v1471 = vpop.f32.mrf.mxu0
    %v1472 = vadd.f32 %v1443, %v1471
    %1473 = vmatmul.bf16.gmra.mxu0 %v358
    %v1474 = vpop.f32.mrf.mxu0
    %v1475 = vadd.f32 %v1446, %v1474
    %v1476 = vpop.f32.mrf.mxu0
    %v1477 = vadd.f32 %v1448, %v1476
    %1478 = vdwg.mxu0
    %v1479 = vld [vmem:[#allocation7] sm:$0xff]
    %v1480 = vld [vmem:[#allocation7 + $0x8] sm:$0xff]
    %v1481 = vld [vmem:[#allocation7 + $0x10] sm:$0xff]
    %v1482 = vld [vmem:[#allocation7 + $0x18] sm:$0xff]
    %v1483 = vld [vmem:[#allocation7 + $0x20] sm:$0xff]
    %v1484 = vld [vmem:[#allocation7 + $0x28] sm:$0xff]
    %v1485 = vld [vmem:[#allocation7 + $0x30] sm:$0xff]
    %v1486 = vld [vmem:[#allocation7 + $0x38] sm:$0xff]
    %v1487 = vld [vmem:[#allocation7 + $0x40] sm:$0xff]
    %v1488 = vld [vmem:[#allocation7 + $0x48] sm:$0xff]
    %v1489 = vld [vmem:[#allocation7 + $0x50] sm:$0xff]
    %v1490 = vld [vmem:[#allocation7 + $0x58] sm:$0xff]
    %v1491 = vld [vmem:[#allocation7 + $0x60] sm:$0xff]
    %v1492 = vld [vmem:[#allocation7 + $0x68] sm:$0xff]
    %v1493 = vld [vmem:[#allocation7 + $0x70] sm:$0xff]
    %v1494 = vld [vmem:[#allocation7 + $0x78] sm:$0xff]
    %v1495 = vld [vmem:[#allocation7 + $0x80] sm:$0xff]
    %v1496 = vld [vmem:[#allocation7 + $0x88] sm:$0xff]
    %v1497 = vld [vmem:[#allocation7 + $0x90] sm:$0xff]
    %v1498 = vld [vmem:[#allocation7 + $0x98] sm:$0xff]
    %v1499 = vld [vmem:[#allocation7 + $0xa0] sm:$0xff]
    %v1500 = vld [vmem:[#allocation7 + $0xa8] sm:$0xff]
    %v1501 = vld [vmem:[#allocation7 + $0xb0] sm:$0xff]
    %v1502 = vld [vmem:[#allocation7 + $0xb8] sm:$0xff]
    %v1503 = vld [vmem:[#allocation7 + $0xc0] sm:$0xff]
    %v1504 = vld [vmem:[#allocation7 + $0xc8] sm:$0xff]
    %v1505 = vld [vmem:[#allocation7 + $0xd0] sm:$0xff]
    %v1506 = vld [vmem:[#allocation7 + $0xd8] sm:$0xff]
    %v1507 = vld [vmem:[#allocation7 + $0xe0] sm:$0xff]
    %v1508 = vld [vmem:[#allocation7 + $0xe8] sm:$0xff]
    %v1509 = vld [vmem:[#allocation7 + $0xf0] sm:$0xff]
    %v1510 = vld [vmem:[#allocation7 + $0xf8] sm:$0xff]
    %v1511 = vld [vmem:[#allocation10] sm:$0xff]
    %v1512 = vld [vmem:[#allocation10 + $0x8] sm:$0xff]
    %v1513 = vld [vmem:[#allocation10 + $0x10] sm:$0xff]
    %v1514 = vld [vmem:[#allocation10 + $0x18] sm:$0xff]
    %v1515 = vld [vmem:[#allocation10 + $0x20] sm:$0xff]
    %v1516 = vld [vmem:[#allocation10 + $0x28] sm:$0xff]
    %v1517 = vld [vmem:[#allocation10 + $0x30] sm:$0xff]
    %v1518 = vld [vmem:[#allocation10 + $0x38] sm:$0xff]
    %v1519 = vld [vmem:[#allocation10 + $0x40] sm:$0xff]
    %v1520 = vld [vmem:[#allocation10 + $0x48] sm:$0xff]
    %v1521 = vld [vmem:[#allocation10 + $0x50] sm:$0xff]
    %v1522 = vld [vmem:[#allocation10 + $0x58] sm:$0xff]
    %v1523 = vld [vmem:[#allocation10 + $0x60] sm:$0xff]
    %v1524 = vld [vmem:[#allocation10 + $0x68] sm:$0xff]
    %v1525 = vld [vmem:[#allocation10 + $0x70] sm:$0xff]
    %v1526 = vld [vmem:[#allocation10 + $0x78] sm:$0xff]
    %v1527 = vld [vmem:[#allocation10 + $0x80] sm:$0xff]
    %v1528 = vld [vmem:[#allocation10 + $0x88] sm:$0xff]
    %v1529 = vld [vmem:[#allocation10 + $0x90] sm:$0xff]
    %v1530 = vld [vmem:[#allocation10 + $0x98] sm:$0xff]
    %v1531 = vld [vmem:[#allocation10 + $0xa0] sm:$0xff]
    %v1532 = vld [vmem:[#allocation10 + $0xa8] sm:$0xff]
    %v1533 = vld [vmem:[#allocation10 + $0xb0] sm:$0xff]
    %v1534 = vld [vmem:[#allocation10 + $0xb8] sm:$0xff]
    %v1535 = vld [vmem:[#allocation10 + $0xc0] sm:$0xff]
    %v1536 = vld [vmem:[#allocation10 + $0xc8] sm:$0xff]
    %v1537 = vld [vmem:[#allocation10 + $0xd0] sm:$0xff]
    %v1538 = vld [vmem:[#allocation10 + $0xd8] sm:$0xff]
    %v1539 = vld [vmem:[#allocation10 + $0xe0] sm:$0xff]
    %v1540 = vld [vmem:[#allocation10 + $0xe8] sm:$0xff]
    %v1541 = vld [vmem:[#allocation10 + $0xf0] sm:$0xff]
    %v1542 = vld [vmem:[#allocation10 + $0xf8] sm:$0xff]
    %v1543 = vld [vmem:[#allocation11] sm:$0xff]
    %v1544 = vld [vmem:[#allocation11 + $0x8] sm:$0xff]
    %v1545 = vld [vmem:[#allocation11 + $0x10] sm:$0xff]
    %v1546 = vld [vmem:[#allocation11 + $0x18] sm:$0xff]
    %v1547 = vld [vmem:[#allocation11 + $0x20] sm:$0xff]
    %v1548 = vld [vmem:[#allocation11 + $0x28] sm:$0xff]
    %v1549 = vld [vmem:[#allocation11 + $0x30] sm:$0xff]
    %v1550 = vld [vmem:[#allocation11 + $0x38] sm:$0xff]
    %v1551 = vld [vmem:[#allocation11 + $0x40] sm:$0xff]
    %v1552 = vld [vmem:[#allocation11 + $0x48] sm:$0xff]
    %v1553 = vld [vmem:[#allocation11 + $0x50] sm:$0xff]
    %v1554 = vld [vmem:[#allocation11 + $0x58] sm:$0xff]
    %v1555 = vld [vmem:[#allocation11 + $0x60] sm:$0xff]
    %v1556 = vld [vmem:[#allocation11 + $0x68] sm:$0xff]
    %v1557 = vld [vmem:[#allocation11 + $0x70] sm:$0xff]
    %v1558 = vld [vmem:[#allocation11 + $0x78] sm:$0xff]
    %v1559 = vld [vmem:[#allocation11 + $0x80] sm:$0xff]
    %v1560 = vld [vmem:[#allocation11 + $0x88] sm:$0xff]
    %v1561 = vld [vmem:[#allocation11 + $0x90] sm:$0xff]
    %v1562 = vld [vmem:[#allocation11 + $0x98] sm:$0xff]
    %v1563 = vld [vmem:[#allocation11 + $0xa0] sm:$0xff]
    %v1564 = vld [vmem:[#allocation11 + $0xa8] sm:$0xff]
    %v1565 = vld [vmem:[#allocation11 + $0xb0] sm:$0xff]
    %v1566 = vld [vmem:[#allocation11 + $0xb8] sm:$0xff]
    %v1567 = vld [vmem:[#allocation11 + $0xc0] sm:$0xff]
    %v1568 = vld [vmem:[#allocation11 + $0xc8] sm:$0xff]
    %v1569 = vld [vmem:[#allocation11 + $0xd0] sm:$0xff]
    %v1570 = vld [vmem:[#allocation11 + $0xd8] sm:$0xff]
    %v1571 = vld [vmem:[#allocation11 + $0xe0] sm:$0xff]
    %v1572 = vld [vmem:[#allocation11 + $0xe8] sm:$0xff]
    %v1573 = vld [vmem:[#allocation11 + $0xf0] sm:$0xff]
    %v1574 = vld [vmem:[#allocation11 + $0xf8] sm:$0xff]
    %v1575 = vld [vmem:[%s6] sm:$0xf]
    %v1577 = vperm.slane %v1575, 0
    %v1578 = vperm.slane %v1575, 1
    %v1579 = vperm.slane %v1575, 2
    %v1580 = vperm.slane %v1575, 3
    %v1617 = vunpack.c.l.b16 %v1543
    %v1618 = vunpack.c.h.b16 %v1543
    %v1619 = vunpack.c.l.b16 %v1544
    %v1620 = vunpack.c.h.b16 %v1544
    %v1621 = vunpack.c.l.b16 %v1545
    %v1622 = vunpack.c.h.b16 %v1545
    %v1623 = vunpack.c.l.b16 %v1546
    %v1624 = vunpack.c.h.b16 %v1546
    %v1625 = vunpack.c.l.b16 %v1547
    %v1626 = vunpack.c.h.b16 %v1547
    %v1627 = vunpack.c.l.b16 %v1548
    %v1628 = vunpack.c.h.b16 %v1548
    %v1629 = vunpack.c.l.b16 %v1549
    %v1630 = vunpack.c.h.b16 %v1549
    %v1631 = vunpack.c.l.b16 %v1550
    %v1632 = vunpack.c.h.b16 %v1550
    %v1633 = vunpack.c.l.b16 %v1551
    %v1634 = vunpack.c.h.b16 %v1551
    %v1635 = vunpack.c.l.b16 %v1552
    %v1636 = vunpack.c.h.b16 %v1552
    %v1637 = vunpack.c.l.b16 %v1553
    %v1638 = vunpack.c.h.b16 %v1553
    %v1639 = vunpack.c.l.b16 %v1554
    %v1640 = vunpack.c.h.b16 %v1554
    %v1641 = vunpack.c.l.b16 %v1555
    %v1642 = vunpack.c.h.b16 %v1555
    %v1643 = vunpack.c.l.b16 %v1556
    %v1644 = vunpack.c.h.b16 %v1556
    %v1645 = vunpack.c.l.b16 %v1557
    %v1646 = vunpack.c.h.b16 %v1557
    %v1647 = vunpack.c.l.b16 %v1558
    %v1648 = vunpack.c.h.b16 %v1558
    %v1649 = vunpack.c.l.b16 %v1559
    %v1650 = vunpack.c.h.b16 %v1559
    %v1651 = vunpack.c.l.b16 %v1560
    %v1652 = vunpack.c.h.b16 %v1560
    %v1653 = vunpack.c.l.b16 %v1561
    %v1654 = vunpack.c.h.b16 %v1561
    %v1655 = vunpack.c.l.b16 %v1562
    %v1656 = vunpack.c.h.b16 %v1562
    %v1657 = vunpack.c.l.b16 %v1563
    %v1658 = vunpack.c.h.b16 %v1563
    %v1659 = vunpack.c.l.b16 %v1564
    %v1660 = vunpack.c.h.b16 %v1564
    %v1661 = vunpack.c.l.b16 %v1565
    %v1662 = vunpack.c.h.b16 %v1565
    %v1663 = vunpack.c.l.b16 %v1566
    %v1664 = vunpack.c.h.b16 %v1566
    %v1665 = vunpack.c.l.b16 %v1567
    %v1666 = vunpack.c.h.b16 %v1567
    %v1667 = vunpack.c.l.b16 %v1568
    %v1668 = vunpack.c.h.b16 %v1568
    %v1669 = vunpack.c.l.b16 %v1569
    %v1670 = vunpack.c.h.b16 %v1569
    %v1671 = vunpack.c.l.b16 %v1570
    %v1672 = vunpack.c.h.b16 %v1570
    %v1673 = vunpack.c.l.b16 %v1571
    %v1674 = vunpack.c.h.b16 %v1571
    %v1675 = vunpack.c.l.b16 %v1572
    %v1676 = vunpack.c.h.b16 %v1572
    %v1677 = vunpack.c.l.b16 %v1573
    %v1678 = vunpack.c.h.b16 %v1573
    %v1679 = vunpack.c.l.b16 %v1574
    %v1680 = vunpack.c.h.b16 %v1574
    %v1681 = vpack.c.b16 %v1621, %v1617
    %v1682 = vpack.c.b16 %v1622, %v1618
    %v1683 = vpack.c.b16 %v1623, %v1619
    %v1684 = vpack.c.b16 %v1624, %v1620
    %v1685 = vpack.c.b16 %v1629, %v1625
    %v1686 = vpack.c.b16 %v1630, %v1626
    %v1687 = vpack.c.b16 %v1631, %v1627
    %v1688 = vpack.c.b16 %v1632, %v1628
    %v1689 = vpack.c.b16 %v1637, %v1633
    %v1690 = vpack.c.b16 %v1638, %v1634
    %v1691 = vpack.c.b16 %v1639, %v1635
    %v1692 = vpack.c.b16 %v1640, %v1636
    %v1693 = vpack.c.b16 %v1645, %v1641
    %v1694 = vpack.c.b16 %v1646, %v1642
    %v1695 = vpack.c.b16 %v1647, %v1643
    %v1696 = vpack.c.b16 %v1648, %v1644
    %v1697 = vpack.c.b16 %v1653, %v1649
    %v1698 = vpack.c.b16 %v1654, %v1650
    %v1699 = vpack.c.b16 %v1655, %v1651
    %v1700 = vpack.c.b16 %v1656, %v1652
    %v1701 = vpack.c.b16 %v1661, %v1657
    %v1702 = vpack.c.b16 %v1662, %v1658
    %v1703 = vpack.c.b16 %v1663, %v1659
    %v1704 = vpack.c.b16 %v1664, %v1660
    %v1705 = vpack.c.b16 %v1669, %v1665
    %v1706 = vpack.c.b16 %v1670, %v1666
    %v1707 = vpack.c.b16 %v1671, %v1667
    %v1708 = vpack.c.b16 %v1672, %v1668
    %v1709 = vpack.c.b16 %v1677, %v1673
    %v1710 = vpack.c.b16 %v1678, %v1674
    %v1711 = vpack.c.b16 %v1679, %v1675
    %v1712 = vpack.c.b16 %v1680, %v1676
    %1745 = vmatpush.bf16.msra.mxu0 %v1709
    %1746 = vmatpush.bf16.msra.mxu0 %v1705
    %1747 = vmatpush.bf16.msra.mxu0 %v1701
    %1748 = vmatpush.bf16.msra.mxu0 %v1697
    %1749 = vmatpush.bf16.msra.mxu0 %v1693
    %1750 = vmatpush.bf16.msra.mxu0 %v1689
    %1751 = vmatpush.bf16.msra.mxu0 %v1685
    %1752 = vmatpush.bf16.msra.mxu0 %v1681
    %1753 = vmatmul.bf16.gmra.mxu0 0
    %v1754 = vpop.f32.mrf.mxu0
    %v1755 = vadd.f32 0.0, %v1754
    %v1756 = vpop.f32.mrf.mxu0
    %1757 = vdwg.mxu0
    %1758 = vmatpush.bf16.msra.mxu0 %v1710
    %1759 = vmatpush.bf16.msra.mxu0 %v1706
    %1760 = vmatpush.bf16.msra.mxu0 %v1702
    %1761 = vmatpush.bf16.msra.mxu0 %v1698
    %1762 = vmatpush.bf16.msra.mxu0 %v1694
    %1763 = vmatpush.bf16.msra.mxu0 %v1690
    %1764 = vmatpush.bf16.msra.mxu0 %v1686
    %1765 = vmatpush.bf16.msra.mxu0 %v1682
    %1766 = vmatmul.bf16.gmra.mxu0 0
    %v1767 = vpop.f32.mrf.mxu0
    %v1768 = vadd.f32 0.0, %v1767
    %v1769 = vpop.f32.mrf.mxu0
    %1770 = vdwg.mxu0
    %1771 = vmatpush.bf16.msra.mxu0 %v1711
    %1772 = vmatpush.bf16.msra.mxu0 %v1707
    %1773 = vmatpush.bf16.msra.mxu0 %v1703
    %1774 = vmatpush.bf16.msra.mxu0 %v1699
    %1775 = vmatpush.bf16.msra.mxu0 %v1695
    %1776 = vmatpush.bf16.msra.mxu0 %v1691
    %1777 = vmatpush.bf16.msra.mxu0 %v1687
    %1778 = vmatpush.bf16.msra.mxu0 %v1683
    %1779 = vmatmul.bf16.gmra.mxu0 0
    %v1780 = vpop.f32.mrf.mxu0
    %v1781 = vadd.f32 0.0, %v1780
    %v1782 = vpop.f32.mrf.mxu0
    %1783 = vdwg.mxu0
    %1784 = vmatpush.bf16.msra.mxu0 %v1712
    %1785 = vmatpush.bf16.msra.mxu0 %v1708
    %1786 = vmatpush.bf16.msra.mxu0 %v1704
    %1787 = vmatpush.bf16.msra.mxu0 %v1700
    %1788 = vmatpush.bf16.msra.mxu0 %v1696
    %1789 = vmatpush.bf16.msra.mxu0 %v1692
    %1790 = vmatpush.bf16.msra.mxu0 %v1688
    %1791 = vmatpush.bf16.msra.mxu0 %v1684
    %1792 = vmatmul.bf16.gmra.mxu0 0
    %v1793 = vpop.f32.mrf.mxu0
    %v1794 = vadd.f32 0.0, %v1793
    %v1795 = vpop.f32.mrf.mxu0
    %1796 = vdwg.mxu0
    %v1829 = vunpack.c.l.b16 %v1479
    %v1830 = vunpack.c.h.b16 %v1479
    %v1831 = vunpack.c.l.b16 %v1480
    %v1832 = vunpack.c.h.b16 %v1480
    %v1833 = vunpack.c.l.b16 %v1481
    %v1834 = vunpack.c.h.b16 %v1481
    %v1835 = vunpack.c.l.b16 %v1482
    %v1836 = vunpack.c.h.b16 %v1482
    %v1837 = vunpack.c.l.b16 %v1483
    %v1838 = vunpack.c.h.b16 %v1483
    %v1839 = vunpack.c.l.b16 %v1484
    %v1840 = vunpack.c.h.b16 %v1484
    %v1841 = vunpack.c.l.b16 %v1485
    %v1842 = vunpack.c.h.b16 %v1485
    %v1843 = vunpack.c.l.b16 %v1486
    %v1844 = vunpack.c.h.b16 %v1486
    %v1845 = vunpack.c.l.b16 %v1487
    %v1846 = vunpack.c.h.b16 %v1487
    %v1847 = vunpack.c.l.b16 %v1488
    %v1848 = vunpack.c.h.b16 %v1488
    %v1849 = vunpack.c.l.b16 %v1489
    %v1850 = vunpack.c.h.b16 %v1489
    %v1851 = vunpack.c.l.b16 %v1490
    %v1852 = vunpack.c.h.b16 %v1490
    %v1853 = vunpack.c.l.b16 %v1491
    %v1854 = vunpack.c.h.b16 %v1491
    %v1855 = vunpack.c.l.b16 %v1492
    %v1856 = vunpack.c.h.b16 %v1492
    %v1857 = vunpack.c.l.b16 %v1493
    %v1858 = vunpack.c.h.b16 %v1493
    %v1859 = vunpack.c.l.b16 %v1494
    %v1860 = vunpack.c.h.b16 %v1494
    %v1861 = vunpack.c.l.b16 %v1495
    %v1862 = vunpack.c.h.b16 %v1495
    %v1863 = vunpack.c.l.b16 %v1496
    %v1864 = vunpack.c.h.b16 %v1496
    %v1865 = vunpack.c.l.b16 %v1497
    %v1866 = vunpack.c.h.b16 %v1497
    %v1867 = vunpack.c.l.b16 %v1498
    %v1868 = vunpack.c.h.b16 %v1498
    %v1869 = vunpack.c.l.b16 %v1499
    %v1870 = vunpack.c.h.b16 %v1499
    %v1871 = vunpack.c.l.b16 %v1500
    %v1872 = vunpack.c.h.b16 %v1500
    %v1873 = vunpack.c.l.b16 %v1501
    %v1874 = vunpack.c.h.b16 %v1501
    %v1875 = vunpack.c.l.b16 %v1502
    %v1876 = vunpack.c.h.b16 %v1502
    %v1877 = vunpack.c.l.b16 %v1503
    %v1878 = vunpack.c.h.b16 %v1503
    %v1879 = vunpack.c.l.b16 %v1504
    %v1880 = vunpack.c.h.b16 %v1504
    %v1881 = vunpack.c.l.b16 %v1505
    %v1882 = vunpack.c.h.b16 %v1505
    %v1883 = vunpack.c.l.b16 %v1506
    %v1884 = vunpack.c.h.b16 %v1506
    %v1885 = vunpack.c.l.b16 %v1507
    %v1886 = vunpack.c.h.b16 %v1507
    %v1887 = vunpack.c.l.b16 %v1508
    %v1888 = vunpack.c.h.b16 %v1508
    %v1889 = vunpack.c.l.b16 %v1509
    %v1890 = vunpack.c.h.b16 %v1509
    %v1891 = vunpack.c.l.b16 %v1510
    %v1892 = vunpack.c.h.b16 %v1510
    %v1893 = vpack.c.b16 %v1833, %v1829
    %v1894 = vpack.c.b16 %v1834, %v1830
    %v1895 = vpack.c.b16 %v1835, %v1831
    %v1896 = vpack.c.b16 %v1836, %v1832
    %v1897 = vpack.c.b16 %v1841, %v1837
    %v1898 = vpack.c.b16 %v1842, %v1838
    %v1899 = vpack.c.b16 %v1843, %v1839
    %v1900 = vpack.c.b16 %v1844, %v1840
    %v1901 = vpack.c.b16 %v1849, %v1845
    %v1902 = vpack.c.b16 %v1850, %v1846
    %v1903 = vpack.c.b16 %v1851, %v1847
    %v1904 = vpack.c.b16 %v1852, %v1848
    %v1905 = vpack.c.b16 %v1857, %v1853
    %v1906 = vpack.c.b16 %v1858, %v1854
    %v1907 = vpack.c.b16 %v1859, %v1855
    %v1908 = vpack.c.b16 %v1860, %v1856
    %v1909 = vpack.c.b16 %v1865, %v1861
    %v1910 = vpack.c.b16 %v1866, %v1862
    %v1911 = vpack.c.b16 %v1867, %v1863
    %v1912 = vpack.c.b16 %v1868, %v1864
    %v1913 = vpack.c.b16 %v1873, %v1869
    %v1914 = vpack.c.b16 %v1874, %v1870
    %v1915 = vpack.c.b16 %v1875, %v1871
    %v1916 = vpack.c.b16 %v1876, %v1872
    %v1917 = vpack.c.b16 %v1881, %v1877
    %v1918 = vpack.c.b16 %v1882, %v1878
    %v1919 = vpack.c.b16 %v1883, %v1879
    %v1920 = vpack.c.b16 %v1884, %v1880
    %v1921 = vpack.c.b16 %v1889, %v1885
    %v1922 = vpack.c.b16 %v1890, %v1886
    %v1923 = vpack.c.b16 %v1891, %v1887
    %v1924 = vpack.c.b16 %v1892, %v1888
    %1957 = vmatpush.bf16.msra.mxu0 %v1921
    %1958 = vmatpush.bf16.msra.mxu0 %v1917
    %1959 = vmatpush.bf16.msra.mxu0 %v1913
    %1960 = vmatpush.bf16.msra.mxu0 %v1909
    %1961 = vmatpush.bf16.msra.mxu0 %v1905
    %1962 = vmatpush.bf16.msra.mxu0 %v1901
    %1963 = vmatpush.bf16.msra.mxu0 %v1897
    %1964 = vmatpush.bf16.msra.mxu0 %v1893
    %1965 = vmatmul.bf16.gmra.mxu0 0
    %v1966 = vpop.f32.mrf.mxu0
    %v1967 = vadd.f32 0.0, %v1966
    %v1968 = vpop.f32.mrf.mxu0
    %1969 = vdwg.mxu0
    %1970 = vmatpush.bf16.msra.mxu0 %v1922
    %1971 = vmatpush.bf16.msra.mxu0 %v1918
    %1972 = vmatpush.bf16.msra.mxu0 %v1914
    %1973 = vmatpush.bf16.msra.mxu0 %v1910
    %1974 = vmatpush.bf16.msra.mxu0 %v1906
    %1975 = vmatpush.bf16.msra.mxu0 %v1902
    %1976 = vmatpush.bf16.msra.mxu0 %v1898
    %1977 = vmatpush.bf16.msra.mxu0 %v1894
    %1978 = vmatmul.bf16.gmra.mxu0 0
    %v1979 = vpop.f32.mrf.mxu0
    %v1980 = vadd.f32 0.0, %v1979
    %v1981 = vpop.f32.mrf.mxu0
    %1982 = vdwg.mxu0
    %1983 = vmatpush.bf16.msra.mxu0 %v1923
    %1984 = vmatpush.bf16.msra.mxu0 %v1919
    %1985 = vmatpush.bf16.msra.mxu0 %v1915
    %1986 = vmatpush.bf16.msra.mxu0 %v1911
    %1987 = vmatpush.bf16.msra.mxu0 %v1907
    %1988 = vmatpush.bf16.msra.mxu0 %v1903
    %1989 = vmatpush.bf16.msra.mxu0 %v1899
    %1990 = vmatpush.bf16.msra.mxu0 %v1895
    %1991 = vmatmul.bf16.gmra.mxu0 0
    %v1992 = vpop.f32.mrf.mxu0
    %v1993 = vadd.f32 0.0, %v1992
    %v1994 = vpop.f32.mrf.mxu0
    %1995 = vdwg.mxu0
    %1996 = vmatpush.bf16.msra.mxu0 %v1924
    %1997 = vmatpush.bf16.msra.mxu0 %v1920
    %1998 = vmatpush.bf16.msra.mxu0 %v1916
    %1999 = vmatpush.bf16.msra.mxu0 %v1912
    %2000 = vmatpush.bf16.msra.mxu0 %v1908
    %2001 = vmatpush.bf16.msra.mxu0 %v1904
    %2002 = vmatpush.bf16.msra.mxu0 %v1900
    %2003 = vmatpush.bf16.msra.mxu0 %v1896
    %2004 = vmatmul.bf16.gmra.mxu0 0
    %v2005 = vpop.f32.mrf.mxu0
    %v2006 = vadd.f32 0.0, %v2005
    %v2007 = vpop.f32.mrf.mxu0
    %2008 = vdwg.mxu0
    %v2009 = vadd.f32 %v1112, %v1967
    %v2010 = vadd.f32 %v1228, %v1980
    %v2011 = vadd.f32 %v1344, %v1993
    %v2012 = vadd.f32 %v1460, %v2006
    %v2013 = vxor.u32 %v2009, 2147483648
    %v2014 = vmul.f32 %v2013, 1.442695
    %v2015 = vpow.pop %v2014
    %v2016 = vadd.f32 %v2015, 1.0
    %v2017 = vrcp.pop %v2016
    %v2018 = vmul.f32 %v2016, %v2017
    %v2019 = vsub.f32 1.0, %v2018
    %v2020 = vmul.f32 %v2017, %v2019
    %v2021 = vadd.f32 %v2017, %v2020
    %vm2022 = vweird.f32 %v2016
    %vm2023 = vweird.f32 %v2017
    %vm2024 = vmor %vm2022, %vm2023
    %v2025 = vsel %vm2024, %v2017, %v2021
    %v2026 = vand.u32 2147483647, %v2016
    %vm2027 = vcmp.eq.f32.partialorder %v2026, 8.507059e+37
    %v2028 = vand.u32 %v2016, 2147483648
    %v2029 = vor.u32 1.1754944e-38, %v2028
    %v2030 = vsel %vm2027, %v2029, %v2025
    %v2031 = vmul.f32 1.0, %v2030
    %v2032 = vxor.u32 %v2010, 2147483648
    %v2033 = vmul.f32 %v2032, 1.442695
    %v2034 = vpow.pop %v2033
    %v2035 = vadd.f32 %v2034, 1.0
    %v2036 = vrcp.pop %v2035
    %v2037 = vmul.f32 %v2035, %v2036
    %v2038 = vsub.f32 1.0, %v2037
    %v2039 = vmul.f32 %v2036, %v2038
    %v2040 = vadd.f32 %v2036, %v2039
    %vm2041 = vweird.f32 %v2035
    %vm2042 = vweird.f32 %v2036
    %vm2043 = vmor %vm2041, %vm2042
    %v2044 = vsel %vm2043, %v2036, %v2040
    %v2045 = vand.u32 2147483647, %v2035
    %vm2046 = vcmp.eq.f32.partialorder %v2045, 8.507059e+37
    %v2047 = vand.u32 %v2035, 2147483648
    %v2048 = vor.u32 1.1754944e-38, %v2047
    %v2049 = vsel %vm2046, %v2048, %v2044
    %v2050 = vmul.f32 1.0, %v2049
    %v2051 = vtanh.pop %v2011
    %v2052 = vxor.u32 %v2012, 2147483648
    %v2053 = vmul.f32 %v2052, 1.442695
    %v2054 = vpow.pop %v2053
    %v2055 = vadd.f32 %v2054, 1.0
    %v2056 = vrcp.pop %v2055
    %v2057 = vmul.f32 %v2055, %v2056
    %v2058 = vsub.f32 1.0, %v2057
    %v2059 = vmul.f32 %v2056, %v2058
    %v2060 = vadd.f32 %v2056, %v2059
    %vm2061 = vweird.f32 %v2055
    %vm2062 = vweird.f32 %v2056
    %vm2063 = vmor %vm2061, %vm2062
    %v2064 = vsel %vm2063, %v2056, %v2060
    %v2065 = vand.u32 2147483647, %v2055
    %vm2066 = vcmp.eq.f32.partialorder %v2065, 8.507059e+37
    %v2067 = vand.u32 %v2055, 2147483648
    %v2068 = vor.u32 1.1754944e-38, %v2067
    %v2069 = vsel %vm2066, %v2068, %v2064
    %v2070 = vmul.f32 1.0, %v2069
    %v2071 = vmul.f32 %v2050, 0.0
    %v2072 = vmul.f32 %v2031, %v2051
    %v2073 = vadd.f32 %v2071, %v2072
    %v2074 = vtanh.pop %v2073
    %v2075 = vmul.f32 %v2070, %v2074
    %v2076 = vpack.c.bf16 %v2075, %v2075
    %v2077 = vadd.f32 %v1577, %v1755
    %v2078 = vadd.f32 %v1578, %v1768
    %v2079 = vadd.f32 %v1579, %v1781
    %v2080 = vadd.f32 %v1580, %v1794
    %v2113 = vunpack.c.l.b16 %v1511
    %v2114 = vunpack.c.h.b16 %v1511
    %v2115 = vunpack.c.l.b16 %v1512
    %v2116 = vunpack.c.h.b16 %v1512
    %v2117 = vunpack.c.l.b16 %v1513
    %v2118 = vunpack.c.h.b16 %v1513
    %v2119 = vunpack.c.l.b16 %v1514
    %v2120 = vunpack.c.h.b16 %v1514
    %v2121 = vunpack.c.l.b16 %v1515
    %v2122 = vunpack.c.h.b16 %v1515
    %v2123 = vunpack.c.l.b16 %v1516
    %v2124 = vunpack.c.h.b16 %v1516
    %v2125 = vunpack.c.l.b16 %v1517
    %v2126 = vunpack.c.h.b16 %v1517
    %v2127 = vunpack.c.l.b16 %v1518
    %v2128 = vunpack.c.h.b16 %v1518
    %v2129 = vunpack.c.l.b16 %v1519
    %v2130 = vunpack.c.h.b16 %v1519
    %v2131 = vunpack.c.l.b16 %v1520
    %v2132 = vunpack.c.h.b16 %v1520
    %v2133 = vunpack.c.l.b16 %v1521
    %v2134 = vunpack.c.h.b16 %v1521
    %v2135 = vunpack.c.l.b16 %v1522
    %v2136 = vunpack.c.h.b16 %v1522
    %v2137 = vunpack.c.l.b16 %v1523
    %v2138 = vunpack.c.h.b16 %v1523
    %v2139 = vunpack.c.l.b16 %v1524
    %v2140 = vunpack.c.h.b16 %v1524
    %v2141 = vunpack.c.l.b16 %v1525
    %v2142 = vunpack.c.h.b16 %v1525
    %v2143 = vunpack.c.l.b16 %v1526
    %v2144 = vunpack.c.h.b16 %v1526
    %v2145 = vunpack.c.l.b16 %v1527
    %v2146 = vunpack.c.h.b16 %v1527
    %v2147 = vunpack.c.l.b16 %v1528
    %v2148 = vunpack.c.h.b16 %v1528
    %v2149 = vunpack.c.l.b16 %v1529
    %v2150 = vunpack.c.h.b16 %v1529
    %v2151 = vunpack.c.l.b16 %v1530
    %v2152 = vunpack.c.h.b16 %v1530
    %v2153 = vunpack.c.l.b16 %v1531
    %v2154 = vunpack.c.h.b16 %v1531
    %v2155 = vunpack.c.l.b16 %v1532
    %v2156 = vunpack.c.h.b16 %v1532
    %v2157 = vunpack.c.l.b16 %v1533
    %v2158 = vunpack.c.h.b16 %v1533
    %v2159 = vunpack.c.l.b16 %v1534
    %v2160 = vunpack.c.h.b16 %v1534
    %v2161 = vunpack.c.l.b16 %v1535
    %v2162 = vunpack.c.h.b16 %v1535
    %v2163 = vunpack.c.l.b16 %v1536
    %v2164 = vunpack.c.h.b16 %v1536
    %v2165 = vunpack.c.l.b16 %v1537
    %v2166 = vunpack.c.h.b16 %v1537
    %v2167 = vunpack.c.l.b16 %v1538
    %v2168 = vunpack.c.h.b16 %v1538
    %v2169 = vunpack.c.l.b16 %v1539
    %v2170 = vunpack.c.h.b16 %v1539
    %v2171 = vunpack.c.l.b16 %v1540
    %v2172 = vunpack.c.h.b16 %v1540
    %v2173 = vunpack.c.l.b16 %v1541
    %v2174 = vunpack.c.h.b16 %v1541
    %v2175 = vunpack.c.l.b16 %v1542
    %v2176 = vunpack.c.h.b16 %v1542
    %v2177 = vpack.c.b16 %v2117, %v2113
    %v2178 = vpack.c.b16 %v2118, %v2114
    %v2179 = vpack.c.b16 %v2119, %v2115
    %v2180 = vpack.c.b16 %v2120, %v2116
    %v2181 = vpack.c.b16 %v2125, %v2121
    %v2182 = vpack.c.b16 %v2126, %v2122
    %v2183 = vpack.c.b16 %v2127, %v2123
    %v2184 = vpack.c.b16 %v2128, %v2124
    %v2185 = vpack.c.b16 %v2133, %v2129
    %v2186 = vpack.c.b16 %v2134, %v2130
    %v2187 = vpack.c.b16 %v2135, %v2131
    %v2188 = vpack.c.b16 %v2136, %v2132
    %v2189 = vpack.c.b16 %v2141, %v2137
    %v2190 = vpack.c.b16 %v2142, %v2138
    %v2191 = vpack.c.b16 %v2143, %v2139
    %v2192 = vpack.c.b16 %v2144, %v2140
    %v2193 = vpack.c.b16 %v2149, %v2145
    %v2194 = vpack.c.b16 %v2150, %v2146
    %v2195 = vpack.c.b16 %v2151, %v2147
    %v2196 = vpack.c.b16 %v2152, %v2148
    %v2197 = vpack.c.b16 %v2157, %v2153
    %v2198 = vpack.c.b16 %v2158, %v2154
    %v2199 = vpack.c.b16 %v2159, %v2155
    %v2200 = vpack.c.b16 %v2160, %v2156
    %v2201 = vpack.c.b16 %v2165, %v2161
    %v2202 = vpack.c.b16 %v2166, %v2162
    %v2203 = vpack.c.b16 %v2167, %v2163
    %v2204 = vpack.c.b16 %v2168, %v2164
    %v2205 = vpack.c.b16 %v2173, %v2169
    %v2206 = vpack.c.b16 %v2174, %v2170
    %v2207 = vpack.c.b16 %v2175, %v2171
    %v2208 = vpack.c.b16 %v2176, %v2172
    %2241 = vmatpush.bf16.msra.mxu0 %v2205
    %2242 = vmatpush.bf16.msra.mxu0 %v2201
    %2243 = vmatpush.bf16.msra.mxu0 %v2197
    %2244 = vmatpush.bf16.msra.mxu0 %v2193
    %2245 = vmatpush.bf16.msra.mxu0 %v2189
    %2246 = vmatpush.bf16.msra.mxu0 %v2185
    %2247 = vmatpush.bf16.msra.mxu0 %v2181
    %2248 = vmatpush.bf16.msra.mxu0 %v2177
    %2249 = vmatmul.bf16.gmra.mxu0 %v2076
    %v2250 = vpop.f32.mrf.mxu0
    %v2251 = vadd.f32 0.0, %v2250
    %v2252 = vpop.f32.mrf.mxu0
    %2253 = vdwg.mxu0
    %2254 = vmatpush.bf16.msra.mxu0 %v2206
    %2255 = vmatpush.bf16.msra.mxu0 %v2202
    %2256 = vmatpush.bf16.msra.mxu0 %v2198
    %2257 = vmatpush.bf16.msra.mxu0 %v2194
    %2258 = vmatpush.bf16.msra.mxu0 %v2190
    %2259 = vmatpush.bf16.msra.mxu0 %v2186
    %2260 = vmatpush.bf16.msra.mxu0 %v2182
    %2261 = vmatpush.bf16.msra.mxu0 %v2178
    %2262 = vmatmul.bf16.gmra.mxu0 %v2076
    %v2263 = vpop.f32.mrf.mxu0
    %v2264 = vadd.f32 0.0, %v2263
    %v2265 = vpop.f32.mrf.mxu0
    %2266 = vdwg.mxu0
    %2267 = vmatpush.bf16.msra.mxu0 %v2207
    %2268 = vmatpush.bf16.msra.mxu0 %v2203
    %2269 = vmatpush.bf16.msra.mxu0 %v2199
    %2270 = vmatpush.bf16.msra.mxu0 %v2195
    %2271 = vmatpush.bf16.msra.mxu0 %v2191
    %2272 = vmatpush.bf16.msra.mxu0 %v2187
    %2273 = vmatpush.bf16.msra.mxu0 %v2183
    %2274 = vmatpush.bf16.msra.mxu0 %v2179
    %2275 = vmatmul.bf16.gmra.mxu0 %v2076
    %v2276 = vpop.f32.mrf.mxu0
    %v2277 = vadd.f32 0.0, %v2276
    %v2278 = vpop.f32.mrf.mxu0
    %2279 = vdwg.mxu0
    %2280 = vmatpush.bf16.msra.mxu0 %v2208
    %2281 = vmatpush.bf16.msra.mxu0 %v2204
    %2282 = vmatpush.bf16.msra.mxu0 %v2200
    %2283 = vmatpush.bf16.msra.mxu0 %v2196
    %2284 = vmatpush.bf16.msra.mxu0 %v2192
    %2285 = vmatpush.bf16.msra.mxu0 %v2188
    %2286 = vmatpush.bf16.msra.mxu0 %v2184
    %2287 = vmatpush.bf16.msra.mxu0 %v2180
    %2288 = vmatmul.bf16.gmra.mxu0 %v2076
    %v2289 = vpop.f32.mrf.mxu0
    %v2290 = vadd.f32 0.0, %v2289
    %v2291 = vpop.f32.mrf.mxu0
    %2292 = vdwg.mxu0
    %v2293 = vadd.f32 %v2077, %v2251
    %v2294 = vadd.f32 %v2078, %v2264
    %v2295 = vadd.f32 %v2079, %v2277
    %v2296 = vadd.f32 %v2080, %v2290
    %v2297 = vxor.u32 %v2293, 2147483648
    %v2298 = vmul.f32 %v2297, 1.442695
    %v2299 = vpow.pop %v2298
    %v2300 = vadd.f32 %v2299, 1.0
    %v2301 = vrcp.pop %v2300
    %v2302 = vmul.f32 %v2300, %v2301
    %v2303 = vsub.f32 1.0, %v2302
    %v2304 = vmul.f32 %v2301, %v2303
    %v2305 = vadd.f32 %v2301, %v2304
    %vm2306 = vweird.f32 %v2300
    %vm2307 = vweird.f32 %v2301
    %vm2308 = vmor %vm2306, %vm2307
    %v2309 = vsel %vm2308, %v2301, %v2305
    %v2310 = vand.u32 2147483647, %v2300
    %vm2311 = vcmp.eq.f32.partialorder %v2310, 8.507059e+37
    %v2312 = vand.u32 %v2300, 2147483648
    %v2313 = vor.u32 1.1754944e-38, %v2312
    %v2314 = vsel %vm2311, %v2313, %v2309
    %v2315 = vmul.f32 1.0, %v2314
    %v2316 = vxor.u32 %v2294, 2147483648
    %v2317 = vmul.f32 %v2316, 1.442695
    %v2318 = vpow.pop %v2317
    %v2319 = vadd.f32 %v2318, 1.0
    %v2320 = vrcp.pop %v2319
    %v2321 = vmul.f32 %v2319, %v2320
    %v2322 = vsub.f32 1.0, %v2321
    %v2323 = vmul.f32 %v2320, %v2322
    %v2324 = vadd.f32 %v2320, %v2323
    %vm2325 = vweird.f32 %v2319
    %vm2326 = vweird.f32 %v2320
    %vm2327 = vmor %vm2325, %vm2326
    %v2328 = vsel %vm2327, %v2320, %v2324
    %v2329 = vand.u32 2147483647, %v2319
    %vm2330 = vcmp.eq.f32.partialorder %v2329, 8.507059e+37
    %v2331 = vand.u32 %v2319, 2147483648
    %v2332 = vor.u32 1.1754944e-38, %v2331
    %v2333 = vsel %vm2330, %v2332, %v2328
    %v2334 = vmul.f32 1.0, %v2333
    %v2335 = vtanh.pop %v2295
    %v2336 = vxor.u32 %v2296, 2147483648
    %v2337 = vmul.f32 %v2336, 1.442695
    %v2338 = vpow.pop %v2337
    %v2339 = vadd.f32 %v2338, 1.0
    %v2340 = vrcp.pop %v2339
    %v2341 = vmul.f32 %v2339, %v2340
    %v2342 = vsub.f32 1.0, %v2341
    %v2343 = vmul.f32 %v2340, %v2342
    %v2344 = vadd.f32 %v2340, %v2343
    %vm2345 = vweird.f32 %v2339
    %vm2346 = vweird.f32 %v2340
    %vm2347 = vmor %vm2345, %vm2346
    %v2348 = vsel %vm2347, %v2340, %v2344
    %v2349 = vand.u32 2147483647, %v2339
    %vm2350 = vcmp.eq.f32.partialorder %v2349, 8.507059e+37
    %v2351 = vand.u32 %v2339, 2147483648
    %v2352 = vor.u32 1.1754944e-38, %v2351
    %v2353 = vsel %vm2350, %v2352, %v2348
    %v2354 = vmul.f32 1.0, %v2353
    %v2355 = vmul.f32 %v2334, 0.0
    %v2356 = vmul.f32 %v2315, %v2335
    %v2357 = vadd.f32 %v2355, %v2356
    %v2358 = vtanh.pop %v2357
    %v2359 = vmul.f32 %v2354, %v2358
    %v2360 = vpack.c.bf16 %v2359, %v2359
    %2361 = vmatpush.bf16.msra.mxu0 %v1709
    %2362 = vmatpush.bf16.msra.mxu0 %v1705
    %2363 = vmatpush.bf16.msra.mxu0 %v1701
    %2364 = vmatpush.bf16.msra.mxu0 %v1697
    %2365 = vmatpush.bf16.msra.mxu0 %v1693
    %2366 = vmatpush.bf16.msra.mxu0 %v1689
    %2367 = vmatpush.bf16.msra.mxu0 %v1685
    %2368 = vmatpush.bf16.msra.mxu0 %v1681
    %2369 = vmatmul.bf16.gmra.mxu0 %v2360
    %v2370 = vpop.f32.mrf.mxu0
    %v2371 = vadd.f32 0.0, %v2370
    %v2372 = vpop.f32.mrf.mxu0
    %2373 = vdwg.mxu0
    %2374 = vmatpush.bf16.msra.mxu0 %v1710
    %2375 = vmatpush.bf16.msra.mxu0 %v1706
    %2376 = vmatpush.bf16.msra.mxu0 %v1702
    %2377 = vmatpush.bf16.msra.mxu0 %v1698
    %2378 = vmatpush.bf16.msra.mxu0 %v1694
    %2379 = vmatpush.bf16.msra.mxu0 %v1690
    %2380 = vmatpush.bf16.msra.mxu0 %v1686
    %2381 = vmatpush.bf16.msra.mxu0 %v1682
    %2382 = vmatmul.bf16.gmra.mxu0 %v2360
    %v2383 = vpop.f32.mrf.mxu0
    %v2384 = vadd.f32 0.0, %v2383
    %v2385 = vpop.f32.mrf.mxu0
    %2386 = vdwg.mxu0
    %2387 = vmatpush.bf16.msra.mxu0 %v1711
    %2388 = vmatpush.bf16.msra.mxu0 %v1707
    %2389 = vmatpush.bf16.msra.mxu0 %v1703
    %2390 = vmatpush.bf16.msra.mxu0 %v1699
    %2391 = vmatpush.bf16.msra.mxu0 %v1695
    %2392 = vmatpush.bf16.msra.mxu0 %v1691
    %2393 = vmatpush.bf16.msra.mxu0 %v1687
    %2394 = vmatpush.bf16.msra.mxu0 %v1683
    %2395 = vmatmul.bf16.gmra.mxu0 %v2360
    %v2396 = vpop.f32.mrf.mxu0
    %v2397 = vadd.f32 0.0, %v2396
    %v2398 = vpop.f32.mrf.mxu0
    %2399 = vdwg.mxu0
    %2400 = vmatpush.bf16.msra.mxu0 %v1712
    %2401 = vmatpush.bf16.msra.mxu0 %v1708
    %2402 = vmatpush.bf16.msra.mxu0 %v1704
    %2403 = vmatpush.bf16.msra.mxu0 %v1700
    %2404 = vmatpush.bf16.msra.mxu0 %v1696
    %2405 = vmatpush.bf16.msra.mxu0 %v1692
    %2406 = vmatpush.bf16.msra.mxu0 %v1688
    %2407 = vmatpush.bf16.msra.mxu0 %v1684
    %2408 = vmatmul.bf16.gmra.mxu0 %v2360
    %v2409 = vpop.f32.mrf.mxu0
    %v2410 = vadd.f32 0.0, %v2409
    %v2411 = vpop.f32.mrf.mxu0
    %2412 = vdwg.mxu0
    %2413 = vmatpush.bf16.msra.mxu0 %v1921
    %2414 = vmatpush.bf16.msra.mxu0 %v1917
    %2415 = vmatpush.bf16.msra.mxu0 %v1913
    %2416 = vmatpush.bf16.msra.mxu0 %v1909
    %2417 = vmatpush.bf16.msra.mxu0 %v1905
    %2418 = vmatpush.bf16.msra.mxu0 %v1901
    %2419 = vmatpush.bf16.msra.mxu0 %v1897
    %2420 = vmatpush.bf16.msra.mxu0 %v1893
    %2421 = vmatmul.bf16.gmra.mxu0 %v2076
    %v2422 = vpop.f32.mrf.mxu0
    %v2423 = vadd.f32 0.0, %v2422
    %v2424 = vpop.f32.mrf.mxu0
    %2425 = vdwg.mxu0
    %2426 = vmatpush.bf16.msra.mxu0 %v1922
    %2427 = vmatpush.bf16.msra.mxu0 %v1918
    %2428 = vmatpush.bf16.msra.mxu0 %v1914
    %2429 = vmatpush.bf16.msra.mxu0 %v1910
    %2430 = vmatpush.bf16.msra.mxu0 %v1906
    %2431 = vmatpush.bf16.msra.mxu0 %v1902
    %2432 = vmatpush.bf16.msra.mxu0 %v1898
    %2433 = vmatpush.bf16.msra.mxu0 %v1894
    %2434 = vmatmul.bf16.gmra.mxu0 %v2076
    %v2435 = vpop.f32.mrf.mxu0
    %v2436 = vadd.f32 0.0, %v2435
    %v2437 = vpop.f32.mrf.mxu0
    %2438 = vdwg.mxu0
    %2439 = vmatpush.bf16.msra.mxu0 %v1923
    %2440 = vmatpush.bf16.msra.mxu0 %v1919
    %2441 = vmatpush.bf16.msra.mxu0 %v1915
    %2442 = vmatpush.bf16.msra.mxu0 %v1911
    %2443 = vmatpush.bf16.msra.mxu0 %v1907
    %2444 = vmatpush.bf16.msra.mxu0 %v1903
    %2445 = vmatpush.bf16.msra.mxu0 %v1899
    %2446 = vmatpush.bf16.msra.mxu0 %v1895
    %2447 = vmatmul.bf16.gmra.mxu0 %v2076
    %v2448 = vpop.f32.mrf.mxu0
    %v2449 = vadd.f32 0.0, %v2448
    %v2450 = vpop.f32.mrf.mxu0
    %2451 = vdwg.mxu0
    %2452 = vmatpush.bf16.msra.mxu0 %v1924
    %2453 = vmatpush.bf16.msra.mxu0 %v1920
    %2454 = vmatpush.bf16.msra.mxu0 %v1916
    %2455 = vmatpush.bf16.msra.mxu0 %v1912
    %2456 = vmatpush.bf16.msra.mxu0 %v1908
    %2457 = vmatpush.bf16.msra.mxu0 %v1904
    %2458 = vmatpush.bf16.msra.mxu0 %v1900
    %2459 = vmatpush.bf16.msra.mxu0 %v1896
    %2460 = vmatmul.bf16.gmra.mxu0 %v2076
    %v2461 = vpop.f32.mrf.mxu0
    %v2462 = vadd.f32 0.0, %v2461
    %v2463 = vpop.f32.mrf.mxu0
    %2464 = vdwg.mxu0
    %v2465 = vadd.f32 %v1114, %v2423
    %v2466 = vadd.f32 %v1230, %v2436
    %v2467 = vadd.f32 %v1346, %v2449
    %v2468 = vadd.f32 %v1462, %v2462
    %v2469 = vxor.u32 %v2465, 2147483648
    %v2470 = vmul.f32 %v2469, 1.442695
    %v2471 = vpow.pop %v2470
    %v2472 = vadd.f32 %v2471, 1.0
    %v2473 = vrcp.pop %v2472
    %v2474 = vmul.f32 %v2472, %v2473
    %v2475 = vsub.f32 1.0, %v2474
    %v2476 = vmul.f32 %v2473, %v2475
    %v2477 = vadd.f32 %v2473, %v2476
    %vm2478 = vweird.f32 %v2472
    %vm2479 = vweird.f32 %v2473
    %vm2480 = vmor %vm2478, %vm2479
    %v2481 = vsel %vm2480, %v2473, %v2477
    %v2482 = vand.u32 2147483647, %v2472
    %vm2483 = vcmp.eq.f32.partialorder %v2482, 8.507059e+37
    %v2484 = vand.u32 %v2472, 2147483648
    %v2485 = vor.u32 1.1754944e-38, %v2484
    %v2486 = vsel %vm2483, %v2485, %v2481
    %v2487 = vmul.f32 1.0, %v2486
    %v2488 = vxor.u32 %v2466, 2147483648
    %v2489 = vmul.f32 %v2488, 1.442695
    %v2490 = vpow.pop %v2489
    %v2491 = vadd.f32 %v2490, 1.0
    %v2492 = vrcp.pop %v2491
    %v2493 = vmul.f32 %v2491, %v2492
    %v2494 = vsub.f32 1.0, %v2493
    %v2495 = vmul.f32 %v2492, %v2494
    %v2496 = vadd.f32 %v2492, %v2495
    %vm2497 = vweird.f32 %v2491
    %vm2498 = vweird.f32 %v2492
    %vm2499 = vmor %vm2497, %vm2498
    %v2500 = vsel %vm2499, %v2492, %v2496
    %v2501 = vand.u32 2147483647, %v2491
    %vm2502 = vcmp.eq.f32.partialorder %v2501, 8.507059e+37
    %v2503 = vand.u32 %v2491, 2147483648
    %v2504 = vor.u32 1.1754944e-38, %v2503
    %v2505 = vsel %vm2502, %v2504, %v2500
    %v2506 = vmul.f32 1.0, %v2505
    %v2507 = vtanh.pop %v2467
    %v2508 = vxor.u32 %v2468, 2147483648
    %v2509 = vmul.f32 %v2508, 1.442695
    %v2510 = vpow.pop %v2509
    %v2511 = vadd.f32 %v2510, 1.0
    %v2512 = vrcp.pop %v2511
    %v2513 = vmul.f32 %v2511, %v2512
    %v2514 = vsub.f32 1.0, %v2513
    %v2515 = vmul.f32 %v2512, %v2514
    %v2516 = vadd.f32 %v2512, %v2515
    %vm2517 = vweird.f32 %v2511
    %vm2518 = vweird.f32 %v2512
    %vm2519 = vmor %vm2517, %vm2518
    %v2520 = vsel %vm2519, %v2512, %v2516
    %v2521 = vand.u32 2147483647, %v2511
    %vm2522 = vcmp.eq.f32.partialorder %v2521, 8.507059e+37
    %v2523 = vand.u32 %v2511, 2147483648
    %v2524 = vor.u32 1.1754944e-38, %v2523
    %v2525 = vsel %vm2522, %v2524, %v2520
    %v2526 = vmul.f32 1.0, %v2525
    %v2527 = vmul.f32 %v2506, %v2073
    %v2528 = vmul.f32 %v2487, %v2507
    %v2529 = vadd.f32 %v2527, %v2528
    %v2530 = vtanh.pop %v2529
    %v2531 = vmul.f32 %v2526, %v2530
    %v2532 = vpack.c.bf16 %v2531, %v2531
    %v2533 = vadd.f32 %v1577, %v2371
    %v2534 = vadd.f32 %v1578, %v2384
    %v2535 = vadd.f32 %v1579, %v2397
    %v2536 = vadd.f32 %v1580, %v2410
    %2537 = vmatpush.bf16.msra.mxu0 %v2205
    %2538 = vmatpush.bf16.msra.mxu0 %v2201
    %2539 = vmatpush.bf16.msra.mxu0 %v2197
    %2540 = vmatpush.bf16.msra.mxu0 %v2193
    %2541 = vmatpush.bf16.msra.mxu0 %v2189
    %2542 = vmatpush.bf16.msra.mxu0 %v2185
    %2543 = vmatpush.bf16.msra.mxu0 %v2181
    %2544 = vmatpush.bf16.msra.mxu0 %v2177
    %2545 = vmatmul.bf16.gmra.mxu0 %v2532
    %v2546 = vpop.f32.mrf.mxu0
    %v2547 = vadd.f32 0.0, %v2546
    %v2548 = vpop.f32.mrf.mxu0
    %2549 = vdwg.mxu0
    %2550 = vmatpush.bf16.msra.mxu0 %v2206
    %2551 = vmatpush.bf16.msra.mxu0 %v2202
    %2552 = vmatpush.bf16.msra.mxu0 %v2198
    %2553 = vmatpush.bf16.msra.mxu0 %v2194
    %2554 = vmatpush.bf16.msra.mxu0 %v2190
    %2555 = vmatpush.bf16.msra.mxu0 %v2186
    %2556 = vmatpush.bf16.msra.mxu0 %v2182
    %2557 = vmatpush.bf16.msra.mxu0 %v2178
    %2558 = vmatmul.bf16.gmra.mxu0 %v2532
    %v2559 = vpop.f32.mrf.mxu0
    %v2560 = vadd.f32 0.0, %v2559
    %v2561 = vpop.f32.mrf.mxu0
    %2562 = vdwg.mxu0
    %2563 = vmatpush.bf16.msra.mxu0 %v2207
    %2564 = vmatpush.bf16.msra.mxu0 %v2203
    %2565 = vmatpush.bf16.msra.mxu0 %v2199
    %2566 = vmatpush.bf16.msra.mxu0 %v2195
    %2567 = vmatpush.bf16.msra.mxu0 %v2191
    %2568 = vmatpush.bf16.msra.mxu0 %v2187
    %2569 = vmatpush.bf16.msra.mxu0 %v2183
    %2570 = vmatpush.bf16.msra.mxu0 %v2179
    %2571 = vmatmul.bf16.gmra.mxu0 %v2532
    %v2572 = vpop.f32.mrf.mxu0
    %v2573 = vadd.f32 0.0, %v2572
    %v2574 = vpop.f32.mrf.mxu0
    %2575 = vdwg.mxu0
    %2576 = vmatpush.bf16.msra.mxu0 %v2208
    %2577 = vmatpush.bf16.msra.mxu0 %v2204
    %2578 = vmatpush.bf16.msra.mxu0 %v2200
    %2579 = vmatpush.bf16.msra.mxu0 %v2196
    %2580 = vmatpush.bf16.msra.mxu0 %v2192
    %2581 = vmatpush.bf16.msra.mxu0 %v2188
    %2582 = vmatpush.bf16.msra.mxu0 %v2184
    %2583 = vmatpush.bf16.msra.mxu0 %v2180
    %2584 = vmatmul.bf16.gmra.mxu0 %v2532
    %v2585 = vpop.f32.mrf.mxu0
    %v2586 = vadd.f32 0.0, %v2585
    %v2587 = vpop.f32.mrf.mxu0
    %2588 = vdwg.mxu0
    %v2589 = vadd.f32 %v2533, %v2547
    %v2590 = vadd.f32 %v2534, %v2560
    %v2591 = vadd.f32 %v2535, %v2573
    %v2592 = vadd.f32 %v2536, %v2586
    %v2593 = vxor.u32 %v2589, 2147483648
    %v2594 = vmul.f32 %v2593, 1.442695
    %v2595 = vpow.pop %v2594
    %v2596 = vadd.f32 %v2595, 1.0
    %v2597 = vrcp.pop %v2596
    %v2598 = vmul.f32 %v2596, %v2597
    %v2599 = vsub.f32 1.0, %v2598
    %v2600 = vmul.f32 %v2597, %v2599
    %v2601 = vadd.f32 %v2597, %v2600
    %vm2602 = vweird.f32 %v2596
    %vm2603 = vweird.f32 %v2597
    %vm2604 = vmor %vm2602, %vm2603
    %v2605 = vsel %vm2604, %v2597, %v2601
    %v2606 = vand.u32 2147483647, %v2596
    %vm2607 = vcmp.eq.f32.partialorder %v2606, 8.507059e+37
    %v2608 = vand.u32 %v2596, 2147483648
    %v2609 = vor.u32 1.1754944e-38, %v2608
    %v2610 = vsel %vm2607, %v2609, %v2605
    %v2611 = vmul.f32 1.0, %v2610
    %v2612 = vxor.u32 %v2590, 2147483648
    %v2613 = vmul.f32 %v2612, 1.442695
    %v2614 = vpow.pop %v2613
    %v2615 = vadd.f32 %v2614, 1.0
    %v2616 = vrcp.pop %v2615
    %v2617 = vmul.f32 %v2615, %v2616
    %v2618 = vsub.f32 1.0, %v2617
    %v2619 = vmul.f32 %v2616, %v2618
    %v2620 = vadd.f32 %v2616, %v2619
    %vm2621 = vweird.f32 %v2615
    %vm2622 = vweird.f32 %v2616
    %vm2623 = vmor %vm2621, %vm2622
    %v2624 = vsel %vm2623, %v2616, %v2620
    %v2625 = vand.u32 2147483647, %v2615
    %vm2626 = vcmp.eq.f32.partialorder %v2625, 8.507059e+37
    %v2627 = vand.u32 %v2615, 2147483648
    %v2628 = vor.u32 1.1754944e-38, %v2627
    %v2629 = vsel %vm2626, %v2628, %v2624
    %v2630 = vmul.f32 1.0, %v2629
    %v2631 = vtanh.pop %v2591
    %v2632 = vxor.u32 %v2592, 2147483648
    %v2633 = vmul.f32 %v2632, 1.442695
    %v2634 = vpow.pop %v2633
    %v2635 = vadd.f32 %v2634, 1.0
    %v2636 = vrcp.pop %v2635
    %v2637 = vmul.f32 %v2635, %v2636
    %v2638 = vsub.f32 1.0, %v2637
    %v2639 = vmul.f32 %v2636, %v2638
    %v2640 = vadd.f32 %v2636, %v2639
    %vm2641 = vweird.f32 %v2635
    %vm2642 = vweird.f32 %v2636
    %vm2643 = vmor %vm2641, %vm2642
    %v2644 = vsel %vm2643, %v2636, %v2640
    %v2645 = vand.u32 2147483647, %v2635
    %vm2646 = vcmp.eq.f32.partialorder %v2645, 8.507059e+37
    %v2647 = vand.u32 %v2635, 2147483648
    %v2648 = vor.u32 1.1754944e-38, %v2647
    %v2649 = vsel %vm2646, %v2648, %v2644
    %v2650 = vmul.f32 1.0, %v2649
    %v2651 = vmul.f32 %v2630, %v2357
    %v2652 = vmul.f32 %v2611, %v2631
    %v2653 = vadd.f32 %v2651, %v2652
    %v2654 = vtanh.pop %v2653
    %v2655 = vmul.f32 %v2650, %v2654
    %v2656 = vpack.c.bf16 %v2655, %v2655
    %2657 = vmatpush.bf16.msra.mxu0 %v1709
    %2658 = vmatpush.bf16.msra.mxu0 %v1705
    %2659 = vmatpush.bf16.msra.mxu0 %v1701
    %2660 = vmatpush.bf16.msra.mxu0 %v1697
    %2661 = vmatpush.bf16.msra.mxu0 %v1693
    %2662 = vmatpush.bf16.msra.mxu0 %v1689
    %2663 = vmatpush.bf16.msra.mxu0 %v1685
    %2664 = vmatpush.bf16.msra.mxu0 %v1681
    %2665 = vmatmul.bf16.gmra.mxu0 %v2656
    %v2666 = vpop.f32.mrf.mxu0
    %v2667 = vadd.f32 0.0, %v2666
    %v2668 = vpop.f32.mrf.mxu0
    %2669 = vdwg.mxu0
    %2670 = vmatpush.bf16.msra.mxu0 %v1710
    %2671 = vmatpush.bf16.msra.mxu0 %v1706
    %2672 = vmatpush.bf16.msra.mxu0 %v1702
    %2673 = vmatpush.bf16.msra.mxu0 %v1698
    %2674 = vmatpush.bf16.msra.mxu0 %v1694
    %2675 = vmatpush.bf16.msra.mxu0 %v1690
    %2676 = vmatpush.bf16.msra.mxu0 %v1686
    %2677 = vmatpush.bf16.msra.mxu0 %v1682
    %2678 = vmatmul.bf16.gmra.mxu0 %v2656
    %v2679 = vpop.f32.mrf.mxu0
    %v2680 = vadd.f32 0.0, %v2679
    %v2681 = vpop.f32.mrf.mxu0
    %2682 = vdwg.mxu0
    %2683 = vmatpush.bf16.msra.mxu0 %v1711
    %2684 = vmatpush.bf16.msra.mxu0 %v1707
    %2685 = vmatpush.bf16.msra.mxu0 %v1703
    %2686 = vmatpush.bf16.msra.mxu0 %v1699
    %2687 = vmatpush.bf16.msra.mxu0 %v1695
    %2688 = vmatpush.bf16.msra.mxu0 %v1691
    %2689 = vmatpush.bf16.msra.mxu0 %v1687
    %2690 = vmatpush.bf16.msra.mxu0 %v1683
    %2691 = vmatmul.bf16.gmra.mxu0 %v2656
    %v2692 = vpop.f32.mrf.mxu0
    %v2693 = vadd.f32 0.0, %v2692
    %v2694 = vpop.f32.mrf.mxu0
    %2695 = vdwg.mxu0
    %2696 = vmatpush.bf16.msra.mxu0 %v1712
    %2697 = vmatpush.bf16.msra.mxu0 %v1708
    %2698 = vmatpush.bf16.msra.mxu0 %v1704
    %2699 = vmatpush.bf16.msra.mxu0 %v1700
    %2700 = vmatpush.bf16.msra.mxu0 %v1696
    %2701 = vmatpush.bf16.msra.mxu0 %v1692
    %2702 = vmatpush.bf16.msra.mxu0 %v1688
    %2703 = vmatpush.bf16.msra.mxu0 %v1684
    %2704 = vmatmul.bf16.gmra.mxu0 %v2656
    %v2705 = vpop.f32.mrf.mxu0
    %v2706 = vadd.f32 0.0, %v2705
    %v2707 = vpop.f32.mrf.mxu0
    %2708 = vdwg.mxu0
    %2709 = vmatpush.bf16.msra.mxu0 %v1921
    %2710 = vmatpush.bf16.msra.mxu0 %v1917
    %2711 = vmatpush.bf16.msra.mxu0 %v1913
    %2712 = vmatpush.bf16.msra.mxu0 %v1909
    %2713 = vmatpush.bf16.msra.mxu0 %v1905
    %2714 = vmatpush.bf16.msra.mxu0 %v1901
    %2715 = vmatpush.bf16.msra.mxu0 %v1897
    %2716 = vmatpush.bf16.msra.mxu0 %v1893
    %2717 = vmatmul.bf16.gmra.mxu0 %v2532
    %v2718 = vpop.f32.mrf.mxu0
    %v2719 = vadd.f32 0.0, %v2718
    %v2720 = vpop.f32.mrf.mxu0
    %2721 = vdwg.mxu0
    %2722 = vmatpush.bf16.msra.mxu0 %v1922
    %2723 = vmatpush.bf16.msra.mxu0 %v1918
    %2724 = vmatpush.bf16.msra.mxu0 %v1914
    %2725 = vmatpush.bf16.msra.mxu0 %v1910
    %2726 = vmatpush.bf16.msra.mxu0 %v1906
    %2727 = vmatpush.bf16.msra.mxu0 %v1902
    %2728 = vmatpush.bf16.msra.mxu0 %v1898
    %2729 = vmatpush.bf16.msra.mxu0 %v1894
    %2730 = vmatmul.bf16.gmra.mxu0 %v2532
    %v2731 = vpop.f32.mrf.mxu0
    %v2732 = vadd.f32 0.0, %v2731
    %v2733 = vpop.f32.mrf.mxu0
    %2734 = vdwg.mxu0
    %2735 = vmatpush.bf16.msra.mxu0 %v1923
    %2736 = vmatpush.bf16.msra.mxu0 %v1919
    %2737 = vmatpush.bf16.msra.mxu0 %v1915
    %2738 = vmatpush.bf16.msra.mxu0 %v1911
    %2739 = vmatpush.bf16.msra.mxu0 %v1907
    %2740 = vmatpush.bf16.msra.mxu0 %v1903
    %2741 = vmatpush.bf16.msra.mxu0 %v1899
    %2742 = vmatpush.bf16.msra.mxu0 %v1895
    %2743 = vmatmul.bf16.gmra.mxu0 %v2532
    %v2744 = vpop.f32.mrf.mxu0
    %v2745 = vadd.f32 0.0, %v2744
    %v2746 = vpop.f32.mrf.mxu0
    %2747 = vdwg.mxu0
    %2748 = vmatpush.bf16.msra.mxu0 %v1924
    %2749 = vmatpush.bf16.msra.mxu0 %v1920
    %2750 = vmatpush.bf16.msra.mxu0 %v1916
    %2751 = vmatpush.bf16.msra.mxu0 %v1912
    %2752 = vmatpush.bf16.msra.mxu0 %v1908
    %2753 = vmatpush.bf16.msra.mxu0 %v1904
    %2754 = vmatpush.bf16.msra.mxu0 %v1900
    %2755 = vmatpush.bf16.msra.mxu0 %v1896
    %2756 = vmatmul.bf16.gmra.mxu0 %v2532
    %v2757 = vpop.f32.mrf.mxu0
    %v2758 = vadd.f32 0.0, %v2757
    %v2759 = vpop.f32.mrf.mxu0
    %2760 = vdwg.mxu0
    %v2761 = vadd.f32 %v1117, %v2719
    %v2762 = vadd.f32 %v1233, %v2732
    %v2763 = vadd.f32 %v1349, %v2745
    %v2764 = vadd.f32 %v1465, %v2758
    %v2765 = vxor.u32 %v2761, 2147483648
    %v2766 = vmul.f32 %v2765, 1.442695
    %v2767 = vpow.pop %v2766
    %v2768 = vadd.f32 %v2767, 1.0
    %v2769 = vrcp.pop %v2768
    %v2770 = vmul.f32 %v2768, %v2769
    %v2771 = vsub.f32 1.0, %v2770
    %v2772 = vmul.f32 %v2769, %v2771
    %v2773 = vadd.f32 %v2769, %v2772
    %vm2774 = vweird.f32 %v2768
    %vm2775 = vweird.f32 %v2769
    %vm2776 = vmor %vm2774, %vm2775
    %v2777 = vsel %vm2776, %v2769, %v2773
    %v2778 = vand.u32 2147483647, %v2768
    %vm2779 = vcmp.eq.f32.partialorder %v2778, 8.507059e+37
    %v2780 = vand.u32 %v2768, 2147483648
    %v2781 = vor.u32 1.1754944e-38, %v2780
    %v2782 = vsel %vm2779, %v2781, %v2777
    %v2783 = vmul.f32 1.0, %v2782
    %v2784 = vxor.u32 %v2762, 2147483648
    %v2785 = vmul.f32 %v2784, 1.442695
    %v2786 = vpow.pop %v2785
    %v2787 = vadd.f32 %v2786, 1.0
    %v2788 = vrcp.pop %v2787
    %v2789 = vmul.f32 %v2787, %v2788
    %v2790 = vsub.f32 1.0, %v2789
    %v2791 = vmul.f32 %v2788, %v2790
    %v2792 = vadd.f32 %v2788, %v2791
    %vm2793 = vweird.f32 %v2787
    %vm2794 = vweird.f32 %v2788
    %vm2795 = vmor %vm2793, %vm2794
    %v2796 = vsel %vm2795, %v2788, %v2792
    %v2797 = vand.u32 2147483647, %v2787
    %vm2798 = vcmp.eq.f32.partialorder %v2797, 8.507059e+37
    %v2799 = vand.u32 %v2787, 2147483648
    %v2800 = vor.u32 1.1754944e-38, %v2799
    %v2801 = vsel %vm2798, %v2800, %v2796
    %v2802 = vmul.f32 1.0, %v2801
    %v2803 = vtanh.pop %v2763
    %v2804 = vxor.u32 %v2764, 2147483648
    %v2805 = vmul.f32 %v2804, 1.442695
    %v2806 = vpow.pop %v2805
    %v2807 = vadd.f32 %v2806, 1.0
    %v2808 = vrcp.pop %v2807
    %v2809 = vmul.f32 %v2807, %v2808
    %v2810 = vsub.f32 1.0, %v2809
    %v2811 = vmul.f32 %v2808, %v2810
    %v2812 = vadd.f32 %v2808, %v2811
    %vm2813 = vweird.f32 %v2807
    %vm2814 = vweird.f32 %v2808
    %vm2815 = vmor %vm2813, %vm2814
    %v2816 = vsel %vm2815, %v2808, %v2812
    %v2817 = vand.u32 2147483647, %v2807
    %vm2818 = vcmp.eq.f32.partialorder %v2817, 8.507059e+37
    %v2819 = vand.u32 %v2807, 2147483648
    %v2820 = vor.u32 1.1754944e-38, %v2819
    %v2821 = vsel %vm2818, %v2820, %v2816
    %v2822 = vmul.f32 1.0, %v2821
    %v2823 = vmul.f32 %v2802, %v2529
    %v2824 = vmul.f32 %v2783, %v2803
    %v2825 = vadd.f32 %v2823, %v2824
    %v2826 = vtanh.pop %v2825
    %v2827 = vmul.f32 %v2822, %v2826
    %v2828 = vpack.c.bf16 %v2827, %v2827
    %v2829 = vadd.f32 %v1577, %v2667
    %v2830 = vadd.f32 %v1578, %v2680
    %v2831 = vadd.f32 %v1579, %v2693
    %v2832 = vadd.f32 %v1580, %v2706
    %2833 = vmatpush.bf16.msra.mxu0 %v2205
    %2834 = vmatpush.bf16.msra.mxu0 %v2201
    %2835 = vmatpush.bf16.msra.mxu0 %v2197
    %2836 = vmatpush.bf16.msra.mxu0 %v2193
    %2837 = vmatpush.bf16.msra.mxu0 %v2189
    %2838 = vmatpush.bf16.msra.mxu0 %v2185
    %2839 = vmatpush.bf16.msra.mxu0 %v2181
    %2840 = vmatpush.bf16.msra.mxu0 %v2177
    %2841 = vmatmul.bf16.gmra.mxu0 %v2828
    %v2842 = vpop.f32.mrf.mxu0
    %v2843 = vadd.f32 0.0, %v2842
    %v2844 = vpop.f32.mrf.mxu0
    %2845 = vdwg.mxu0
    %2846 = vmatpush.bf16.msra.mxu0 %v2206
    %2847 = vmatpush.bf16.msra.mxu0 %v2202
    %2848 = vmatpush.bf16.msra.mxu0 %v2198
    %2849 = vmatpush.bf16.msra.mxu0 %v2194
    %2850 = vmatpush.bf16.msra.mxu0 %v2190
    %2851 = vmatpush.bf16.msra.mxu0 %v2186
    %2852 = vmatpush.bf16.msra.mxu0 %v2182
    %2853 = vmatpush.bf16.msra.mxu0 %v2178
    %2854 = vmatmul.bf16.gmra.mxu0 %v2828
    %v2855 = vpop.f32.mrf.mxu0
    %v2856 = vadd.f32 0.0, %v2855
    %v2857 = vpop.f32.mrf.mxu0
    %2858 = vdwg.mxu0
    %2859 = vmatpush.bf16.msra.mxu0 %v2207
    %2860 = vmatpush.bf16.msra.mxu0 %v2203
    %2861 = vmatpush.bf16.msra.mxu0 %v2199
    %2862 = vmatpush.bf16.msra.mxu0 %v2195
    %2863 = vmatpush.bf16.msra.mxu0 %v2191
    %2864 = vmatpush.bf16.msra.mxu0 %v2187
    %2865 = vmatpush.bf16.msra.mxu0 %v2183
    %2866 = vmatpush.bf16.msra.mxu0 %v2179
    %2867 = vmatmul.bf16.gmra.mxu0 %v2828
    %v2868 = vpop.f32.mrf.mxu0
    %v2869 = vadd.f32 0.0, %v2868
    %v2870 = vpop.f32.mrf.mxu0
    %2871 = vdwg.mxu0
    %2872 = vmatpush.bf16.msra.mxu0 %v2208
    %2873 = vmatpush.bf16.msra.mxu0 %v2204
    %2874 = vmatpush.bf16.msra.mxu0 %v2200
    %2875 = vmatpush.bf16.msra.mxu0 %v2196
    %2876 = vmatpush.bf16.msra.mxu0 %v2192
    %2877 = vmatpush.bf16.msra.mxu0 %v2188
    %2878 = vmatpush.bf16.msra.mxu0 %v2184
    %2879 = vmatpush.bf16.msra.mxu0 %v2180
    %2880 = vmatmul.bf16.gmra.mxu0 %v2828
    %v2881 = vpop.f32.mrf.mxu0
    %v2882 = vadd.f32 0.0, %v2881
    %v2883 = vpop.f32.mrf.mxu0
    %2884 = vdwg.mxu0
    %v2885 = vadd.f32 %v2829, %v2843
    %v2886 = vadd.f32 %v2830, %v2856
    %v2887 = vadd.f32 %v2831, %v2869
    %v2888 = vadd.f32 %v2832, %v2882
    %v2889 = vxor.u32 %v2885, 2147483648
    %v2890 = vmul.f32 %v2889, 1.442695
    %v2891 = vpow.pop %v2890
    %v2892 = vadd.f32 %v2891, 1.0
    %v2893 = vrcp.pop %v2892
    %v2894 = vmul.f32 %v2892, %v2893
    %v2895 = vsub.f32 1.0, %v2894
    %v2896 = vmul.f32 %v2893, %v2895
    %v2897 = vadd.f32 %v2893, %v2896
    %vm2898 = vweird.f32 %v2892
    %vm2899 = vweird.f32 %v2893
    %vm2900 = vmor %vm2898, %vm2899
    %v2901 = vsel %vm2900, %v2893, %v2897
    %v2902 = vand.u32 2147483647, %v2892
    %vm2903 = vcmp.eq.f32.partialorder %v2902, 8.507059e+37
    %v2904 = vand.u32 %v2892, 2147483648
    %v2905 = vor.u32 1.1754944e-38, %v2904
    %v2906 = vsel %vm2903, %v2905, %v2901
    %v2907 = vmul.f32 1.0, %v2906
    %v2908 = vxor.u32 %v2886, 2147483648
    %v2909 = vmul.f32 %v2908, 1.442695
    %v2910 = vpow.pop %v2909
    %v2911 = vadd.f32 %v2910, 1.0
    %v2912 = vrcp.pop %v2911
    %v2913 = vmul.f32 %v2911, %v2912
    %v2914 = vsub.f32 1.0, %v2913
    %v2915 = vmul.f32 %v2912, %v2914
    %v2916 = vadd.f32 %v2912, %v2915
    %vm2917 = vweird.f32 %v2911
    %vm2918 = vweird.f32 %v2912
    %vm2919 = vmor %vm2917, %vm2918
    %v2920 = vsel %vm2919, %v2912, %v2916
    %v2921 = vand.u32 2147483647, %v2911
    %vm2922 = vcmp.eq.f32.partialorder %v2921, 8.507059e+37
    %v2923 = vand.u32 %v2911, 2147483648
    %v2924 = vor.u32 1.1754944e-38, %v2923
    %v2925 = vsel %vm2922, %v2924, %v2920
    %v2926 = vmul.f32 1.0, %v2925
    %v2927 = vtanh.pop %v2887
    %v2928 = vxor.u32 %v2888, 2147483648
    %v2929 = vmul.f32 %v2928, 1.442695
    %v2930 = vpow.pop %v2929
    %v2931 = vadd.f32 %v2930, 1.0
    %v2932 = vrcp.pop %v2931
    %v2933 = vmul.f32 %v2931, %v2932
    %v2934 = vsub.f32 1.0, %v2933
    %v2935 = vmul.f32 %v2932, %v2934
    %v2936 = vadd.f32 %v2932, %v2935
    %vm2937 = vweird.f32 %v2931
    %vm2938 = vweird.f32 %v2932
    %vm2939 = vmor %vm2937, %vm2938
    %v2940 = vsel %vm2939, %v2932, %v2936
    %v2941 = vand.u32 2147483647, %v2931
    %vm2942 = vcmp.eq.f32.partialorder %v2941, 8.507059e+37
    %v2943 = vand.u32 %v2931, 2147483648
    %v2944 = vor.u32 1.1754944e-38, %v2943
    %v2945 = vsel %vm2942, %v2944, %v2940
    %v2946 = vmul.f32 1.0, %v2945
    %v2947 = vmul.f32 %v2926, %v2653
    %v2948 = vmul.f32 %v2907, %v2927
    %v2949 = vadd.f32 %v2947, %v2948
    %v2950 = vtanh.pop %v2949
    %v2951 = vmul.f32 %v2946, %v2950
    %v2952 = vpack.c.bf16 %v2951, %v2951
    %2953 = vmatpush.bf16.msra.mxu0 %v1709
    %2954 = vmatpush.bf16.msra.mxu0 %v1705
    %2955 = vmatpush.bf16.msra.mxu0 %v1701
    %2956 = vmatpush.bf16.msra.mxu0 %v1697
    %2957 = vmatpush.bf16.msra.mxu0 %v1693
    %2958 = vmatpush.bf16.msra.mxu0 %v1689
    %2959 = vmatpush.bf16.msra.mxu0 %v1685
    %2960 = vmatpush.bf16.msra.mxu0 %v1681
    %2961 = vmatmul.bf16.gmra.mxu0 %v2952
    %v2962 = vpop.f32.mrf.mxu0
    %v2963 = vadd.f32 0.0, %v2962
    %v2964 = vpop.f32.mrf.mxu0
    %2965 = vdwg.mxu0
    %2966 = vmatpush.bf16.msra.mxu0 %v1710
    %2967 = vmatpush.bf16.msra.mxu0 %v1706
    %2968 = vmatpush.bf16.msra.mxu0 %v1702
    %2969 = vmatpush.bf16.msra.mxu0 %v1698
    %2970 = vmatpush.bf16.msra.mxu0 %v1694
    %2971 = vmatpush.bf16.msra.mxu0 %v1690
    %2972 = vmatpush.bf16.msra.mxu0 %v1686
    %2973 = vmatpush.bf16.msra.mxu0 %v1682
    %2974 = vmatmul.bf16.gmra.mxu0 %v2952
    %v2975 = vpop.f32.mrf.mxu0
    %v2976 = vadd.f32 0.0, %v2975
    %v2977 = vpop.f32.mrf.mxu0
    %2978 = vdwg.mxu0
    %2979 = vmatpush.bf16.msra.mxu0 %v1711
    %2980 = vmatpush.bf16.msra.mxu0 %v1707
    %2981 = vmatpush.bf16.msra.mxu0 %v1703
    %2982 = vmatpush.bf16.msra.mxu0 %v1699
    %2983 = vmatpush.bf16.msra.mxu0 %v1695
    %2984 = vmatpush.bf16.msra.mxu0 %v1691
    %2985 = vmatpush.bf16.msra.mxu0 %v1687
    %2986 = vmatpush.bf16.msra.mxu0 %v1683
    %2987 = vmatmul.bf16.gmra.mxu0 %v2952
    %v2988 = vpop.f32.mrf.mxu0
    %v2989 = vadd.f32 0.0, %v2988
    %v2990 = vpop.f32.mrf.mxu0
    %2991 = vdwg.mxu0
    %2992 = vmatpush.bf16.msra.mxu0 %v1712
    %2993 = vmatpush.bf16.msra.mxu0 %v1708
    %2994 = vmatpush.bf16.msra.mxu0 %v1704
    %2995 = vmatpush.bf16.msra.mxu0 %v1700
    %2996 = vmatpush.bf16.msra.mxu0 %v1696
    %2997 = vmatpush.bf16.msra.mxu0 %v1692
    %2998 = vmatpush.bf16.msra.mxu0 %v1688
    %2999 = vmatpush.bf16.msra.mxu0 %v1684
    %3000 = vmatmul.bf16.gmra.mxu0 %v2952
    %v3001 = vpop.f32.mrf.mxu0
    %v3002 = vadd.f32 0.0, %v3001
    %v3003 = vpop.f32.mrf.mxu0
    %3004 = vdwg.mxu0
    %3005 = vmatpush.bf16.msra.mxu0 %v1921
    %3006 = vmatpush.bf16.msra.mxu0 %v1917
    %3007 = vmatpush.bf16.msra.mxu0 %v1913
    %3008 = vmatpush.bf16.msra.mxu0 %v1909
    %3009 = vmatpush.bf16.msra.mxu0 %v1905
    %3010 = vmatpush.bf16.msra.mxu0 %v1901
    %3011 = vmatpush.bf16.msra.mxu0 %v1897
    %3012 = vmatpush.bf16.msra.mxu0 %v1893
    %3013 = vmatmul.bf16.gmra.mxu0 %v2828
    %v3014 = vpop.f32.mrf.mxu0
    %v3015 = vadd.f32 0.0, %v3014
    %v3016 = vpop.f32.mrf.mxu0
    %3017 = vdwg.mxu0
    %3018 = vmatpush.bf16.msra.mxu0 %v1922
    %3019 = vmatpush.bf16.msra.mxu0 %v1918
    %3020 = vmatpush.bf16.msra.mxu0 %v1914
    %3021 = vmatpush.bf16.msra.mxu0 %v1910
    %3022 = vmatpush.bf16.msra.mxu0 %v1906
    %3023 = vmatpush.bf16.msra.mxu0 %v1902
    %3024 = vmatpush.bf16.msra.mxu0 %v1898
    %3025 = vmatpush.bf16.msra.mxu0 %v1894
    %3026 = vmatmul.bf16.gmra.mxu0 %v2828
    %v3027 = vpop.f32.mrf.mxu0
    %v3028 = vadd.f32 0.0, %v3027
    %v3029 = vpop.f32.mrf.mxu0
    %3030 = vdwg.mxu0
    %3031 = vmatpush.bf16.msra.mxu0 %v1923
    %3032 = vmatpush.bf16.msra.mxu0 %v1919
    %3033 = vmatpush.bf16.msra.mxu0 %v1915
    %3034 = vmatpush.bf16.msra.mxu0 %v1911
    %3035 = vmatpush.bf16.msra.mxu0 %v1907
    %3036 = vmatpush.bf16.msra.mxu0 %v1903
    %3037 = vmatpush.bf16.msra.mxu0 %v1899
    %3038 = vmatpush.bf16.msra.mxu0 %v1895
    %3039 = vmatmul.bf16.gmra.mxu0 %v2828
    %v3040 = vpop.f32.mrf.mxu0
    %v3041 = vadd.f32 0.0, %v3040
    %v3042 = vpop.f32.mrf.mxu0
    %3043 = vdwg.mxu0
    %3044 = vmatpush.bf16.msra.mxu0 %v1924
    %3045 = vmatpush.bf16.msra.mxu0 %v1920
    %3046 = vmatpush.bf16.msra.mxu0 %v1916
    %3047 = vmatpush.bf16.msra.mxu0 %v1912
    %3048 = vmatpush.bf16.msra.mxu0 %v1908
    %3049 = vmatpush.bf16.msra.mxu0 %v1904
    %3050 = vmatpush.bf16.msra.mxu0 %v1900
    %3051 = vmatpush.bf16.msra.mxu0 %v1896
    %3052 = vmatmul.bf16.gmra.mxu0 %v2828
    %v3053 = vpop.f32.mrf.mxu0
    %v3054 = vadd.f32 0.0, %v3053
    %v3055 = vpop.f32.mrf.mxu0
    %3056 = vdwg.mxu0
    %v3057 = vadd.f32 %v1119, %v3015
    %v3058 = vadd.f32 %v1235, %v3028
    %v3059 = vadd.f32 %v1351, %v3041
    %v3060 = vadd.f32 %v1467, %v3054
    %v3061 = vxor.u32 %v3057, 2147483648
    %v3062 = vmul.f32 %v3061, 1.442695
    %v3063 = vpow.pop %v3062
    %v3064 = vadd.f32 %v3063, 1.0
    %v3065 = vrcp.pop %v3064
    %v3066 = vmul.f32 %v3064, %v3065
    %v3067 = vsub.f32 1.0, %v3066
    %v3068 = vmul.f32 %v3065, %v3067
    %v3069 = vadd.f32 %v3065, %v3068
    %vm3070 = vweird.f32 %v3064
    %vm3071 = vweird.f32 %v3065
    %vm3072 = vmor %vm3070, %vm3071
    %v3073 = vsel %vm3072, %v3065, %v3069
    %v3074 = vand.u32 2147483647, %v3064
    %vm3075 = vcmp.eq.f32.partialorder %v3074, 8.507059e+37
    %v3076 = vand.u32 %v3064, 2147483648
    %v3077 = vor.u32 1.1754944e-38, %v3076
    %v3078 = vsel %vm3075, %v3077, %v3073
    %v3079 = vmul.f32 1.0, %v3078
    %v3080 = vxor.u32 %v3058, 2147483648
    %v3081 = vmul.f32 %v3080, 1.442695
    %v3082 = vpow.pop %v3081
    %v3083 = vadd.f32 %v3082, 1.0
    %v3084 = vrcp.pop %v3083
    %v3085 = vmul.f32 %v3083, %v3084
    %v3086 = vsub.f32 1.0, %v3085
    %v3087 = vmul.f32 %v3084, %v3086
    %v3088 = vadd.f32 %v3084, %v3087
    %vm3089 = vweird.f32 %v3083
    %vm3090 = vweird.f32 %v3084
    %vm3091 = vmor %vm3089, %vm3090
    %v3092 = vsel %vm3091, %v3084, %v3088
    %v3093 = vand.u32 2147483647, %v3083
    %vm3094 = vcmp.eq.f32.partialorder %v3093, 8.507059e+37
    %v3095 = vand.u32 %v3083, 2147483648
    %v3096 = vor.u32 1.1754944e-38, %v3095
    %v3097 = vsel %vm3094, %v3096, %v3092
    %v3098 = vmul.f32 1.0, %v3097
    %v3099 = vtanh.pop %v3059
    %v3100 = vxor.u32 %v3060, 2147483648
    %v3101 = vmul.f32 %v3100, 1.442695
    %v3102 = vpow.pop %v3101
    %v3103 = vadd.f32 %v3102, 1.0
    %v3104 = vrcp.pop %v3103
    %v3105 = vmul.f32 %v3103, %v3104
    %v3106 = vsub.f32 1.0, %v3105
    %v3107 = vmul.f32 %v3104, %v3106
    %v3108 = vadd.f32 %v3104, %v3107
    %vm3109 = vweird.f32 %v3103
    %vm3110 = vweird.f32 %v3104
    %vm3111 = vmor %vm3109, %vm3110
    %v3112 = vsel %vm3111, %v3104, %v3108
    %v3113 = vand.u32 2147483647, %v3103
    %vm3114 = vcmp.eq.f32.partialorder %v3113, 8.507059e+37
    %v3115 = vand.u32 %v3103, 2147483648
    %v3116 = vor.u32 1.1754944e-38, %v3115
    %v3117 = vsel %vm3114, %v3116, %v3112
    %v3118 = vmul.f32 1.0, %v3117
    %v3119 = vmul.f32 %v3098, %v2825
    %v3120 = vmul.f32 %v3079, %v3099
    %v3121 = vadd.f32 %v3119, %v3120
    %v3122 = vtanh.pop %v3121
    %v3123 = vmul.f32 %v3118, %v3122
    %v3124 = vpack.c.bf16 %v3123, %v3123
    %v3125 = vadd.f32 %v1577, %v2963
    %v3126 = vadd.f32 %v1578, %v2976
    %v3127 = vadd.f32 %v1579, %v2989
    %v3128 = vadd.f32 %v1580, %v3002
    %3129 = vmatpush.bf16.msra.mxu0 %v2205
    %3130 = vmatpush.bf16.msra.mxu0 %v2201
    %3131 = vmatpush.bf16.msra.mxu0 %v2197
    %3132 = vmatpush.bf16.msra.mxu0 %v2193
    %3133 = vmatpush.bf16.msra.mxu0 %v2189
    %3134 = vmatpush.bf16.msra.mxu0 %v2185
    %3135 = vmatpush.bf16.msra.mxu0 %v2181
    %3136 = vmatpush.bf16.msra.mxu0 %v2177
    %3137 = vmatmul.bf16.gmra.mxu0 %v3124
    %v3138 = vpop.f32.mrf.mxu0
    %v3139 = vadd.f32 0.0, %v3138
    %v3140 = vpop.f32.mrf.mxu0
    %3141 = vdwg.mxu0
    %3142 = vmatpush.bf16.msra.mxu0 %v2206
    %3143 = vmatpush.bf16.msra.mxu0 %v2202
    %3144 = vmatpush.bf16.msra.mxu0 %v2198
    %3145 = vmatpush.bf16.msra.mxu0 %v2194
    %3146 = vmatpush.bf16.msra.mxu0 %v2190
    %3147 = vmatpush.bf16.msra.mxu0 %v2186
    %3148 = vmatpush.bf16.msra.mxu0 %v2182
    %3149 = vmatpush.bf16.msra.mxu0 %v2178
    %3150 = vmatmul.bf16.gmra.mxu0 %v3124
    %v3151 = vpop.f32.mrf.mxu0
    %v3152 = vadd.f32 0.0, %v3151
    %v3153 = vpop.f32.mrf.mxu0
    %3154 = vdwg.mxu0
    %3155 = vmatpush.bf16.msra.mxu0 %v2207
    %3156 = vmatpush.bf16.msra.mxu0 %v2203
    %3157 = vmatpush.bf16.msra.mxu0 %v2199
    %3158 = vmatpush.bf16.msra.mxu0 %v2195
    %3159 = vmatpush.bf16.msra.mxu0 %v2191
    %3160 = vmatpush.bf16.msra.mxu0 %v2187
    %3161 = vmatpush.bf16.msra.mxu0 %v2183
    %3162 = vmatpush.bf16.msra.mxu0 %v2179
    %3163 = vmatmul.bf16.gmra.mxu0 %v3124
    %v3164 = vpop.f32.mrf.mxu0
    %v3165 = vadd.f32 0.0, %v3164
    %v3166 = vpop.f32.mrf.mxu0
    %3167 = vdwg.mxu0
    %3168 = vmatpush.bf16.msra.mxu0 %v2208
    %3169 = vmatpush.bf16.msra.mxu0 %v2204
    %3170 = vmatpush.bf16.msra.mxu0 %v2200
    %3171 = vmatpush.bf16.msra.mxu0 %v2196
    %3172 = vmatpush.bf16.msra.mxu0 %v2192
    %3173 = vmatpush.bf16.msra.mxu0 %v2188
    %3174 = vmatpush.bf16.msra.mxu0 %v2184
    %3175 = vmatpush.bf16.msra.mxu0 %v2180
    %3176 = vmatmul.bf16.gmra.mxu0 %v3124
    %v3177 = vpop.f32.mrf.mxu0
    %v3178 = vadd.f32 0.0, %v3177
    %v3179 = vpop.f32.mrf.mxu0
    %3180 = vdwg.mxu0
    %v3181 = vadd.f32 %v3125, %v3139
    %v3182 = vadd.f32 %v3126, %v3152
    %v3183 = vadd.f32 %v3127, %v3165
    %v3184 = vadd.f32 %v3128, %v3178
    %v3185 = vxor.u32 %v3181, 2147483648
    %v3186 = vmul.f32 %v3185, 1.442695
    %v3187 = vpow.pop %v3186
    %v3188 = vadd.f32 %v3187, 1.0
    %v3189 = vrcp.pop %v3188
    %v3190 = vmul.f32 %v3188, %v3189
    %v3191 = vsub.f32 1.0, %v3190
    %v3192 = vmul.f32 %v3189, %v3191
    %v3193 = vadd.f32 %v3189, %v3192
    %vm3194 = vweird.f32 %v3188
    %vm3195 = vweird.f32 %v3189
    %vm3196 = vmor %vm3194, %vm3195
    %v3197 = vsel %vm3196, %v3189, %v3193
    %v3198 = vand.u32 2147483647, %v3188
    %vm3199 = vcmp.eq.f32.partialorder %v3198, 8.507059e+37
    %v3200 = vand.u32 %v3188, 2147483648
    %v3201 = vor.u32 1.1754944e-38, %v3200
    %v3202 = vsel %vm3199, %v3201, %v3197
    %v3203 = vmul.f32 1.0, %v3202
    %v3204 = vxor.u32 %v3182, 2147483648
    %v3205 = vmul.f32 %v3204, 1.442695
    %v3206 = vpow.pop %v3205
    %v3207 = vadd.f32 %v3206, 1.0
    %v3208 = vrcp.pop %v3207
    %v3209 = vmul.f32 %v3207, %v3208
    %v3210 = vsub.f32 1.0, %v3209
    %v3211 = vmul.f32 %v3208, %v3210
    %v3212 = vadd.f32 %v3208, %v3211
    %vm3213 = vweird.f32 %v3207
    %vm3214 = vweird.f32 %v3208
    %vm3215 = vmor %vm3213, %vm3214
    %v3216 = vsel %vm3215, %v3208, %v3212
    %v3217 = vand.u32 2147483647, %v3207
    %vm3218 = vcmp.eq.f32.partialorder %v3217, 8.507059e+37
    %v3219 = vand.u32 %v3207, 2147483648
    %v3220 = vor.u32 1.1754944e-38, %v3219
    %v3221 = vsel %vm3218, %v3220, %v3216
    %v3222 = vmul.f32 1.0, %v3221
    %v3223 = vtanh.pop %v3183
    %v3224 = vxor.u32 %v3184, 2147483648
    %v3225 = vmul.f32 %v3224, 1.442695
    %v3226 = vpow.pop %v3225
    %v3227 = vadd.f32 %v3226, 1.0
    %v3228 = vrcp.pop %v3227
    %v3229 = vmul.f32 %v3227, %v3228
    %v3230 = vsub.f32 1.0, %v3229
    %v3231 = vmul.f32 %v3228, %v3230
    %v3232 = vadd.f32 %v3228, %v3231
    %vm3233 = vweird.f32 %v3227
    %vm3234 = vweird.f32 %v3228
    %vm3235 = vmor %vm3233, %vm3234
    %v3236 = vsel %vm3235, %v3228, %v3232
    %v3237 = vand.u32 2147483647, %v3227
    %vm3238 = vcmp.eq.f32.partialorder %v3237, 8.507059e+37
    %v3239 = vand.u32 %v3227, 2147483648
    %v3240 = vor.u32 1.1754944e-38, %v3239
    %v3241 = vsel %vm3238, %v3240, %v3236
    %v3242 = vmul.f32 1.0, %v3241
    %v3243 = vmul.f32 %v3222, %v2949
    %v3244 = vmul.f32 %v3203, %v3223
    %v3245 = vadd.f32 %v3243, %v3244
    %v3246 = vtanh.pop %v3245
    %v3247 = vmul.f32 %v3242, %v3246
    %v3248 = vpack.c.bf16 %v3247, %v3247
    %3249 = vmatpush.bf16.msra.mxu0 %v1709
    %3250 = vmatpush.bf16.msra.mxu0 %v1705
    %3251 = vmatpush.bf16.msra.mxu0 %v1701
    %3252 = vmatpush.bf16.msra.mxu0 %v1697
    %3253 = vmatpush.bf16.msra.mxu0 %v1693
    %3254 = vmatpush.bf16.msra.mxu0 %v1689
    %3255 = vmatpush.bf16.msra.mxu0 %v1685
    %3256 = vmatpush.bf16.msra.mxu0 %v1681
    %3257 = vmatmul.bf16.gmra.mxu0 %v3248
    %v3258 = vpop.f32.mrf.mxu0
    %v3259 = vadd.f32 0.0, %v3258
    %v3260 = vpop.f32.mrf.mxu0
    %3261 = vdwg.mxu0
    %3262 = vmatpush.bf16.msra.mxu0 %v1710
    %3263 = vmatpush.bf16.msra.mxu0 %v1706
    %3264 = vmatpush.bf16.msra.mxu0 %v1702
    %3265 = vmatpush.bf16.msra.mxu0 %v1698
    %3266 = vmatpush.bf16.msra.mxu0 %v1694
    %3267 = vmatpush.bf16.msra.mxu0 %v1690
    %3268 = vmatpush.bf16.msra.mxu0 %v1686
    %3269 = vmatpush.bf16.msra.mxu0 %v1682
    %3270 = vmatmul.bf16.gmra.mxu0 %v3248
    %v3271 = vpop.f32.mrf.mxu0
    %v3272 = vadd.f32 0.0, %v3271
    %v3273 = vpop.f32.mrf.mxu0
    %3274 = vdwg.mxu0
    %3275 = vmatpush.bf16.msra.mxu0 %v1711
    %3276 = vmatpush.bf16.msra.mxu0 %v1707
    %3277 = vmatpush.bf16.msra.mxu0 %v1703
    %3278 = vmatpush.bf16.msra.mxu0 %v1699
    %3279 = vmatpush.bf16.msra.mxu0 %v1695
    %3280 = vmatpush.bf16.msra.mxu0 %v1691
    %3281 = vmatpush.bf16.msra.mxu0 %v1687
    %3282 = vmatpush.bf16.msra.mxu0 %v1683
    %3283 = vmatmul.bf16.gmra.mxu0 %v3248
    %v3284 = vpop.f32.mrf.mxu0
    %v3285 = vadd.f32 0.0, %v3284
    %v3286 = vpop.f32.mrf.mxu0
    %3287 = vdwg.mxu0
    %3288 = vmatpush.bf16.msra.mxu0 %v1712
    %3289 = vmatpush.bf16.msra.mxu0 %v1708
    %3290 = vmatpush.bf16.msra.mxu0 %v1704
    %3291 = vmatpush.bf16.msra.mxu0 %v1700
    %3292 = vmatpush.bf16.msra.mxu0 %v1696
    %3293 = vmatpush.bf16.msra.mxu0 %v1692
    %3294 = vmatpush.bf16.msra.mxu0 %v1688
    %3295 = vmatpush.bf16.msra.mxu0 %v1684
    %3296 = vmatmul.bf16.gmra.mxu0 %v3248
    %v3297 = vpop.f32.mrf.mxu0
    %v3298 = vadd.f32 0.0, %v3297
    %v3299 = vpop.f32.mrf.mxu0
    %3300 = vdwg.mxu0
    %3301 = vmatpush.bf16.msra.mxu0 %v1921
    %3302 = vmatpush.bf16.msra.mxu0 %v1917
    %3303 = vmatpush.bf16.msra.mxu0 %v1913
    %3304 = vmatpush.bf16.msra.mxu0 %v1909
    %3305 = vmatpush.bf16.msra.mxu0 %v1905
    %3306 = vmatpush.bf16.msra.mxu0 %v1901
    %3307 = vmatpush.bf16.msra.mxu0 %v1897
    %3308 = vmatpush.bf16.msra.mxu0 %v1893
    %3309 = vmatmul.bf16.gmra.mxu0 %v3124
    %v3310 = vpop.f32.mrf.mxu0
    %v3311 = vadd.f32 0.0, %v3310
    %v3312 = vpop.f32.mrf.mxu0
    %3313 = vdwg.mxu0
    %3314 = vmatpush.bf16.msra.mxu0 %v1922
    %3315 = vmatpush.bf16.msra.mxu0 %v1918
    %3316 = vmatpush.bf16.msra.mxu0 %v1914
    %3317 = vmatpush.bf16.msra.mxu0 %v1910
    %3318 = vmatpush.bf16.msra.mxu0 %v1906
    %3319 = vmatpush.bf16.msra.mxu0 %v1902
    %3320 = vmatpush.bf16.msra.mxu0 %v1898
    %3321 = vmatpush.bf16.msra.mxu0 %v1894
    %3322 = vmatmul.bf16.gmra.mxu0 %v3124
    %v3323 = vpop.f32.mrf.mxu0
    %v3324 = vadd.f32 0.0, %v3323
    %v3325 = vpop.f32.mrf.mxu0
    %3326 = vdwg.mxu0
    %3327 = vmatpush.bf16.msra.mxu0 %v1923
    %3328 = vmatpush.bf16.msra.mxu0 %v1919
    %3329 = vmatpush.bf16.msra.mxu0 %v1915
    %3330 = vmatpush.bf16.msra.mxu0 %v1911
    %3331 = vmatpush.bf16.msra.mxu0 %v1907
    %3332 = vmatpush.bf16.msra.mxu0 %v1903
    %3333 = vmatpush.bf16.msra.mxu0 %v1899
    %3334 = vmatpush.bf16.msra.mxu0 %v1895
    %3335 = vmatmul.bf16.gmra.mxu0 %v3124
    %v3336 = vpop.f32.mrf.mxu0
    %v3337 = vadd.f32 0.0, %v3336
    %v3338 = vpop.f32.mrf.mxu0
    %3339 = vdwg.mxu0
    %3340 = vmatpush.bf16.msra.mxu0 %v1924
    %3341 = vmatpush.bf16.msra.mxu0 %v1920
    %3342 = vmatpush.bf16.msra.mxu0 %v1916
    %3343 = vmatpush.bf16.msra.mxu0 %v1912
    %3344 = vmatpush.bf16.msra.mxu0 %v1908
    %3345 = vmatpush.bf16.msra.mxu0 %v1904
    %3346 = vmatpush.bf16.msra.mxu0 %v1900
    %3347 = vmatpush.bf16.msra.mxu0 %v1896
    %3348 = vmatmul.bf16.gmra.mxu0 %v3124
    %v3349 = vpop.f32.mrf.mxu0
    %v3350 = vadd.f32 0.0, %v3349
    %v3351 = vpop.f32.mrf.mxu0
    %3352 = vdwg.mxu0
    %v3353 = vadd.f32 %v1122, %v3311
    %v3354 = vadd.f32 %v1238, %v3324
    %v3355 = vadd.f32 %v1354, %v3337
    %v3356 = vadd.f32 %v1470, %v3350
    %v3357 = vxor.u32 %v3353, 2147483648
    %v3358 = vmul.f32 %v3357, 1.442695
    %v3359 = vpow.pop %v3358
    %v3360 = vadd.f32 %v3359, 1.0
    %v3361 = vrcp.pop %v3360
    %v3362 = vmul.f32 %v3360, %v3361
    %v3363 = vsub.f32 1.0, %v3362
    %v3364 = vmul.f32 %v3361, %v3363
    %v3365 = vadd.f32 %v3361, %v3364
    %vm3366 = vweird.f32 %v3360
    %vm3367 = vweird.f32 %v3361
    %vm3368 = vmor %vm3366, %vm3367
    %v3369 = vsel %vm3368, %v3361, %v3365
    %v3370 = vand.u32 2147483647, %v3360
    %vm3371 = vcmp.eq.f32.partialorder %v3370, 8.507059e+37
    %v3372 = vand.u32 %v3360, 2147483648
    %v3373 = vor.u32 1.1754944e-38, %v3372
    %v3374 = vsel %vm3371, %v3373, %v3369
    %v3375 = vmul.f32 1.0, %v3374
    %v3376 = vxor.u32 %v3354, 2147483648
    %v3377 = vmul.f32 %v3376, 1.442695
    %v3378 = vpow.pop %v3377
    %v3379 = vadd.f32 %v3378, 1.0
    %v3380 = vrcp.pop %v3379
    %v3381 = vmul.f32 %v3379, %v3380
    %v3382 = vsub.f32 1.0, %v3381
    %v3383 = vmul.f32 %v3380, %v3382
    %v3384 = vadd.f32 %v3380, %v3383
    %vm3385 = vweird.f32 %v3379
    %vm3386 = vweird.f32 %v3380
    %vm3387 = vmor %vm3385, %vm3386
    %v3388 = vsel %vm3387, %v3380, %v3384
    %v3389 = vand.u32 2147483647, %v3379
    %vm3390 = vcmp.eq.f32.partialorder %v3389, 8.507059e+37
    %v3391 = vand.u32 %v3379, 2147483648
    %v3392 = vor.u32 1.1754944e-38, %v3391
    %v3393 = vsel %vm3390, %v3392, %v3388
    %v3394 = vmul.f32 1.0, %v3393
    %v3395 = vtanh.pop %v3355
    %v3396 = vxor.u32 %v3356, 2147483648
    %v3397 = vmul.f32 %v3396, 1.442695
    %v3398 = vpow.pop %v3397
    %v3399 = vadd.f32 %v3398, 1.0
    %v3400 = vrcp.pop %v3399
    %v3401 = vmul.f32 %v3399, %v3400
    %v3402 = vsub.f32 1.0, %v3401
    %v3403 = vmul.f32 %v3400, %v3402
    %v3404 = vadd.f32 %v3400, %v3403
    %vm3405 = vweird.f32 %v3399
    %vm3406 = vweird.f32 %v3400
    %vm3407 = vmor %vm3405, %vm3406
    %v3408 = vsel %vm3407, %v3400, %v3404
    %v3409 = vand.u32 2147483647, %v3399
    %vm3410 = vcmp.eq.f32.partialorder %v3409, 8.507059e+37
    %v3411 = vand.u32 %v3399, 2147483648
    %v3412 = vor.u32 1.1754944e-38, %v3411
    %v3413 = vsel %vm3410, %v3412, %v3408
    %v3414 = vmul.f32 1.0, %v3413
    %v3415 = vmul.f32 %v3394, %v3121
    %v3416 = vmul.f32 %v3375, %v3395
    %v3417 = vadd.f32 %v3415, %v3416
    %v3418 = vtanh.pop %v3417
    %v3419 = vmul.f32 %v3414, %v3418
    %v3420 = vpack.c.bf16 %v3419, %v3419
    %v3421 = vadd.f32 %v1577, %v3259
    %v3422 = vadd.f32 %v1578, %v3272
    %v3423 = vadd.f32 %v1579, %v3285
    %v3424 = vadd.f32 %v1580, %v3298
    %3425 = vmatpush.bf16.msra.mxu0 %v2205
    %3426 = vmatpush.bf16.msra.mxu0 %v2201
    %3427 = vmatpush.bf16.msra.mxu0 %v2197
    %3428 = vmatpush.bf16.msra.mxu0 %v2193
    %3429 = vmatpush.bf16.msra.mxu0 %v2189
    %3430 = vmatpush.bf16.msra.mxu0 %v2185
    %3431 = vmatpush.bf16.msra.mxu0 %v2181
    %3432 = vmatpush.bf16.msra.mxu0 %v2177
    %3433 = vmatmul.bf16.gmra.mxu0 %v3420
    %v3434 = vpop.f32.mrf.mxu0
    %v3435 = vadd.f32 0.0, %v3434
    %v3436 = vpop.f32.mrf.mxu0
    %3437 = vdwg.mxu0
    %3438 = vmatpush.bf16.msra.mxu0 %v2206
    %3439 = vmatpush.bf16.msra.mxu0 %v2202
    %3440 = vmatpush.bf16.msra.mxu0 %v2198
    %3441 = vmatpush.bf16.msra.mxu0 %v2194
    %3442 = vmatpush.bf16.msra.mxu0 %v2190
    %3443 = vmatpush.bf16.msra.mxu0 %v2186
    %3444 = vmatpush.bf16.msra.mxu0 %v2182
    %3445 = vmatpush.bf16.msra.mxu0 %v2178
    %3446 = vmatmul.bf16.gmra.mxu0 %v3420
    %v3447 = vpop.f32.mrf.mxu0
    %v3448 = vadd.f32 0.0, %v3447
    %v3449 = vpop.f32.mrf.mxu0
    %3450 = vdwg.mxu0
    %3451 = vmatpush.bf16.msra.mxu0 %v2207
    %3452 = vmatpush.bf16.msra.mxu0 %v2203
    %3453 = vmatpush.bf16.msra.mxu0 %v2199
    %3454 = vmatpush.bf16.msra.mxu0 %v2195
    %3455 = vmatpush.bf16.msra.mxu0 %v2191
    %3456 = vmatpush.bf16.msra.mxu0 %v2187
    %3457 = vmatpush.bf16.msra.mxu0 %v2183
    %3458 = vmatpush.bf16.msra.mxu0 %v2179
    %3459 = vmatmul.bf16.gmra.mxu0 %v3420
    %v3460 = vpop.f32.mrf.mxu0
    %v3461 = vadd.f32 0.0, %v3460
    %v3462 = vpop.f32.mrf.mxu0
    %3463 = vdwg.mxu0
    %3464 = vmatpush.bf16.msra.mxu0 %v2208
    %3465 = vmatpush.bf16.msra.mxu0 %v2204
    %3466 = vmatpush.bf16.msra.mxu0 %v2200
    %3467 = vmatpush.bf16.msra.mxu0 %v2196
    %3468 = vmatpush.bf16.msra.mxu0 %v2192
    %3469 = vmatpush.bf16.msra.mxu0 %v2188
    %3470 = vmatpush.bf16.msra.mxu0 %v2184
    %3471 = vmatpush.bf16.msra.mxu0 %v2180
    %3472 = vmatmul.bf16.gmra.mxu0 %v3420
    %v3473 = vpop.f32.mrf.mxu0
    %v3474 = vadd.f32 0.0, %v3473
    %v3475 = vpop.f32.mrf.mxu0
    %3476 = vdwg.mxu0
    %v3477 = vadd.f32 %v3421, %v3435
    %v3478 = vadd.f32 %v3422, %v3448
    %v3479 = vadd.f32 %v3423, %v3461
    %v3480 = vadd.f32 %v3424, %v3474
    %v3481 = vxor.u32 %v3477, 2147483648
    %v3482 = vmul.f32 %v3481, 1.442695
    %v3483 = vpow.pop %v3482
    %v3484 = vadd.f32 %v3483, 1.0
    %v3485 = vrcp.pop %v3484
    %v3486 = vmul.f32 %v3484, %v3485
    %v3487 = vsub.f32 1.0, %v3486
    %v3488 = vmul.f32 %v3485, %v3487
    %v3489 = vadd.f32 %v3485, %v3488
    %vm3490 = vweird.f32 %v3484
    %vm3491 = vweird.f32 %v3485
    %vm3492 = vmor %vm3490, %vm3491
    %v3493 = vsel %vm3492, %v3485, %v3489
    %v3494 = vand.u32 2147483647, %v3484
    %vm3495 = vcmp.eq.f32.partialorder %v3494, 8.507059e+37
    %v3496 = vand.u32 %v3484, 2147483648
    %v3497 = vor.u32 1.1754944e-38, %v3496
    %v3498 = vsel %vm3495, %v3497, %v3493
    %v3499 = vmul.f32 1.0, %v3498
    %v3500 = vxor.u32 %v3478, 2147483648
    %v3501 = vmul.f32 %v3500, 1.442695
    %v3502 = vpow.pop %v3501
    %v3503 = vadd.f32 %v3502, 1.0
    %v3504 = vrcp.pop %v3503
    %v3505 = vmul.f32 %v3503, %v3504
    %v3506 = vsub.f32 1.0, %v3505
    %v3507 = vmul.f32 %v3504, %v3506
    %v3508 = vadd.f32 %v3504, %v3507
    %vm3509 = vweird.f32 %v3503
    %vm3510 = vweird.f32 %v3504
    %vm3511 = vmor %vm3509, %vm3510
    %v3512 = vsel %vm3511, %v3504, %v3508
    %v3513 = vand.u32 2147483647, %v3503
    %vm3514 = vcmp.eq.f32.partialorder %v3513, 8.507059e+37
    %v3515 = vand.u32 %v3503, 2147483648
    %v3516 = vor.u32 1.1754944e-38, %v3515
    %v3517 = vsel %vm3514, %v3516, %v3512
    %v3518 = vmul.f32 1.0, %v3517
    %v3519 = vtanh.pop %v3479
    %v3520 = vxor.u32 %v3480, 2147483648
    %v3521 = vmul.f32 %v3520, 1.442695
    %v3522 = vpow.pop %v3521
    %v3523 = vadd.f32 %v3522, 1.0
    %v3524 = vrcp.pop %v3523
    %v3525 = vmul.f32 %v3523, %v3524
    %v3526 = vsub.f32 1.0, %v3525
    %v3527 = vmul.f32 %v3524, %v3526
    %v3528 = vadd.f32 %v3524, %v3527
    %vm3529 = vweird.f32 %v3523
    %vm3530 = vweird.f32 %v3524
    %vm3531 = vmor %vm3529, %vm3530
    %v3532 = vsel %vm3531, %v3524, %v3528
    %v3533 = vand.u32 2147483647, %v3523
    %vm3534 = vcmp.eq.f32.partialorder %v3533, 8.507059e+37
    %v3535 = vand.u32 %v3523, 2147483648
    %v3536 = vor.u32 1.1754944e-38, %v3535
    %v3537 = vsel %vm3534, %v3536, %v3532
    %v3538 = vmul.f32 1.0, %v3537
    %v3539 = vmul.f32 %v3518, %v3245
    %v3540 = vmul.f32 %v3499, %v3519
    %v3541 = vadd.f32 %v3539, %v3540
    %v3542 = vtanh.pop %v3541
    %v3543 = vmul.f32 %v3538, %v3542
    %v3544 = vpack.c.bf16 %v3543, %v3543
    %3545 = vmatpush.bf16.msra.mxu0 %v1709
    %3546 = vmatpush.bf16.msra.mxu0 %v1705
    %3547 = vmatpush.bf16.msra.mxu0 %v1701
    %3548 = vmatpush.bf16.msra.mxu0 %v1697
    %3549 = vmatpush.bf16.msra.mxu0 %v1693
    %3550 = vmatpush.bf16.msra.mxu0 %v1689
    %3551 = vmatpush.bf16.msra.mxu0 %v1685
    %3552 = vmatpush.bf16.msra.mxu0 %v1681
    %3553 = vmatmul.bf16.gmra.mxu0 %v3544
    %v3554 = vpop.f32.mrf.mxu0
    %v3555 = vadd.f32 0.0, %v3554
    %v3556 = vpop.f32.mrf.mxu0
    %3557 = vdwg.mxu0
    %3558 = vmatpush.bf16.msra.mxu0 %v1710
    %3559 = vmatpush.bf16.msra.mxu0 %v1706
    %3560 = vmatpush.bf16.msra.mxu0 %v1702
    %3561 = vmatpush.bf16.msra.mxu0 %v1698
    %3562 = vmatpush.bf16.msra.mxu0 %v1694
    %3563 = vmatpush.bf16.msra.mxu0 %v1690
    %3564 = vmatpush.bf16.msra.mxu0 %v1686
    %3565 = vmatpush.bf16.msra.mxu0 %v1682
    %3566 = vmatmul.bf16.gmra.mxu0 %v3544
    %v3567 = vpop.f32.mrf.mxu0
    %v3568 = vadd.f32 0.0, %v3567
    %v3569 = vpop.f32.mrf.mxu0
    %3570 = vdwg.mxu0
    %3571 = vmatpush.bf16.msra.mxu0 %v1711
    %3572 = vmatpush.bf16.msra.mxu0 %v1707
    %3573 = vmatpush.bf16.msra.mxu0 %v1703
    %3574 = vmatpush.bf16.msra.mxu0 %v1699
    %3575 = vmatpush.bf16.msra.mxu0 %v1695
    %3576 = vmatpush.bf16.msra.mxu0 %v1691
    %3577 = vmatpush.bf16.msra.mxu0 %v1687
    %3578 = vmatpush.bf16.msra.mxu0 %v1683
    %3579 = vmatmul.bf16.gmra.mxu0 %v3544
    %v3580 = vpop.f32.mrf.mxu0
    %v3581 = vadd.f32 0.0, %v3580
    %v3582 = vpop.f32.mrf.mxu0
    %3583 = vdwg.mxu0
    %3584 = vmatpush.bf16.msra.mxu0 %v1712
    %3585 = vmatpush.bf16.msra.mxu0 %v1708
    %3586 = vmatpush.bf16.msra.mxu0 %v1704
    %3587 = vmatpush.bf16.msra.mxu0 %v1700
    %3588 = vmatpush.bf16.msra.mxu0 %v1696
    %3589 = vmatpush.bf16.msra.mxu0 %v1692
    %3590 = vmatpush.bf16.msra.mxu0 %v1688
    %3591 = vmatpush.bf16.msra.mxu0 %v1684
    %3592 = vmatmul.bf16.gmra.mxu0 %v3544
    %v3593 = vpop.f32.mrf.mxu0
    %v3594 = vadd.f32 0.0, %v3593
    %v3595 = vpop.f32.mrf.mxu0
    %3596 = vdwg.mxu0
    %3597 = vmatpush.bf16.msra.mxu0 %v1921
    %3598 = vmatpush.bf16.msra.mxu0 %v1917
    %3599 = vmatpush.bf16.msra.mxu0 %v1913
    %3600 = vmatpush.bf16.msra.mxu0 %v1909
    %3601 = vmatpush.bf16.msra.mxu0 %v1905
    %3602 = vmatpush.bf16.msra.mxu0 %v1901
    %3603 = vmatpush.bf16.msra.mxu0 %v1897
    %3604 = vmatpush.bf16.msra.mxu0 %v1893
    %3605 = vmatmul.bf16.gmra.mxu0 %v3420
    %v3606 = vpop.f32.mrf.mxu0
    %v3607 = vadd.f32 0.0, %v3606
    %v3608 = vpop.f32.mrf.mxu0
    %3609 = vdwg.mxu0
    %3610 = vmatpush.bf16.msra.mxu0 %v1922
    %3611 = vmatpush.bf16.msra.mxu0 %v1918
    %3612 = vmatpush.bf16.msra.mxu0 %v1914
    %3613 = vmatpush.bf16.msra.mxu0 %v1910
    %3614 = vmatpush.bf16.msra.mxu0 %v1906
    %3615 = vmatpush.bf16.msra.mxu0 %v1902
    %3616 = vmatpush.bf16.msra.mxu0 %v1898
    %3617 = vmatpush.bf16.msra.mxu0 %v1894
    %3618 = vmatmul.bf16.gmra.mxu0 %v3420
    %v3619 = vpop.f32.mrf.mxu0
    %v3620 = vadd.f32 0.0, %v3619
    %v3621 = vpop.f32.mrf.mxu0
    %3622 = vdwg.mxu0
    %3623 = vmatpush.bf16.msra.mxu0 %v1923
    %3624 = vmatpush.bf16.msra.mxu0 %v1919
    %3625 = vmatpush.bf16.msra.mxu0 %v1915
    %3626 = vmatpush.bf16.msra.mxu0 %v1911
    %3627 = vmatpush.bf16.msra.mxu0 %v1907
    %3628 = vmatpush.bf16.msra.mxu0 %v1903
    %3629 = vmatpush.bf16.msra.mxu0 %v1899
    %3630 = vmatpush.bf16.msra.mxu0 %v1895
    %3631 = vmatmul.bf16.gmra.mxu0 %v3420
    %v3632 = vpop.f32.mrf.mxu0
    %v3633 = vadd.f32 0.0, %v3632
    %v3634 = vpop.f32.mrf.mxu0
    %3635 = vdwg.mxu0
    %3636 = vmatpush.bf16.msra.mxu0 %v1924
    %3637 = vmatpush.bf16.msra.mxu0 %v1920
    %3638 = vmatpush.bf16.msra.mxu0 %v1916
    %3639 = vmatpush.bf16.msra.mxu0 %v1912
    %3640 = vmatpush.bf16.msra.mxu0 %v1908
    %3641 = vmatpush.bf16.msra.mxu0 %v1904
    %3642 = vmatpush.bf16.msra.mxu0 %v1900
    %3643 = vmatpush.bf16.msra.mxu0 %v1896
    %3644 = vmatmul.bf16.gmra.mxu0 %v3420
    %v3645 = vpop.f32.mrf.mxu0
    %v3646 = vadd.f32 0.0, %v3645
    %v3647 = vpop.f32.mrf.mxu0
    %3648 = vdwg.mxu0
    %v3649 = vadd.f32 %v1124, %v3607
    %v3650 = vadd.f32 %v1240, %v3620
    %v3651 = vadd.f32 %v1356, %v3633
    %v3652 = vadd.f32 %v1472, %v3646
    %v3653 = vxor.u32 %v3649, 2147483648
    %v3654 = vmul.f32 %v3653, 1.442695
    %v3655 = vpow.pop %v3654
    %v3656 = vadd.f32 %v3655, 1.0
    %v3657 = vrcp.pop %v3656
    %v3658 = vmul.f32 %v3656, %v3657
    %v3659 = vsub.f32 1.0, %v3658
    %v3660 = vmul.f32 %v3657, %v3659
    %v3661 = vadd.f32 %v3657, %v3660
    %vm3662 = vweird.f32 %v3656
    %vm3663 = vweird.f32 %v3657
    %vm3664 = vmor %vm3662, %vm3663
    %v3665 = vsel %vm3664, %v3657, %v3661
    %v3666 = vand.u32 2147483647, %v3656
    %vm3667 = vcmp.eq.f32.partialorder %v3666, 8.507059e+37
    %v3668 = vand.u32 %v3656, 2147483648
    %v3669 = vor.u32 1.1754944e-38, %v3668
    %v3670 = vsel %vm3667, %v3669, %v3665
    %v3671 = vmul.f32 1.0, %v3670
    %v3672 = vxor.u32 %v3650, 2147483648
    %v3673 = vmul.f32 %v3672, 1.442695
    %v3674 = vpow.pop %v3673
    %v3675 = vadd.f32 %v3674, 1.0
    %v3676 = vrcp.pop %v3675
    %v3677 = vmul.f32 %v3675, %v3676
    %v3678 = vsub.f32 1.0, %v3677
    %v3679 = vmul.f32 %v3676, %v3678
    %v3680 = vadd.f32 %v3676, %v3679
    %vm3681 = vweird.f32 %v3675
    %vm3682 = vweird.f32 %v3676
    %vm3683 = vmor %vm3681, %vm3682
    %v3684 = vsel %vm3683, %v3676, %v3680
    %v3685 = vand.u32 2147483647, %v3675
    %vm3686 = vcmp.eq.f32.partialorder %v3685, 8.507059e+37
    %v3687 = vand.u32 %v3675, 2147483648
    %v3688 = vor.u32 1.1754944e-38, %v3687
    %v3689 = vsel %vm3686, %v3688, %v3684
    %v3690 = vmul.f32 1.0, %v3689
    %v3691 = vtanh.pop %v3651
    %v3692 = vxor.u32 %v3652, 2147483648
    %v3693 = vmul.f32 %v3692, 1.442695
    %v3694 = vpow.pop %v3693
    %v3695 = vadd.f32 %v3694, 1.0
    %v3696 = vrcp.pop %v3695
    %v3697 = vmul.f32 %v3695, %v3696
    %v3698 = vsub.f32 1.0, %v3697
    %v3699 = vmul.f32 %v3696, %v3698
    %v3700 = vadd.f32 %v3696, %v3699
    %vm3701 = vweird.f32 %v3695
    %vm3702 = vweird.f32 %v3696
    %vm3703 = vmor %vm3701, %vm3702
    %v3704 = vsel %vm3703, %v3696, %v3700
    %v3705 = vand.u32 2147483647, %v3695
    %vm3706 = vcmp.eq.f32.partialorder %v3705, 8.507059e+37
    %v3707 = vand.u32 %v3695, 2147483648
    %v3708 = vor.u32 1.1754944e-38, %v3707
    %v3709 = vsel %vm3706, %v3708, %v3704
    %v3710 = vmul.f32 1.0, %v3709
    %v3711 = vmul.f32 %v3690, %v3417
    %v3712 = vmul.f32 %v3671, %v3691
    %v3713 = vadd.f32 %v3711, %v3712
    %v3714 = vtanh.pop %v3713
    %v3715 = vmul.f32 %v3710, %v3714
    %v3716 = vpack.c.bf16 %v3715, %v3715
    %v3717 = vadd.f32 %v1577, %v3555
    %v3718 = vadd.f32 %v1578, %v3568
    %v3719 = vadd.f32 %v1579, %v3581
    %v3720 = vadd.f32 %v1580, %v3594
    %3721 = vmatpush.bf16.msra.mxu0 %v2205
    %3722 = vmatpush.bf16.msra.mxu0 %v2201
    %3723 = vmatpush.bf16.msra.mxu0 %v2197
    %3724 = vmatpush.bf16.msra.mxu0 %v2193
    %3725 = vmatpush.bf16.msra.mxu0 %v2189
    %3726 = vmatpush.bf16.msra.mxu0 %v2185
    %3727 = vmatpush.bf16.msra.mxu0 %v2181
    %3728 = vmatpush.bf16.msra.mxu0 %v2177
    %3729 = vmatmul.bf16.gmra.mxu0 %v3716
    %v3730 = vpop.f32.mrf.mxu0
    %v3731 = vadd.f32 0.0, %v3730
    %v3732 = vpop.f32.mrf.mxu0
    %3733 = vdwg.mxu0
    %3734 = vmatpush.bf16.msra.mxu0 %v2206
    %3735 = vmatpush.bf16.msra.mxu0 %v2202
    %3736 = vmatpush.bf16.msra.mxu0 %v2198
    %3737 = vmatpush.bf16.msra.mxu0 %v2194
    %3738 = vmatpush.bf16.msra.mxu0 %v2190
    %3739 = vmatpush.bf16.msra.mxu0 %v2186
    %3740 = vmatpush.bf16.msra.mxu0 %v2182
    %3741 = vmatpush.bf16.msra.mxu0 %v2178
    %3742 = vmatmul.bf16.gmra.mxu0 %v3716
    %v3743 = vpop.f32.mrf.mxu0
    %v3744 = vadd.f32 0.0, %v3743
    %v3745 = vpop.f32.mrf.mxu0
    %3746 = vdwg.mxu0
    %3747 = vmatpush.bf16.msra.mxu0 %v2207
    %3748 = vmatpush.bf16.msra.mxu0 %v2203
    %3749 = vmatpush.bf16.msra.mxu0 %v2199
    %3750 = vmatpush.bf16.msra.mxu0 %v2195
    %3751 = vmatpush.bf16.msra.mxu0 %v2191
    %3752 = vmatpush.bf16.msra.mxu0 %v2187
    %3753 = vmatpush.bf16.msra.mxu0 %v2183
    %3754 = vmatpush.bf16.msra.mxu0 %v2179
    %3755 = vmatmul.bf16.gmra.mxu0 %v3716
    %v3756 = vpop.f32.mrf.mxu0
    %v3757 = vadd.f32 0.0, %v3756
    %v3758 = vpop.f32.mrf.mxu0
    %3759 = vdwg.mxu0
    %3760 = vmatpush.bf16.msra.mxu0 %v2208
    %3761 = vmatpush.bf16.msra.mxu0 %v2204
    %3762 = vmatpush.bf16.msra.mxu0 %v2200
    %3763 = vmatpush.bf16.msra.mxu0 %v2196
    %3764 = vmatpush.bf16.msra.mxu0 %v2192
    %3765 = vmatpush.bf16.msra.mxu0 %v2188
    %3766 = vmatpush.bf16.msra.mxu0 %v2184
    %3767 = vmatpush.bf16.msra.mxu0 %v2180
    %3768 = vmatmul.bf16.gmra.mxu0 %v3716
    %v3769 = vpop.f32.mrf.mxu0
    %v3770 = vadd.f32 0.0, %v3769
    %v3771 = vpop.f32.mrf.mxu0
    %3772 = vdwg.mxu0
    %v3773 = vadd.f32 %v3717, %v3731
    %v3774 = vadd.f32 %v3718, %v3744
    %v3775 = vadd.f32 %v3719, %v3757
    %v3776 = vadd.f32 %v3720, %v3770
    %v3777 = vxor.u32 %v3773, 2147483648
    %v3778 = vmul.f32 %v3777, 1.442695
    %v3779 = vpow.pop %v3778
    %v3780 = vadd.f32 %v3779, 1.0
    %v3781 = vrcp.pop %v3780
    %v3782 = vmul.f32 %v3780, %v3781
    %v3783 = vsub.f32 1.0, %v3782
    %v3784 = vmul.f32 %v3781, %v3783
    %v3785 = vadd.f32 %v3781, %v3784
    %vm3786 = vweird.f32 %v3780
    %vm3787 = vweird.f32 %v3781
    %vm3788 = vmor %vm3786, %vm3787
    %v3789 = vsel %vm3788, %v3781, %v3785
    %v3790 = vand.u32 2147483647, %v3780
    %vm3791 = vcmp.eq.f32.partialorder %v3790, 8.507059e+37
    %v3792 = vand.u32 %v3780, 2147483648
    %v3793 = vor.u32 1.1754944e-38, %v3792
    %v3794 = vsel %vm3791, %v3793, %v3789
    %v3795 = vmul.f32 1.0, %v3794
    %v3796 = vxor.u32 %v3774, 2147483648
    %v3797 = vmul.f32 %v3796, 1.442695
    %v3798 = vpow.pop %v3797
    %v3799 = vadd.f32 %v3798, 1.0
    %v3800 = vrcp.pop %v3799
    %v3801 = vmul.f32 %v3799, %v3800
    %v3802 = vsub.f32 1.0, %v3801
    %v3803 = vmul.f32 %v3800, %v3802
    %v3804 = vadd.f32 %v3800, %v3803
    %vm3805 = vweird.f32 %v3799
    %vm3806 = vweird.f32 %v3800
    %vm3807 = vmor %vm3805, %vm3806
    %v3808 = vsel %vm3807, %v3800, %v3804
    %v3809 = vand.u32 2147483647, %v3799
    %vm3810 = vcmp.eq.f32.partialorder %v3809, 8.507059e+37
    %v3811 = vand.u32 %v3799, 2147483648
    %v3812 = vor.u32 1.1754944e-38, %v3811
    %v3813 = vsel %vm3810, %v3812, %v3808
    %v3814 = vmul.f32 1.0, %v3813
    %v3815 = vtanh.pop %v3775
    %v3816 = vxor.u32 %v3776, 2147483648
    %v3817 = vmul.f32 %v3816, 1.442695
    %v3818 = vpow.pop %v3817
    %v3819 = vadd.f32 %v3818, 1.0
    %v3820 = vrcp.pop %v3819
    %v3821 = vmul.f32 %v3819, %v3820
    %v3822 = vsub.f32 1.0, %v3821
    %v3823 = vmul.f32 %v3820, %v3822
    %v3824 = vadd.f32 %v3820, %v3823
    %vm3825 = vweird.f32 %v3819
    %vm3826 = vweird.f32 %v3820
    %vm3827 = vmor %vm3825, %vm3826
    %v3828 = vsel %vm3827, %v3820, %v3824
    %v3829 = vand.u32 2147483647, %v3819
    %vm3830 = vcmp.eq.f32.partialorder %v3829, 8.507059e+37
    %v3831 = vand.u32 %v3819, 2147483648
    %v3832 = vor.u32 1.1754944e-38, %v3831
    %v3833 = vsel %vm3830, %v3832, %v3828
    %v3834 = vmul.f32 1.0, %v3833
    %v3835 = vmul.f32 %v3814, %v3541
    %v3836 = vmul.f32 %v3795, %v3815
    %v3837 = vadd.f32 %v3835, %v3836
    %v3838 = vtanh.pop %v3837
    %v3839 = vmul.f32 %v3834, %v3838
    %v3840 = vpack.c.bf16 %v3839, %v3839
    %3841 = vmatpush.bf16.msra.mxu0 %v1709
    %3842 = vmatpush.bf16.msra.mxu0 %v1705
    %3843 = vmatpush.bf16.msra.mxu0 %v1701
    %3844 = vmatpush.bf16.msra.mxu0 %v1697
    %3845 = vmatpush.bf16.msra.mxu0 %v1693
    %3846 = vmatpush.bf16.msra.mxu0 %v1689
    %3847 = vmatpush.bf16.msra.mxu0 %v1685
    %3848 = vmatpush.bf16.msra.mxu0 %v1681
    %3849 = vmatmul.bf16.gmra.mxu0 %v3840
    %v3850 = vpop.f32.mrf.mxu0
    %v3851 = vadd.f32 0.0, %v3850
    %v3852 = vpop.f32.mrf.mxu0
    %3853 = vdwg.mxu0
    %3854 = vmatpush.bf16.msra.mxu0 %v1710
    %3855 = vmatpush.bf16.msra.mxu0 %v1706
    %3856 = vmatpush.bf16.msra.mxu0 %v1702
    %3857 = vmatpush.bf16.msra.mxu0 %v1698
    %3858 = vmatpush.bf16.msra.mxu0 %v1694
    %3859 = vmatpush.bf16.msra.mxu0 %v1690
    %3860 = vmatpush.bf16.msra.mxu0 %v1686
    %3861 = vmatpush.bf16.msra.mxu0 %v1682
    %3862 = vmatmul.bf16.gmra.mxu0 %v3840
    %v3863 = vpop.f32.mrf.mxu0
    %v3864 = vadd.f32 0.0, %v3863
    %v3865 = vpop.f32.mrf.mxu0
    %3866 = vdwg.mxu0
    %3867 = vmatpush.bf16.msra.mxu0 %v1711
    %3868 = vmatpush.bf16.msra.mxu0 %v1707
    %3869 = vmatpush.bf16.msra.mxu0 %v1703
    %3870 = vmatpush.bf16.msra.mxu0 %v1699
    %3871 = vmatpush.bf16.msra.mxu0 %v1695
    %3872 = vmatpush.bf16.msra.mxu0 %v1691
    %3873 = vmatpush.bf16.msra.mxu0 %v1687
    %3874 = vmatpush.bf16.msra.mxu0 %v1683
    %3875 = vmatmul.bf16.gmra.mxu0 %v3840
    %v3876 = vpop.f32.mrf.mxu0
    %v3877 = vadd.f32 0.0, %v3876
    %v3878 = vpop.f32.mrf.mxu0
    %3879 = vdwg.mxu0
    %3880 = vmatpush.bf16.msra.mxu0 %v1712
    %3881 = vmatpush.bf16.msra.mxu0 %v1708
    %3882 = vmatpush.bf16.msra.mxu0 %v1704
    %3883 = vmatpush.bf16.msra.mxu0 %v1700
    %3884 = vmatpush.bf16.msra.mxu0 %v1696
    %3885 = vmatpush.bf16.msra.mxu0 %v1692
    %3886 = vmatpush.bf16.msra.mxu0 %v1688
    %3887 = vmatpush.bf16.msra.mxu0 %v1684
    %3888 = vmatmul.bf16.gmra.mxu0 %v3840
    %v3889 = vpop.f32.mrf.mxu0
    %v3890 = vadd.f32 0.0, %v3889
    %v3891 = vpop.f32.mrf.mxu0
    %3892 = vdwg.mxu0
    %3893 = vmatpush.bf16.msra.mxu0 %v1921
    %3894 = vmatpush.bf16.msra.mxu0 %v1917
    %3895 = vmatpush.bf16.msra.mxu0 %v1913
    %3896 = vmatpush.bf16.msra.mxu0 %v1909
    %3897 = vmatpush.bf16.msra.mxu0 %v1905
    %3898 = vmatpush.bf16.msra.mxu0 %v1901
    %3899 = vmatpush.bf16.msra.mxu0 %v1897
    %3900 = vmatpush.bf16.msra.mxu0 %v1893
    %3901 = vmatmul.bf16.gmra.mxu0 %v3716
    %v3902 = vpop.f32.mrf.mxu0
    %v3903 = vadd.f32 0.0, %v3902
    %v3904 = vpop.f32.mrf.mxu0
    %3905 = vdwg.mxu0
    %3906 = vmatpush.bf16.msra.mxu0 %v1922
    %3907 = vmatpush.bf16.msra.mxu0 %v1918
    %3908 = vmatpush.bf16.msra.mxu0 %v1914
    %3909 = vmatpush.bf16.msra.mxu0 %v1910
    %3910 = vmatpush.bf16.msra.mxu0 %v1906
    %3911 = vmatpush.bf16.msra.mxu0 %v1902
    %3912 = vmatpush.bf16.msra.mxu0 %v1898
    %3913 = vmatpush.bf16.msra.mxu0 %v1894
    %3914 = vmatmul.bf16.gmra.mxu0 %v3716
    %v3915 = vpop.f32.mrf.mxu0
    %v3916 = vadd.f32 0.0, %v3915
    %v3917 = vpop.f32.mrf.mxu0
    %3918 = vdwg.mxu0
    %3919 = vmatpush.bf16.msra.mxu0 %v1923
    %3920 = vmatpush.bf16.msra.mxu0 %v1919
    %3921 = vmatpush.bf16.msra.mxu0 %v1915
    %3922 = vmatpush.bf16.msra.mxu0 %v1911
    %3923 = vmatpush.bf16.msra.mxu0 %v1907
    %3924 = vmatpush.bf16.msra.mxu0 %v1903
    %3925 = vmatpush.bf16.msra.mxu0 %v1899
    %3926 = vmatpush.bf16.msra.mxu0 %v1895
    %3927 = vmatmul.bf16.gmra.mxu0 %v3716
    %v3928 = vpop.f32.mrf.mxu0
    %v3929 = vadd.f32 0.0, %v3928
    %v3930 = vpop.f32.mrf.mxu0
    %3931 = vdwg.mxu0
    %3932 = vmatpush.bf16.msra.mxu0 %v1924
    %3933 = vmatpush.bf16.msra.mxu0 %v1920
    %3934 = vmatpush.bf16.msra.mxu0 %v1916
    %3935 = vmatpush.bf16.msra.mxu0 %v1912
    %3936 = vmatpush.bf16.msra.mxu0 %v1908
    %3937 = vmatpush.bf16.msra.mxu0 %v1904
    %3938 = vmatpush.bf16.msra.mxu0 %v1900
    %3939 = vmatpush.bf16.msra.mxu0 %v1896
    %3940 = vmatmul.bf16.gmra.mxu0 %v3716
    %v3941 = vpop.f32.mrf.mxu0
    %v3942 = vadd.f32 0.0, %v3941
    %v3943 = vpop.f32.mrf.mxu0
    %3944 = vdwg.mxu0
    %v3945 = vadd.f32 %v1127, %v3903
    %v3946 = vadd.f32 %v1243, %v3916
    %v3947 = vadd.f32 %v1359, %v3929
    %v3948 = vadd.f32 %v1475, %v3942
    %v3949 = vxor.u32 %v3945, 2147483648
    %v3950 = vmul.f32 %v3949, 1.442695
    %v3951 = vpow.pop %v3950
    %v3952 = vadd.f32 %v3951, 1.0
    %v3953 = vrcp.pop %v3952
    %v3954 = vmul.f32 %v3952, %v3953
    %v3955 = vsub.f32 1.0, %v3954
    %v3956 = vmul.f32 %v3953, %v3955
    %v3957 = vadd.f32 %v3953, %v3956
    %vm3958 = vweird.f32 %v3952
    %vm3959 = vweird.f32 %v3953
    %vm3960 = vmor %vm3958, %vm3959
    %v3961 = vsel %vm3960, %v3953, %v3957
    %v3962 = vand.u32 2147483647, %v3952
    %vm3963 = vcmp.eq.f32.partialorder %v3962, 8.507059e+37
    %v3964 = vand.u32 %v3952, 2147483648
    %v3965 = vor.u32 1.1754944e-38, %v3964
    %v3966 = vsel %vm3963, %v3965, %v3961
    %v3967 = vmul.f32 1.0, %v3966
    %v3968 = vxor.u32 %v3946, 2147483648
    %v3969 = vmul.f32 %v3968, 1.442695
    %v3970 = vpow.pop %v3969
    %v3971 = vadd.f32 %v3970, 1.0
    %v3972 = vrcp.pop %v3971
    %v3973 = vmul.f32 %v3971, %v3972
    %v3974 = vsub.f32 1.0, %v3973
    %v3975 = vmul.f32 %v3972, %v3974
    %v3976 = vadd.f32 %v3972, %v3975
    %vm3977 = vweird.f32 %v3971
    %vm3978 = vweird.f32 %v3972
    %vm3979 = vmor %vm3977, %vm3978
    %v3980 = vsel %vm3979, %v3972, %v3976
    %v3981 = vand.u32 2147483647, %v3971
    %vm3982 = vcmp.eq.f32.partialorder %v3981, 8.507059e+37
    %v3983 = vand.u32 %v3971, 2147483648
    %v3984 = vor.u32 1.1754944e-38, %v3983
    %v3985 = vsel %vm3982, %v3984, %v3980
    %v3986 = vmul.f32 1.0, %v3985
    %v3987 = vtanh.pop %v3947
    %v3988 = vxor.u32 %v3948, 2147483648
    %v3989 = vmul.f32 %v3988, 1.442695
    %v3990 = vpow.pop %v3989
    %v3991 = vadd.f32 %v3990, 1.0
    %v3992 = vrcp.pop %v3991
    %v3993 = vmul.f32 %v3991, %v3992
    %v3994 = vsub.f32 1.0, %v3993
    %v3995 = vmul.f32 %v3992, %v3994
    %v3996 = vadd.f32 %v3992, %v3995
    %vm3997 = vweird.f32 %v3991
    %vm3998 = vweird.f32 %v3992
    %vm3999 = vmor %vm3997, %vm3998
    %v4000 = vsel %vm3999, %v3992, %v3996
    %v4001 = vand.u32 2147483647, %v3991
    %vm4002 = vcmp.eq.f32.partialorder %v4001, 8.507059e+37
    %v4003 = vand.u32 %v3991, 2147483648
    %v4004 = vor.u32 1.1754944e-38, %v4003
    %v4005 = vsel %vm4002, %v4004, %v4000
    %v4006 = vmul.f32 1.0, %v4005
    %v4007 = vmul.f32 %v3986, %v3713
    %v4008 = vmul.f32 %v3967, %v3987
    %v4009 = vadd.f32 %v4007, %v4008
    %v4010 = vtanh.pop %v4009
    %v4011 = vmul.f32 %v4006, %v4010
    %v4012 = vpack.c.bf16 %v4011, %v4011
    %v4013 = vadd.f32 %v1577, %v3851
    %v4014 = vadd.f32 %v1578, %v3864
    %v4015 = vadd.f32 %v1579, %v3877
    %v4016 = vadd.f32 %v1580, %v3890
    %4017 = vmatpush.bf16.msra.mxu0 %v2205
    %4018 = vmatpush.bf16.msra.mxu0 %v2201
    %4019 = vmatpush.bf16.msra.mxu0 %v2197
    %4020 = vmatpush.bf16.msra.mxu0 %v2193
    %4021 = vmatpush.bf16.msra.mxu0 %v2189
    %4022 = vmatpush.bf16.msra.mxu0 %v2185
    %4023 = vmatpush.bf16.msra.mxu0 %v2181
    %4024 = vmatpush.bf16.msra.mxu0 %v2177
    %4025 = vmatmul.bf16.gmra.mxu0 %v4012
    %v4026 = vpop.f32.mrf.mxu0
    %v4027 = vadd.f32 0.0, %v4026
    %v4028 = vpop.f32.mrf.mxu0
    %4029 = vdwg.mxu0
    %4030 = vmatpush.bf16.msra.mxu0 %v2206
    %4031 = vmatpush.bf16.msra.mxu0 %v2202
    %4032 = vmatpush.bf16.msra.mxu0 %v2198
    %4033 = vmatpush.bf16.msra.mxu0 %v2194
    %4034 = vmatpush.bf16.msra.mxu0 %v2190
    %4035 = vmatpush.bf16.msra.mxu0 %v2186
    %4036 = vmatpush.bf16.msra.mxu0 %v2182
    %4037 = vmatpush.bf16.msra.mxu0 %v2178
    %4038 = vmatmul.bf16.gmra.mxu0 %v4012
    %v4039 = vpop.f32.mrf.mxu0
    %v4040 = vadd.f32 0.0, %v4039
    %v4041 = vpop.f32.mrf.mxu0
    %4042 = vdwg.mxu0
    %4043 = vmatpush.bf16.msra.mxu0 %v2207
    %4044 = vmatpush.bf16.msra.mxu0 %v2203
    %4045 = vmatpush.bf16.msra.mxu0 %v2199
    %4046 = vmatpush.bf16.msra.mxu0 %v2195
    %4047 = vmatpush.bf16.msra.mxu0 %v2191
    %4048 = vmatpush.bf16.msra.mxu0 %v2187
    %4049 = vmatpush.bf16.msra.mxu0 %v2183
    %4050 = vmatpush.bf16.msra.mxu0 %v2179
    %4051 = vmatmul.bf16.gmra.mxu0 %v4012
    %v4052 = vpop.f32.mrf.mxu0
    %v4053 = vadd.f32 0.0, %v4052
    %v4054 = vpop.f32.mrf.mxu0
    %4055 = vdwg.mxu0
    %4056 = vmatpush.bf16.msra.mxu0 %v2208
    %4057 = vmatpush.bf16.msra.mxu0 %v2204
    %4058 = vmatpush.bf16.msra.mxu0 %v2200
    %4059 = vmatpush.bf16.msra.mxu0 %v2196
    %4060 = vmatpush.bf16.msra.mxu0 %v2192
    %4061 = vmatpush.bf16.msra.mxu0 %v2188
    %4062 = vmatpush.bf16.msra.mxu0 %v2184
    %4063 = vmatpush.bf16.msra.mxu0 %v2180
    %4064 = vmatmul.bf16.gmra.mxu0 %v4012
    %v4065 = vpop.f32.mrf.mxu0
    %v4066 = vadd.f32 0.0, %v4065
    %v4067 = vpop.f32.mrf.mxu0
    %4068 = vdwg.mxu0
    %v4069 = vadd.f32 %v4013, %v4027
    %v4070 = vadd.f32 %v4014, %v4040
    %v4071 = vadd.f32 %v4015, %v4053
    %v4072 = vadd.f32 %v4016, %v4066
    %v4073 = vxor.u32 %v4069, 2147483648
    %v4074 = vmul.f32 %v4073, 1.442695
    %v4075 = vpow.pop %v4074
    %v4076 = vadd.f32 %v4075, 1.0
    %v4077 = vrcp.pop %v4076
    %v4078 = vmul.f32 %v4076, %v4077
    %v4079 = vsub.f32 1.0, %v4078
    %v4080 = vmul.f32 %v4077, %v4079
    %v4081 = vadd.f32 %v4077, %v4080
    %vm4082 = vweird.f32 %v4076
    %vm4083 = vweird.f32 %v4077
    %vm4084 = vmor %vm4082, %vm4083
    %v4085 = vsel %vm4084, %v4077, %v4081
    %v4086 = vand.u32 2147483647, %v4076
    %vm4087 = vcmp.eq.f32.partialorder %v4086, 8.507059e+37
    %v4088 = vand.u32 %v4076, 2147483648
    %v4089 = vor.u32 1.1754944e-38, %v4088
    %v4090 = vsel %vm4087, %v4089, %v4085
    %v4091 = vmul.f32 1.0, %v4090
    %v4092 = vxor.u32 %v4070, 2147483648
    %v4093 = vmul.f32 %v4092, 1.442695
    %v4094 = vpow.pop %v4093
    %v4095 = vadd.f32 %v4094, 1.0
    %v4096 = vrcp.pop %v4095
    %v4097 = vmul.f32 %v4095, %v4096
    %v4098 = vsub.f32 1.0, %v4097
    %v4099 = vmul.f32 %v4096, %v4098
    %v4100 = vadd.f32 %v4096, %v4099
    %vm4101 = vweird.f32 %v4095
    %vm4102 = vweird.f32 %v4096
    %vm4103 = vmor %vm4101, %vm4102
    %v4104 = vsel %vm4103, %v4096, %v4100
    %v4105 = vand.u32 2147483647, %v4095
    %vm4106 = vcmp.eq.f32.partialorder %v4105, 8.507059e+37
    %v4107 = vand.u32 %v4095, 2147483648
    %v4108 = vor.u32 1.1754944e-38, %v4107
    %v4109 = vsel %vm4106, %v4108, %v4104
    %v4110 = vmul.f32 1.0, %v4109
    %v4111 = vtanh.pop %v4071
    %v4112 = vxor.u32 %v4072, 2147483648
    %v4113 = vmul.f32 %v4112, 1.442695
    %v4114 = vpow.pop %v4113
    %v4115 = vadd.f32 %v4114, 1.0
    %v4116 = vrcp.pop %v4115
    %v4117 = vmul.f32 %v4115, %v4116
    %v4118 = vsub.f32 1.0, %v4117
    %v4119 = vmul.f32 %v4116, %v4118
    %v4120 = vadd.f32 %v4116, %v4119
    %vm4121 = vweird.f32 %v4115
    %vm4122 = vweird.f32 %v4116
    %vm4123 = vmor %vm4121, %vm4122
    %v4124 = vsel %vm4123, %v4116, %v4120
    %v4125 = vand.u32 2147483647, %v4115
    %vm4126 = vcmp.eq.f32.partialorder %v4125, 8.507059e+37
    %v4127 = vand.u32 %v4115, 2147483648
    %v4128 = vor.u32 1.1754944e-38, %v4127
    %v4129 = vsel %vm4126, %v4128, %v4124
    %v4130 = vmul.f32 1.0, %v4129
    %v4131 = vmul.f32 %v4110, %v3837
    %v4132 = vmul.f32 %v4091, %v4111
    %v4133 = vadd.f32 %v4131, %v4132
    %v4134 = vtanh.pop %v4133
    %v4135 = vmul.f32 %v4130, %v4134
    %v4136 = vpack.c.bf16 %v4135, %v4135
    %4137 = vmatpush.bf16.msra.mxu0 %v1709
    %4138 = vmatpush.bf16.msra.mxu0 %v1705
    %4139 = vmatpush.bf16.msra.mxu0 %v1701
    %4140 = vmatpush.bf16.msra.mxu0 %v1697
    %4141 = vmatpush.bf16.msra.mxu0 %v1693
    %4142 = vmatpush.bf16.msra.mxu0 %v1689
    %4143 = vmatpush.bf16.msra.mxu0 %v1685
    %4144 = vmatpush.bf16.msra.mxu0 %v1681
    %4145 = vmatmul.bf16.gmra.mxu0 %v4136
    %v4146 = vpop.f32.mrf.mxu0
    %v4147 = vadd.f32 0.0, %v4146
    %v4148 = vpop.f32.mrf.mxu0
    %4149 = vdwg.mxu0
    %4150 = vmatpush.bf16.msra.mxu0 %v1710
    %4151 = vmatpush.bf16.msra.mxu0 %v1706
    %4152 = vmatpush.bf16.msra.mxu0 %v1702
    %4153 = vmatpush.bf16.msra.mxu0 %v1698
    %4154 = vmatpush.bf16.msra.mxu0 %v1694
    %4155 = vmatpush.bf16.msra.mxu0 %v1690
    %4156 = vmatpush.bf16.msra.mxu0 %v1686
    %4157 = vmatpush.bf16.msra.mxu0 %v1682
    %4158 = vmatmul.bf16.gmra.mxu0 %v4136
    %v4159 = vpop.f32.mrf.mxu0
    %v4160 = vadd.f32 0.0, %v4159
    %v4161 = vpop.f32.mrf.mxu0
    %4162 = vdwg.mxu0
    %4163 = vmatpush.bf16.msra.mxu0 %v1711
    %4164 = vmatpush.bf16.msra.mxu0 %v1707
    %4165 = vmatpush.bf16.msra.mxu0 %v1703
    %4166 = vmatpush.bf16.msra.mxu0 %v1699
    %4167 = vmatpush.bf16.msra.mxu0 %v1695
    %4168 = vmatpush.bf16.msra.mxu0 %v1691
    %4169 = vmatpush.bf16.msra.mxu0 %v1687
    %4170 = vmatpush.bf16.msra.mxu0 %v1683
    %4171 = vmatmul.bf16.gmra.mxu0 %v4136
    %v4172 = vpop.f32.mrf.mxu0
    %v4173 = vadd.f32 0.0, %v4172
    %v4174 = vpop.f32.mrf.mxu0
    %4175 = vdwg.mxu0
    %4176 = vmatpush.bf16.msra.mxu0 %v1712
    %4177 = vmatpush.bf16.msra.mxu0 %v1708
    %4178 = vmatpush.bf16.msra.mxu0 %v1704
    %4179 = vmatpush.bf16.msra.mxu0 %v1700
    %4180 = vmatpush.bf16.msra.mxu0 %v1696
    %4181 = vmatpush.bf16.msra.mxu0 %v1692
    %4182 = vmatpush.bf16.msra.mxu0 %v1688
    %4183 = vmatpush.bf16.msra.mxu0 %v1684
    %4184 = vmatmul.bf16.gmra.mxu0 %v4136
    %v4185 = vpop.f32.mrf.mxu0
    %v4186 = vadd.f32 0.0, %v4185
    %v4187 = vpop.f32.mrf.mxu0
    %4188 = vdwg.mxu0
    %4189 = vmatpush.bf16.msra.mxu0 %v1921
    %4190 = vmatpush.bf16.msra.mxu0 %v1917
    %4191 = vmatpush.bf16.msra.mxu0 %v1913
    %4192 = vmatpush.bf16.msra.mxu0 %v1909
    %4193 = vmatpush.bf16.msra.mxu0 %v1905
    %4194 = vmatpush.bf16.msra.mxu0 %v1901
    %4195 = vmatpush.bf16.msra.mxu0 %v1897
    %4196 = vmatpush.bf16.msra.mxu0 %v1893
    %4197 = vmatmul.bf16.gmra.mxu0 %v4012
    %v4198 = vpop.f32.mrf.mxu0
    %v4199 = vadd.f32 0.0, %v4198
    %v4200 = vpop.f32.mrf.mxu0
    %4201 = vdwg.mxu0
    %4202 = vmatpush.bf16.msra.mxu0 %v1922
    %4203 = vmatpush.bf16.msra.mxu0 %v1918
    %4204 = vmatpush.bf16.msra.mxu0 %v1914
    %4205 = vmatpush.bf16.msra.mxu0 %v1910
    %4206 = vmatpush.bf16.msra.mxu0 %v1906
    %4207 = vmatpush.bf16.msra.mxu0 %v1902
    %4208 = vmatpush.bf16.msra.mxu0 %v1898
    %4209 = vmatpush.bf16.msra.mxu0 %v1894
    %4210 = vmatmul.bf16.gmra.mxu0 %v4012
    %v4211 = vpop.f32.mrf.mxu0
    %v4212 = vadd.f32 0.0, %v4211
    %v4213 = vpop.f32.mrf.mxu0
    %4214 = vdwg.mxu0
    %4215 = vmatpush.bf16.msra.mxu0 %v1923
    %4216 = vmatpush.bf16.msra.mxu0 %v1919
    %4217 = vmatpush.bf16.msra.mxu0 %v1915
    %4218 = vmatpush.bf16.msra.mxu0 %v1911
    %4219 = vmatpush.bf16.msra.mxu0 %v1907
    %4220 = vmatpush.bf16.msra.mxu0 %v1903
    %4221 = vmatpush.bf16.msra.mxu0 %v1899
    %4222 = vmatpush.bf16.msra.mxu0 %v1895
    %4223 = vmatmul.bf16.gmra.mxu0 %v4012
    %v4224 = vpop.f32.mrf.mxu0
    %v4225 = vadd.f32 0.0, %v4224
    %v4226 = vpop.f32.mrf.mxu0
    %4227 = vdwg.mxu0
    %4228 = vmatpush.bf16.msra.mxu0 %v1924
    %4229 = vmatpush.bf16.msra.mxu0 %v1920
    %4230 = vmatpush.bf16.msra.mxu0 %v1916
    %4231 = vmatpush.bf16.msra.mxu0 %v1912
    %4232 = vmatpush.bf16.msra.mxu0 %v1908
    %4233 = vmatpush.bf16.msra.mxu0 %v1904
    %4234 = vmatpush.bf16.msra.mxu0 %v1900
    %4235 = vmatpush.bf16.msra.mxu0 %v1896
    %4236 = vmatmul.bf16.gmra.mxu0 %v4012
    %v4237 = vpop.f32.mrf.mxu0
    %v4238 = vadd.f32 0.0, %v4237
    %v4239 = vpop.f32.mrf.mxu0
    %4240 = vdwg.mxu0
    %v4241 = vadd.f32 %v1129, %v4199
    %v4242 = vadd.f32 %v1245, %v4212
    %v4243 = vadd.f32 %v1361, %v4225
    %v4244 = vadd.f32 %v1477, %v4238
    %v4245 = vxor.u32 %v4241, 2147483648
    %v4246 = vmul.f32 %v4245, 1.442695
    %v4247 = vpow.pop %v4246
    %v4248 = vadd.f32 %v4247, 1.0
    %v4249 = vrcp.pop %v4248
    %v4250 = vmul.f32 %v4248, %v4249
    %v4251 = vsub.f32 1.0, %v4250
    %v4252 = vmul.f32 %v4249, %v4251
    %v4253 = vadd.f32 %v4249, %v4252
    %vm4254 = vweird.f32 %v4248
    %vm4255 = vweird.f32 %v4249
    %vm4256 = vmor %vm4254, %vm4255
    %v4257 = vsel %vm4256, %v4249, %v4253
    %v4258 = vand.u32 2147483647, %v4248
    %vm4259 = vcmp.eq.f32.partialorder %v4258, 8.507059e+37
    %v4260 = vand.u32 %v4248, 2147483648
    %v4261 = vor.u32 1.1754944e-38, %v4260
    %v4262 = vsel %vm4259, %v4261, %v4257
    %v4263 = vmul.f32 1.0, %v4262
    %v4264 = vxor.u32 %v4242, 2147483648
    %v4265 = vmul.f32 %v4264, 1.442695
    %v4266 = vpow.pop %v4265
    %v4267 = vadd.f32 %v4266, 1.0
    %v4268 = vrcp.pop %v4267
    %v4269 = vmul.f32 %v4267, %v4268
    %v4270 = vsub.f32 1.0, %v4269
    %v4271 = vmul.f32 %v4268, %v4270
    %v4272 = vadd.f32 %v4268, %v4271
    %vm4273 = vweird.f32 %v4267
    %vm4274 = vweird.f32 %v4268
    %vm4275 = vmor %vm4273, %vm4274
    %v4276 = vsel %vm4275, %v4268, %v4272
    %v4277 = vand.u32 2147483647, %v4267
    %vm4278 = vcmp.eq.f32.partialorder %v4277, 8.507059e+37
    %v4279 = vand.u32 %v4267, 2147483648
    %v4280 = vor.u32 1.1754944e-38, %v4279
    %v4281 = vsel %vm4278, %v4280, %v4276
    %v4282 = vmul.f32 1.0, %v4281
    %v4283 = vtanh.pop %v4243
    %v4284 = vxor.u32 %v4244, 2147483648
    %v4285 = vmul.f32 %v4284, 1.442695
    %v4286 = vpow.pop %v4285
    %v4287 = vadd.f32 %v4286, 1.0
    %v4288 = vrcp.pop %v4287
    %v4289 = vmul.f32 %v4287, %v4288
    %v4290 = vsub.f32 1.0, %v4289
    %v4291 = vmul.f32 %v4288, %v4290
    %v4292 = vadd.f32 %v4288, %v4291
    %vm4293 = vweird.f32 %v4287
    %vm4294 = vweird.f32 %v4288
    %vm4295 = vmor %vm4293, %vm4294
    %v4296 = vsel %vm4295, %v4288, %v4292
    %v4297 = vand.u32 2147483647, %v4287
    %vm4298 = vcmp.eq.f32.partialorder %v4297, 8.507059e+37
    %v4299 = vand.u32 %v4287, 2147483648
    %v4300 = vor.u32 1.1754944e-38, %v4299
    %v4301 = vsel %vm4298, %v4300, %v4296
    %v4302 = vmul.f32 1.0, %v4301
    %v4303 = vmul.f32 %v4282, %v4009
    %v4304 = vmul.f32 %v4263, %v4283
    %v4305 = vadd.f32 %v4303, %v4304
    %v4306 = vtanh.pop %v4305
    %v4307 = vmul.f32 %v4302, %v4306
    %v4308 = vpack.c.bf16 %v4307, %v4307
    %v4309 = vadd.f32 %v1577, %v4147
    %v4310 = vadd.f32 %v1578, %v4160
    %v4311 = vadd.f32 %v1579, %v4173
    %v4312 = vadd.f32 %v1580, %v4186
    %4313 = vmatpush.bf16.msra.mxu0 %v2205
    %4314 = vmatpush.bf16.msra.mxu0 %v2201
    %4315 = vmatpush.bf16.msra.mxu0 %v2197
    %4316 = vmatpush.bf16.msra.mxu0 %v2193
    %4317 = vmatpush.bf16.msra.mxu0 %v2189
    %4318 = vmatpush.bf16.msra.mxu0 %v2185
    %4319 = vmatpush.bf16.msra.mxu0 %v2181
    %4320 = vmatpush.bf16.msra.mxu0 %v2177
    %4321 = vmatmul.bf16.gmra.mxu0 %v4308
    %v4322 = vpop.f32.mrf.mxu0
    %v4323 = vadd.f32 0.0, %v4322
    %v4324 = vpop.f32.mrf.mxu0
    %4325 = vdwg.mxu0
    %4326 = vmatpush.bf16.msra.mxu0 %v2206
    %4327 = vmatpush.bf16.msra.mxu0 %v2202
    %4328 = vmatpush.bf16.msra.mxu0 %v2198
    %4329 = vmatpush.bf16.msra.mxu0 %v2194
    %4330 = vmatpush.bf16.msra.mxu0 %v2190
    %4331 = vmatpush.bf16.msra.mxu0 %v2186
    %4332 = vmatpush.bf16.msra.mxu0 %v2182
    %4333 = vmatpush.bf16.msra.mxu0 %v2178
    %4334 = vmatmul.bf16.gmra.mxu0 %v4308
    %v4335 = vpop.f32.mrf.mxu0
    %v4336 = vadd.f32 0.0, %v4335
    %v4337 = vpop.f32.mrf.mxu0
    %4338 = vdwg.mxu0
    %4339 = vmatpush.bf16.msra.mxu0 %v2207
    %4340 = vmatpush.bf16.msra.mxu0 %v2203
    %4341 = vmatpush.bf16.msra.mxu0 %v2199
    %4342 = vmatpush.bf16.msra.mxu0 %v2195
    %4343 = vmatpush.bf16.msra.mxu0 %v2191
    %4344 = vmatpush.bf16.msra.mxu0 %v2187
    %4345 = vmatpush.bf16.msra.mxu0 %v2183
    %4346 = vmatpush.bf16.msra.mxu0 %v2179
    %4347 = vmatmul.bf16.gmra.mxu0 %v4308
    %v4348 = vpop.f32.mrf.mxu0
    %v4349 = vadd.f32 0.0, %v4348
    %v4350 = vpop.f32.mrf.mxu0
    %4351 = vdwg.mxu0
    %4352 = vmatpush.bf16.msra.mxu0 %v2208
    %4353 = vmatpush.bf16.msra.mxu0 %v2204
    %4354 = vmatpush.bf16.msra.mxu0 %v2200
    %4355 = vmatpush.bf16.msra.mxu0 %v2196
    %4356 = vmatpush.bf16.msra.mxu0 %v2192
    %4357 = vmatpush.bf16.msra.mxu0 %v2188
    %4358 = vmatpush.bf16.msra.mxu0 %v2184
    %4359 = vmatpush.bf16.msra.mxu0 %v2180
    %4360 = vmatmul.bf16.gmra.mxu0 %v4308
    %v4361 = vpop.f32.mrf.mxu0
    %v4362 = vadd.f32 0.0, %v4361
    %v4363 = vpop.f32.mrf.mxu0
    %4364 = vdwg.mxu0
    %v4365 = vadd.f32 %v4309, %v4323
    %v4366 = vadd.f32 %v4310, %v4336
    %v4367 = vadd.f32 %v4311, %v4349
    %v4368 = vadd.f32 %v4312, %v4362
    %v4369 = vxor.u32 %v4365, 2147483648
    %v4370 = vmul.f32 %v4369, 1.442695
    %v4371 = vpow.pop %v4370
    %v4372 = vadd.f32 %v4371, 1.0
    %v4373 = vrcp.pop %v4372
    %v4374 = vmul.f32 %v4372, %v4373
    %v4375 = vsub.f32 1.0, %v4374
    %v4376 = vmul.f32 %v4373, %v4375
    %v4377 = vadd.f32 %v4373, %v4376
    %vm4378 = vweird.f32 %v4372
    %vm4379 = vweird.f32 %v4373
    %vm4380 = vmor %vm4378, %vm4379
    %v4381 = vsel %vm4380, %v4373, %v4377
    %v4382 = vand.u32 2147483647, %v4372
    %vm4383 = vcmp.eq.f32.partialorder %v4382, 8.507059e+37
    %v4384 = vand.u32 %v4372, 2147483648
    %v4385 = vor.u32 1.1754944e-38, %v4384
    %v4386 = vsel %vm4383, %v4385, %v4381
    %v4387 = vmul.f32 1.0, %v4386
    %v4388 = vxor.u32 %v4366, 2147483648
    %v4389 = vmul.f32 %v4388, 1.442695
    %v4390 = vpow.pop %v4389
    %v4391 = vadd.f32 %v4390, 1.0
    %v4392 = vrcp.pop %v4391
    %v4393 = vmul.f32 %v4391, %v4392
    %v4394 = vsub.f32 1.0, %v4393
    %v4395 = vmul.f32 %v4392, %v4394
    %v4396 = vadd.f32 %v4392, %v4395
    %vm4397 = vweird.f32 %v4391
    %vm4398 = vweird.f32 %v4392
    %vm4399 = vmor %vm4397, %vm4398
    %v4400 = vsel %vm4399, %v4392, %v4396
    %v4401 = vand.u32 2147483647, %v4391
    %vm4402 = vcmp.eq.f32.partialorder %v4401, 8.507059e+37
    %v4403 = vand.u32 %v4391, 2147483648
    %v4404 = vor.u32 1.1754944e-38, %v4403
    %v4405 = vsel %vm4402, %v4404, %v4400
    %v4406 = vmul.f32 1.0, %v4405
    %v4407 = vtanh.pop %v4367
    %v4408 = vxor.u32 %v4368, 2147483648
    %v4409 = vmul.f32 %v4408, 1.442695
    %v4410 = vpow.pop %v4409
    %v4411 = vadd.f32 %v4410, 1.0
    %v4412 = vrcp.pop %v4411
    %v4413 = vmul.f32 %v4411, %v4412
    %v4414 = vsub.f32 1.0, %v4413
    %v4415 = vmul.f32 %v4412, %v4414
    %v4416 = vadd.f32 %v4412, %v4415
    %vm4417 = vweird.f32 %v4411
    %vm4418 = vweird.f32 %v4412
    %vm4419 = vmor %vm4417, %vm4418
    %v4420 = vsel %vm4419, %v4412, %v4416
    %v4421 = vand.u32 2147483647, %v4411
    %vm4422 = vcmp.eq.f32.partialorder %v4421, 8.507059e+37
    %v4423 = vand.u32 %v4411, 2147483648
    %v4424 = vor.u32 1.1754944e-38, %v4423
    %v4425 = vsel %vm4422, %v4424, %v4420
    %v4426 = vmul.f32 1.0, %v4425
    %v4427 = vmul.f32 %v4406, %v4133
    %v4428 = vmul.f32 %v4387, %v4407
    %v4429 = vadd.f32 %v4427, %v4428
    %v4430 = vtanh.pop %v4429
    %v4431 = vmul.f32 %v4426, %v4430
    %v4432 = vld [vmem:[#allocation13] sm:$0xff]
    %v4433 = vld [vmem:[#allocation13 + $0x8] sm:$0xff]
    %v4434 = vld [vmem:[#allocation13 + $0x10] sm:$0xff]
    %v4435 = vld [vmem:[#allocation13 + $0x18] sm:$0xff]
    %v4436 = vld [vmem:[#allocation13 + $0x20] sm:$0xff]
    %v4437 = vld [vmem:[#allocation13 + $0x28] sm:$0xff]
    %v4438 = vld [vmem:[#allocation13 + $0x30] sm:$0xff]
    %v4439 = vld [vmem:[#allocation13 + $0x38] sm:$0xff]
    %v4440 = vld [vmem:[#allocation13 + $0x40] sm:$0xff]
    %v4441 = vld [vmem:[#allocation13 + $0x48] sm:$0xff]
    %v4442 = vld [vmem:[#allocation13 + $0x50] sm:$0xff]
    %v4443 = vld [vmem:[#allocation13 + $0x58] sm:$0xff]
    %v4444 = vld [vmem:[#allocation13 + $0x60] sm:$0xff]
    %v4445 = vld [vmem:[#allocation13 + $0x68] sm:$0xff]
    %v4446 = vld [vmem:[#allocation13 + $0x70] sm:$0xff]
    %v4447 = vld [vmem:[#allocation13 + $0x78] sm:$0xff]
    %v4448 = vld [vmem:[%s8] sm:$0x1]
    %v4450 = vperm.slane %v4448, 0
    %4452 = vmatpush.msra.mxu0 %v4447
    %4453 = vmatpush.msra.mxu0 %v4446
    %4454 = vmatpush.msra.mxu0 %v4445
    %4455 = vmatpush.msra.mxu0 %v4444
    %4456 = vmatpush.msra.mxu0 %v4443
    %4457 = vmatpush.msra.mxu0 %v4442
    %4458 = vmatpush.msra.mxu0 %v4441
    %4459 = vmatpush.msra.mxu0 %v4440
    %4460 = vmatpush.msra.mxu0 %v4439
    %4461 = vmatpush.msra.mxu0 %v4438
    %4462 = vmatpush.msra.mxu0 %v4437
    %4463 = vmatpush.msra.mxu0 %v4436
    %4464 = vmatpush.msra.mxu0 %v4435
    %4465 = vmatpush.msra.mxu0 %v4434
    %4466 = vmatpush.msra.mxu0 %v4433
    %4467 = vmatpush.msra.mxu0 %v4432
    %4468 = vmatmul.f32.gmra.mxu0 %v4431
    %v4469 = vpop.f32.mrf.mxu0
    %v4470 = vadd.f32 %v4450, %v4469
    %4471 = vdwg.mxu0
    %4472 = vst [vmem:[#allocation14] sm:$0xff] %v4470
    // Predicated region
    $region66: #{tpu_custom_call.1} parent=1 // pred_check
      _
    $region67: #{tpu_custom_call.1} parent=1 // pred_check_branch
      %4474 = sbr.rel (0) target = $region69
    $region68: #{tpu_custom_call.1} parent=1 // pred_region
      %4476 = vsyncadd [#allocation4], 0
      %s4478 = sshll.u32 [#allocation14], 4
      %s4479 = int_to_ptr.vmem [resolvable:$true] %s4478
      %s4480 = sshll.u32 %s9, 4
      %s4481 = int_to_ptr.hbm [resolvable:$true] %s4480
      %4483 = dma.vmem_to_hbm [thread:$0]  %s4479, 128, %s4481, [#allocation4]
    $region69: #{tpu_custom_call.1} parent=1 // pred_fallthru
      _
    // Predicated region
    $region70: #{tpu_custom_call.1} parent=1 // pred_check
      _
    $region71: #{tpu_custom_call.1} parent=1 // pred_check_branch
      %4485 = sbr.rel (0) target = $region73
    $region72: #{tpu_custom_call.1} parent=1 // pred_region
      %4487 = dma.done [#allocation4], 128
    $region73: #{tpu_custom_call.1} parent=1 // pred_fallthru
      _
    %4488 = vsyncpa [#allocation3], 1
    %4489 = vsyncpa [#allocation6], 1
    %4490 = vsyncpa [#allocation9], 1
    %4491 = vsyncpa [#allocation12], 1
    %4492 = vsyncpa [#allocation4], 1

</llo_original>
